<compile_context>
chip_gen: v7x
topology: tpu7x:2x2x1
jax: 0.10.0
libtpu: 0.0.40
codegen_flags: <defaults>
</compile_context>

<pallas_src>
import functools

import jax
import jax.numpy as jnp
import numpy as np
from jax import lax
from jax.experimental import pallas as pl
from jax.experimental.pallas import tpu as pltpu


def _blstm_recurrent_kernel(gxf_ref, gxb_ref, whf_ref, whb_ref,
                            outf_ref, outb_ref,
                            hf_ref, cf_ref, hb_ref, cb_ref, *,
                            hidden_dim, steps_per_chunk):
    """One time-chunk grid step: T_c interleaved fwd+bwd LSTM cell updates.

    gxf_ref / gxb_ref : (T_c, B, 4H) bf16  precomputed x @ W_ih + bias
                        (fwd chunk c; bwd chunk C-1-c)
    whf_ref / whb_ref : (H, 4H) bf16       recurrent weights per direction
    outf_ref / outb_ref: (T_c, B, H) f32   hidden states (flushed per chunk)
    hf/cf/hb/cb_ref   : (B, H) f32         carried recurrent state (scratch)
    """
    H = hidden_dim
    Tc = steps_per_chunk

    @pl.when(pl.program_id(0) == 0)
    def _init():
        hf_ref[...] = jnp.zeros_like(hf_ref)
        cf_ref[...] = jnp.zeros_like(cf_ref)
        hb_ref[...] = jnp.zeros_like(hb_ref)
        cb_ref[...] = jnp.zeros_like(cb_ref)

    def sigmoid(x):
        # 1 EUP op (tanh) instead of exp+reciprocal.
        return 0.5 * jnp.tanh(0.5 * x) + 0.5

    def cell(gates, c_old):
        i_g = sigmoid(gates[:, 0 * H:1 * H])
        f_g = sigmoid(gates[:, 1 * H:2 * H])
        c_g = jnp.tanh(gates[:, 2 * H:3 * H])
        o_g = sigmoid(gates[:, 3 * H:4 * H])
        c_new = f_g * c_old + i_g * c_g
        h_new = o_g * jnp.tanh(c_new)
        return h_new, c_new

    def step(t, carry):
        tb = Tc - 1 - t   # backward walks its (already reversed-order) chunk

        # Recurrent matmuls: bf16 inputs, f32 accumulate.  W_hh is read from
        # the VMEM ref each iteration (no long-lived vreg copy).
        g_f = gxf_ref[t].astype(jnp.float32) + jnp.dot(
            hf_ref[...].astype(jnp.bfloat16), whf_ref[...],
            preferred_element_type=jnp.float32)
        g_b = gxb_ref[tb].astype(jnp.float32) + jnp.dot(
            hb_ref[...].astype(jnp.bfloat16), whb_ref[...],
            preferred_element_type=jnp.float32)

        h_f, c_f = cell(g_f, cf_ref[...])
        h_b, c_b = cell(g_b, cb_ref[...])

        hf_ref[...] = h_f
        cf_ref[...] = c_f
        hb_ref[...] = h_b
        cb_ref[...] = c_b
        outf_ref[t] = h_f.astype(outf_ref.dtype)
        outb_ref[tb] = h_b.astype(outb_ref.dtype)
        return carry

    # Partial unroll gives the LLO scheduler a window to overlap gx loads /
    # out stores / scalar index math with the serial matmul+EUP chain.
    lax.fori_loop(0, Tc, step, 0, unroll=max(1, min(8, Tc)))


def per_step_blstm(x, params, hidden_dim, *, max_chunk=128,
                   vmem_budget_bytes=16 << 20):
    """x: (B, T, E) float32. Returns (B, T, 2*hidden_dim) float32."""
    B, T, E = x.shape
    H = hidden_dim
    wih_f, whh_f, b_f, wih_b, whh_b, b_b = params

    # ---- Chunk sizing from an explicit VMEM budget (fits v7x too). ---------
    # double-buffered gx (bf16) + double-buffered out (f32) per T_c step:
    per_step_bytes = 2 * 2 * (B * 4 * H * 2) + 2 * 2 * (B * H * 4)   # 48*B*H
    # double-buffered W_hh (bf16) + f32 h/c scratch:
    fixed_bytes = 2 * 2 * (H * 4 * H * 2) + 4 * (B * H * 4)
    t_c_cap = max(1, (vmem_budget_bytes - fixed_bytes) // per_step_bytes)
    T_c = int(max(1, min(T, max_chunk, t_c_cap)))
    C = -(-T // T_c)              # cdiv: no degenerate T_c=1 for prime T
    Tpad = C * T_c

    vmem_needed = fixed_bytes + per_step_bytes * T_c
    vmem_limit = int(min(max(2 * vmem_needed, 32 << 20), 48 << 20))

    # ---- Phase 1: hoisted, fully-parallel input projection (single matmul).
    wih_cat = jnp.concatenate([wih_f, wih_b], axis=1)        # (E, 8H)
    bias_cat = jnp.concatenate([b_f, b_b], axis=1)           # (1, 8H)
    g = x.reshape(B * T, E) @ wih_cat + bias_cat             # f32 (B*T, 8H)
    g = g.reshape(B, T, 8 * H).transpose(1, 0, 2).astype(jnp.bfloat16)
    gx_f = g[..., :4 * H]                                    # (T, B, 4H) bf16
    gx_b = g[..., 4 * H:]                                    # (T, B, 4H) bf16
    if Tpad > T:
        pad = ((0, Tpad - T), (0, 0), (0, 0))
        # Zero-padded gx keeps the zero-initialized LSTM state exactly zero,
        # so the backward direction's leading padded steps are harmless.
        gx_f = jnp.pad(gx_f, pad)
        gx_b = jnp.pad(gx_b, pad)
    whh_f_bf = whh_f.astype(jnp.bfloat16)
    whh_b_bf = whh_b.astype(jnp.bfloat16)

    # ---- Phase 2: chunked serial recurrence in Pallas (both dirs per step).
    kernel = functools.partial(_blstm_recurrent_kernel,
                               hidden_dim=H, steps_per_chunk=T_c)

    out_f, out_b = pl.pallas_call(
        kernel,
        out_shape=(jax.ShapeDtypeStruct((Tpad, B, H), jnp.float32),
                   jax.ShapeDtypeStruct((Tpad, B, H), jnp.float32)),
        grid_spec=pltpu.PrefetchScalarGridSpec(
            num_scalar_prefetch=0,
            grid=(C,),
            in_specs=[
                # forward gx: chunk c (time increasing)
                pl.BlockSpec((T_c, B, 4 * H), lambda c: (c, 0, 0)),
                # backward gx: reversed chunk order (time decreasing)
                pl.BlockSpec((T_c, B, 4 * H), lambda c: (C - 1 - c, 0, 0)),
                pl.BlockSpec((H, 4 * H), lambda c: (0, 0)),   # W_hh fwd
                pl.BlockSpec((H, 4 * H), lambda c: (0, 0)),   # W_hh bwd
            ],
            out_specs=[
                pl.BlockSpec((T_c, B, H), lambda c: (c, 0, 0)),
                pl.BlockSpec((T_c, B, H), lambda c: (C - 1 - c, 0, 0)),
            ],
            scratch_shapes=[
                pltpu.VMEM((B, H), jnp.float32),   # h fwd
                pltpu.VMEM((B, H), jnp.float32),   # c fwd
                pltpu.VMEM((B, H), jnp.float32),   # h bwd
                pltpu.VMEM((B, H), jnp.float32),   # c bwd
            ],
        ),
        compiler_params=pltpu.CompilerParams(
            # time-chunk axis MUST stay sequential for the carried state.
            dimension_semantics=("arbitrary",),
            vmem_limit_bytes=vmem_limit),
    )(gx_f, gx_b, whh_f_bf, whh_b_bf)

    # (T, B, H) x2 -> (B, T, 2H): [:, :, :H]=fwd, [:, :, H:]=bwd
    return jnp.concatenate([out_f[:T], out_b[:T]], axis=-1).transpose(1, 0, 2)


def init_params(key, embedding_dim, hidden_dim):
    """Deterministic synthetic init (PyTorch Linear-style uniform)."""
    E, H = embedding_dim, hidden_dim
    keys = jax.random.split(key, 6)
    lim_e = 1.0 / np.sqrt(E)
    lim_h = 1.0 / np.sqrt(H)
    # packed gate order: [in, forget, cell, out]; bias = b_ih + b_hh combined.
    wih_f = jax.random.uniform(keys[0], (E, 4 * H), jnp.float32, -lim_e, lim_e)
    whh_f = jax.random.uniform(keys[1], (H, 4 * H), jnp.float32, -lim_h, lim_h)
    b_f = jax.random.uniform(keys[2], (1, 4 * H), jnp.float32, -lim_e, lim_e)
    wih_b = jax.random.uniform(keys[3], (E, 4 * H), jnp.float32, -lim_e, lim_e)
    whh_b = jax.random.uniform(keys[4], (H, 4 * H), jnp.float32, -lim_h, lim_h)
    b_b = jax.random.uniform(keys[5], (1, 4 * H), jnp.float32, -lim_e, lim_e)
    return (wih_f, whh_f, b_f, wih_b, whh_b, b_b)


def reference_blstm(x, params, hidden_dim):
    """Pure-JAX reference mirroring the PyTorch per-step loop (eval mode)."""
    B, T, E = x.shape
    H = hidden_dim
    wih_f, whh_f, b_f, wih_b, whh_b, b_b = params

    def cell(x_t, h, c, wih, whh, b):
        g = x_t @ wih + h @ whh + b
        i_g = jax.nn.sigmoid(g[:, 0 * H:1 * H])
        f_g = jax.nn.sigmoid(g[:, 1 * H:2 * H])
        c_g = jnp.tanh(g[:, 2 * H:3 * H])
        o_g = jax.nn.sigmoid(g[:, 3 * H:4 * H])
        c_new = f_g * c + i_g * c_g
        h_new = o_g * jnp.tanh(c_new)
        return h_new, c_new

    hf = jnp.zeros((B, H), jnp.float32)
    cf = jnp.zeros((B, H), jnp.float32)
    hb = jnp.zeros((B, H), jnp.float32)
    cb = jnp.zeros((B, H), jnp.float32)
    out = jnp.zeros((B, T, 2 * H), jnp.float32)
    for i in range(T):
        hf, cf = cell(x[:, i, :], hf, cf, wih_f, whh_f, b_f)
        hb, cb = cell(x[:, T - 1 - i, :], hb, cb, wih_b, whh_b, b_b)
        out = out.at[:, i, :H].set(hf)
        out = out.at[:, T - 1 - i, H:].set(hb)
    return out


if __name__ == "__main__":
    B, T, E, H = 8, 8, 16, 32
    key = jax.random.PRNGKey(0)
    kx, kp = jax.random.split(key)
    x = jax.random.normal(kx, (B, T, E), jnp.float32)
    params = init_params(kp, E, H)

    out = per_step_blstm(x, params, H)
    out = jax.block_until_ready(out)

    ref = reference_blstm(x, params, H)
    # Tolerance relaxed for bf16 gx / recurrent matmul (f32 state & accum).
    np.testing.assert_allclose(np.asarray(out), np.asarray(ref),
                               rtol=2e-2, atol=2e-2)
    print("KERNEL_OK")
</pallas_src>

<mosaic_0001>
module attributes {stable_mosaic.version = 11 : i64} {
  func.func @_blstm_recurrent_kernel(%arg0: i32, %arg1: memref<8x8x128xbf16, #tpu.memory_space<vmem>>, %arg2: memref<8x8x128xbf16, #tpu.memory_space<vmem>>, %arg3: memref<32x128xbf16, #tpu.memory_space<vmem>>, %arg4: memref<32x128xbf16, #tpu.memory_space<vmem>>, %arg5: memref<8x8x32xf32, #tpu.memory_space<vmem>>, %arg6: memref<8x8x32xf32, #tpu.memory_space<vmem>>, %arg7: memref<8x32xf32, #tpu.memory_space<vmem>>, %arg8: memref<8x32xf32, #tpu.memory_space<vmem>>, %arg9: memref<8x32xf32, #tpu.memory_space<vmem>>, %arg10: memref<8x32xf32, #tpu.memory_space<vmem>>) attributes {dimension_semantics = [#tpu.dimension_semantics<arbitrary>], iteration_bounds = array<i64: 1>, scalar_prefetch = 0 : i64, scratch_operands = 4 : i64, tpu.core_type = #tpu.core_type<tc>, window_params = [{transform_indices = @transform_0, window_bounds = array<i64: 8, 8, 128>}, {transform_indices = @transform_1, window_bounds = array<i64: 8, 8, 128>}, {pipeline_mode = #tpu.pipeline_mode<synchronous>, transform_indices = @transform_2, window_bounds = array<i64: 32, 128>}, {pipeline_mode = #tpu.pipeline_mode<synchronous>, transform_indices = @transform_3, window_bounds = array<i64: 32, 128>}, {transform_indices = @transform_4, window_bounds = array<i64: 8, 8, 32>}, {transform_indices = @transform_5, window_bounds = array<i64: 8, 8, 32>}]} {
    %c0_i32 = arith.constant 0 : i32
    %0 = arith.cmpi eq, %arg0, %c0_i32 : i32
    %1 = arith.extui %0 : i1 to i32
    %c0_i32_0 = arith.constant 0 : i32
    %2 = arith.cmpi ne, %1, %c0_i32_0 : i32
    scf.if %2 {
      %cst_392 = arith.constant 0.000000e+00 : f32
      %763 = vector.broadcast %cst_392 : f32 to vector<8x32xf32>
      %c0_393 = arith.constant 0 : index
      %c0_394 = arith.constant 0 : index
      %764 = vector.load %arg7[%c0_393, %c0_394] : memref<8x32xf32, #tpu.memory_space<vmem>>, vector<8x32xf32>
      tpu.vector_store %arg7[%c0_393, %c0_394], %763 {strides = array<i32>} : memref<8x32xf32, #tpu.memory_space<vmem>>, vector<8x32xf32>,
      %cst_395 = arith.constant 0.000000e+00 : f32
      %765 = vector.broadcast %cst_395 : f32 to vector<8x32xf32>
      %c0_396 = arith.constant 0 : index
      %c0_397 = arith.constant 0 : index
      %766 = vector.load %arg8[%c0_396, %c0_397] : memref<8x32xf32, #tpu.memory_space<vmem>>, vector<8x32xf32>
      tpu.vector_store %arg8[%c0_396, %c0_397], %765 {strides = array<i32>} : memref<8x32xf32, #tpu.memory_space<vmem>>, vector<8x32xf32>,
      %cst_398 = arith.constant 0.000000e+00 : f32
      %767 = vector.broadcast %cst_398 : f32 to vector<8x32xf32>
      %c0_399 = arith.constant 0 : index
      %c0_400 = arith.constant 0 : index
      %768 = vector.load %arg9[%c0_399, %c0_400] : memref<8x32xf32, #tpu.memory_space<vmem>>, vector<8x32xf32>
      tpu.vector_store %arg9[%c0_399, %c0_400], %767 {strides = array<i32>} : memref<8x32xf32, #tpu.memory_space<vmem>>, vector<8x32xf32>,
      %cst_401 = arith.constant 0.000000e+00 : f32
      %769 = vector.broadcast %cst_401 : f32 to vector<8x32xf32>
      %c0_402 = arith.constant 0 : index
      %c0_403 = arith.constant 0 : index
      %770 = vector.load %arg10[%c0_402, %c0_403] : memref<8x32xf32, #tpu.memory_space<vmem>>, vector<8x32xf32>
      tpu.vector_store %arg10[%c0_402, %c0_403], %769 {strides = array<i32>} : memref<8x32xf32, #tpu.memory_space<vmem>>, vector<8x32xf32>,
    } else {
    }
    %c0_i32_1 = arith.constant 0 : i32
    %c7_i32 = arith.constant 7 : i32
    %3 = arith.subi %c7_i32, %c0_i32_1 : i32
    %4 = arith.index_cast %c0_i32_1 : i32 to index
    %c0 = arith.constant 0 : index
    %c0_2 = arith.constant 0 : index
    %5 = vector.load %arg1[%4, %c0, %c0_2] : memref<8x8x128xbf16, #tpu.memory_space<vmem>>, vector<1x8x128xbf16>
    %6 = vector.shape_cast %5 : vector<1x8x128xbf16> to vector<8x128xbf16>
    %7 = arith.extf %6 : vector<8x128xbf16> to vector<8x128xf32>
    %c0_3 = arith.constant 0 : index
    %c0_4 = arith.constant 0 : index
    %8 = vector.load %arg7[%c0_3, %c0_4] : memref<8x32xf32, #tpu.memory_space<vmem>>, vector<8x32xf32>
    %9 = arith.truncf %8 : vector<8x32xf32> to vector<8x32xbf16>
    %c0_5 = arith.constant 0 : index
    %c0_6 = arith.constant 0 : index
    %10 = vector.load %arg3[%c0_5, %c0_6] : memref<32x128xbf16, #tpu.memory_space<vmem>>, vector<32x128xbf16>
    %cst = arith.constant dense<0.000000e+00> : vector<8x128xf32>
    %11 = tpu.matmul %9, %10, %cst {dimension_numbers = #tpu.dot_dimension_numbers<[1], [0], [0], [1], [0, 0, 1, 1], [], []>} : vector<8x32xbf16>, vector<32x128xbf16>, vector<8x128xf32> -> vector<8x128xf32>
    %12 = arith.addf %7, %11 : vector<8x128xf32>
    %13 = arith.index_cast %3 : i32 to index
    %c0_7 = arith.constant 0 : index
    %c0_8 = arith.constant 0 : index
    %14 = vector.load %arg2[%13, %c0_7, %c0_8] : memref<8x8x128xbf16, #tpu.memory_space<vmem>>, vector<1x8x128xbf16>
    %15 = vector.shape_cast %14 : vector<1x8x128xbf16> to vector<8x128xbf16>
    %16 = arith.extf %15 : vector<8x128xbf16> to vector<8x128xf32>
    %c0_9 = arith.constant 0 : index
    %c0_10 = arith.constant 0 : index
    %17 = vector.load %arg9[%c0_9, %c0_10] : memref<8x32xf32, #tpu.memory_space<vmem>>, vector<8x32xf32>
    %18 = arith.truncf %17 : vector<8x32xf32> to vector<8x32xbf16>
    %c0_11 = arith.constant 0 : index
    %c0_12 = arith.constant 0 : index
    %19 = vector.load %arg4[%c0_11, %c0_12] : memref<32x128xbf16, #tpu.memory_space<vmem>>, vector<32x128xbf16>
    %cst_13 = arith.constant dense<0.000000e+00> : vector<8x128xf32>
    %20 = tpu.matmul %18, %19, %cst_13 {dimension_numbers = #tpu.dot_dimension_numbers<[1], [0], [0], [1], [0, 0, 1, 1], [], []>} : vector<8x32xbf16>, vector<32x128xbf16>, vector<8x128xf32> -> vector<8x128xf32>
    %21 = arith.addf %16, %20 : vector<8x128xf32>
    %c0_14 = arith.constant 0 : index
    %c0_15 = arith.constant 0 : index
    %22 = vector.load %arg8[%c0_14, %c0_15] : memref<8x32xf32, #tpu.memory_space<vmem>>, vector<8x32xf32>
    %23 = vector.extract_strided_slice %12 {offsets = [0, 0], sizes = [8, 32], strides = [1, 1]} : vector<8x128xf32> to vector<8x32xf32>
    %cst_16 = arith.constant 5.000000e-01 : f32
    %24 = vector.broadcast %cst_16 : f32 to vector<8x32xf32>
    %25 = arith.mulf %24, %23 : vector<8x32xf32>
    %26 = math.tanh %25 : vector<8x32xf32>
    %cst_17 = arith.constant 5.000000e-01 : f32
    %27 = vector.broadcast %cst_17 : f32 to vector<8x32xf32>
    %28 = arith.mulf %27, %26 : vector<8x32xf32>
    %cst_18 = arith.constant 5.000000e-01 : f32
    %29 = vector.broadcast %cst_18 : f32 to vector<8x32xf32>
    %30 = arith.addf %28, %29 : vector<8x32xf32>
    %31 = vector.extract_strided_slice %12 {offsets = [0, 32], sizes = [8, 32], strides = [1, 1]} : vector<8x128xf32> to vector<8x32xf32>
    %cst_19 = arith.constant 5.000000e-01 : f32
    %32 = vector.broadcast %cst_19 : f32 to vector<8x32xf32>
    %33 = arith.mulf %32, %31 : vector<8x32xf32>
    %34 = math.tanh %33 : vector<8x32xf32>
    %cst_20 = arith.constant 5.000000e-01 : f32
    %35 = vector.broadcast %cst_20 : f32 to vector<8x32xf32>
    %36 = arith.mulf %35, %34 : vector<8x32xf32>
    %cst_21 = arith.constant 5.000000e-01 : f32
    %37 = vector.broadcast %cst_21 : f32 to vector<8x32xf32>
    %38 = arith.addf %36, %37 : vector<8x32xf32>
    %39 = vector.extract_strided_slice %12 {offsets = [0, 64], sizes = [8, 32], strides = [1, 1]} : vector<8x128xf32> to vector<8x32xf32>
    %40 = math.tanh %39 : vector<8x32xf32>
    %41 = vector.extract_strided_slice %12 {offsets = [0, 96], sizes = [8, 32], strides = [1, 1]} : vector<8x128xf32> to vector<8x32xf32>
    %cst_22 = arith.constant 5.000000e-01 : f32
    %42 = vector.broadcast %cst_22 : f32 to vector<8x32xf32>
    %43 = arith.mulf %42, %41 : vector<8x32xf32>
    %44 = math.tanh %43 : vector<8x32xf32>
    %cst_23 = arith.constant 5.000000e-01 : f32
    %45 = vector.broadcast %cst_23 : f32 to vector<8x32xf32>
    %46 = arith.mulf %45, %44 : vector<8x32xf32>
    %cst_24 = arith.constant 5.000000e-01 : f32
    %47 = vector.broadcast %cst_24 : f32 to vector<8x32xf32>
    %48 = arith.addf %46, %47 : vector<8x32xf32>
    %49 = arith.mulf %38, %22 : vector<8x32xf32>
    %50 = arith.mulf %30, %40 : vector<8x32xf32>
    %51 = arith.addf %49, %50 : vector<8x32xf32>
    %52 = math.tanh %51 : vector<8x32xf32>
    %53 = arith.mulf %48, %52 : vector<8x32xf32>
    %c0_25 = arith.constant 0 : index
    %c0_26 = arith.constant 0 : index
    %54 = vector.load %arg10[%c0_25, %c0_26] : memref<8x32xf32, #tpu.memory_space<vmem>>, vector<8x32xf32>
    %55 = vector.extract_strided_slice %21 {offsets = [0, 0], sizes = [8, 32], strides = [1, 1]} : vector<8x128xf32> to vector<8x32xf32>
    %cst_27 = arith.constant 5.000000e-01 : f32
    %56 = vector.broadcast %cst_27 : f32 to vector<8x32xf32>
    %57 = arith.mulf %56, %55 : vector<8x32xf32>
    %58 = math.tanh %57 : vector<8x32xf32>
    %cst_28 = arith.constant 5.000000e-01 : f32
    %59 = vector.broadcast %cst_28 : f32 to vector<8x32xf32>
    %60 = arith.mulf %59, %58 : vector<8x32xf32>
    %cst_29 = arith.constant 5.000000e-01 : f32
    %61 = vector.broadcast %cst_29 : f32 to vector<8x32xf32>
    %62 = arith.addf %60, %61 : vector<8x32xf32>
    %63 = vector.extract_strided_slice %21 {offsets = [0, 32], sizes = [8, 32], strides = [1, 1]} : vector<8x128xf32> to vector<8x32xf32>
    %cst_30 = arith.constant 5.000000e-01 : f32
    %64 = vector.broadcast %cst_30 : f32 to vector<8x32xf32>
    %65 = arith.mulf %64, %63 : vector<8x32xf32>
    %66 = math.tanh %65 : vector<8x32xf32>
    %cst_31 = arith.constant 5.000000e-01 : f32
    %67 = vector.broadcast %cst_31 : f32 to vector<8x32xf32>
    %68 = arith.mulf %67, %66 : vector<8x32xf32>
    %cst_32 = arith.constant 5.000000e-01 : f32
    %69 = vector.broadcast %cst_32 : f32 to vector<8x32xf32>
    %70 = arith.addf %68, %69 : vector<8x32xf32>
    %71 = vector.extract_strided_slice %21 {offsets = [0, 64], sizes = [8, 32], strides = [1, 1]} : vector<8x128xf32> to vector<8x32xf32>
    %72 = math.tanh %71 : vector<8x32xf32>
    %73 = vector.extract_strided_slice %21 {offsets = [0, 96], sizes = [8, 32], strides = [1, 1]} : vector<8x128xf32> to vector<8x32xf32>
    %cst_33 = arith.constant 5.000000e-01 : f32
    %74 = vector.broadcast %cst_33 : f32 to vector<8x32xf32>
    %75 = arith.mulf %74, %73 : vector<8x32xf32>
    %76 = math.tanh %75 : vector<8x32xf32>
    %cst_34 = arith.constant 5.000000e-01 : f32
    %77 = vector.broadcast %cst_34 : f32 to vector<8x32xf32>
    %78 = arith.mulf %77, %76 : vector<8x32xf32>
    %cst_35 = arith.constant 5.000000e-01 : f32
    %79 = vector.broadcast %cst_35 : f32 to vector<8x32xf32>
    %80 = arith.addf %78, %79 : vector<8x32xf32>
    %81 = arith.mulf %70, %54 : vector<8x32xf32>
    %82 = arith.mulf %62, %72 : vector<8x32xf32>
    %83 = arith.addf %81, %82 : vector<8x32xf32>
    %84 = math.tanh %83 : vector<8x32xf32>
    %85 = arith.mulf %80, %84 : vector<8x32xf32>
    %c0_36 = arith.constant 0 : index
    %c0_37 = arith.constant 0 : index
    %86 = vector.load %arg7[%c0_36, %c0_37] : memref<8x32xf32, #tpu.memory_space<vmem>>, vector<8x32xf32>
    tpu.vector_store %arg7[%c0_36, %c0_37], %53 {strides = array<i32>} : memref<8x32xf32, #tpu.memory_space<vmem>>, vector<8x32xf32>,
    %c0_38 = arith.constant 0 : index
    %c0_39 = arith.constant 0 : index
    %87 = vector.load %arg8[%c0_38, %c0_39] : memref<8x32xf32, #tpu.memory_space<vmem>>, vector<8x32xf32>
    tpu.vector_store %arg8[%c0_38, %c0_39], %51 {strides = array<i32>} : memref<8x32xf32, #tpu.memory_space<vmem>>, vector<8x32xf32>,
    %c0_40 = arith.constant 0 : index
    %c0_41 = arith.constant 0 : index
    %88 = vector.load %arg9[%c0_40, %c0_41] : memref<8x32xf32, #tpu.memory_space<vmem>>, vector<8x32xf32>
    tpu.vector_store %arg9[%c0_40, %c0_41], %85 {strides = array<i32>} : memref<8x32xf32, #tpu.memory_space<vmem>>, vector<8x32xf32>,
    %c0_42 = arith.constant 0 : index
    %c0_43 = arith.constant 0 : index
    %89 = vector.load %arg10[%c0_42, %c0_43] : memref<8x32xf32, #tpu.memory_space<vmem>>, vector<8x32xf32>
    tpu.vector_store %arg10[%c0_42, %c0_43], %83 {strides = array<i32>} : memref<8x32xf32, #tpu.memory_space<vmem>>, vector<8x32xf32>,
    %90 = arith.index_cast %c0_i32_1 : i32 to index
    %c0_44 = arith.constant 0 : index
    %c0_45 = arith.constant 0 : index
    %91 = vector.load %arg5[%90, %c0_44, %c0_45] : memref<8x8x32xf32, #tpu.memory_space<vmem>>, vector<1x8x32xf32>
    %92 = vector.shape_cast %91 : vector<1x8x32xf32> to vector<8x32xf32>
    %93 = vector.shape_cast %53 : vector<8x32xf32> to vector<1x8x32xf32>
    tpu.vector_store %arg5[%90, %c0_44, %c0_45], %93 {strides = array<i32>} : memref<8x8x32xf32, #tpu.memory_space<vmem>>, vector<1x8x32xf32>,
    %94 = arith.index_cast %3 : i32 to index
    %c0_46 = arith.constant 0 : index
    %c0_47 = arith.constant 0 : index
    %95 = vector.load %arg6[%94, %c0_46, %c0_47] : memref<8x8x32xf32, #tpu.memory_space<vmem>>, vector<1x8x32xf32>
    %96 = vector.shape_cast %95 : vector<1x8x32xf32> to vector<8x32xf32>
    %97 = vector.shape_cast %85 : vector<8x32xf32> to vector<1x8x32xf32>
    tpu.vector_store %arg6[%94, %c0_46, %c0_47], %97 {strides = array<i32>} : memref<8x8x32xf32, #tpu.memory_space<vmem>>, vector<1x8x32xf32>,
    %c1_i32 = arith.constant 1 : i32
    %c7_i32_48 = arith.constant 7 : i32
    %98 = arith.subi %c7_i32_48, %c1_i32 : i32
    %99 = arith.index_cast %c1_i32 : i32 to index
    %c0_49 = arith.constant 0 : index
    %c0_50 = arith.constant 0 : index
    %100 = vector.load %arg1[%99, %c0_49, %c0_50] : memref<8x8x128xbf16, #tpu.memory_space<vmem>>, vector<1x8x128xbf16>
    %101 = vector.shape_cast %100 : vector<1x8x128xbf16> to vector<8x128xbf16>
    %102 = arith.extf %101 : vector<8x128xbf16> to vector<8x128xf32>
    %c0_51 = arith.constant 0 : index
    %c0_52 = arith.constant 0 : index
    %103 = vector.load %arg7[%c0_51, %c0_52] : memref<8x32xf32, #tpu.memory_space<vmem>>, vector<8x32xf32>
    %104 = arith.truncf %103 : vector<8x32xf32> to vector<8x32xbf16>
    %c0_53 = arith.constant 0 : index
    %c0_54 = arith.constant 0 : index
    %105 = vector.load %arg3[%c0_53, %c0_54] : memref<32x128xbf16, #tpu.memory_space<vmem>>, vector<32x128xbf16>
    %cst_55 = arith.constant dense<0.000000e+00> : vector<8x128xf32>
    %106 = tpu.matmul %104, %105, %cst_55 {dimension_numbers = #tpu.dot_dimension_numbers<[1], [0], [0], [1], [0, 0, 1, 1], [], []>} : vector<8x32xbf16>, vector<32x128xbf16>, vector<8x128xf32> -> vector<8x128xf32>
    %107 = arith.addf %102, %106 : vector<8x128xf32>
    %108 = arith.index_cast %98 : i32 to index
    %c0_56 = arith.constant 0 : index
    %c0_57 = arith.constant 0 : index
    %109 = vector.load %arg2[%108, %c0_56, %c0_57] : memref<8x8x128xbf16, #tpu.memory_space<vmem>>, vector<1x8x128xbf16>
    %110 = vector.shape_cast %109 : vector<1x8x128xbf16> to vector<8x128xbf16>
    %111 = arith.extf %110 : vector<8x128xbf16> to vector<8x128xf32>
    %c0_58 = arith.constant 0 : index
    %c0_59 = arith.constant 0 : index
    %112 = vector.load %arg9[%c0_58, %c0_59] : memref<8x32xf32, #tpu.memory_space<vmem>>, vector<8x32xf32>
    %113 = arith.truncf %112 : vector<8x32xf32> to vector<8x32xbf16>
    %c0_60 = arith.constant 0 : index
    %c0_61 = arith.constant 0 : index
    %114 = vector.load %arg4[%c0_60, %c0_61] : memref<32x128xbf16, #tpu.memory_space<vmem>>, vector<32x128xbf16>
    %cst_62 = arith.constant dense<0.000000e+00> : vector<8x128xf32>
    %115 = tpu.matmul %113, %114, %cst_62 {dimension_numbers = #tpu.dot_dimension_numbers<[1], [0], [0], [1], [0, 0, 1, 1], [], []>} : vector<8x32xbf16>, vector<32x128xbf16>, vector<8x128xf32> -> vector<8x128xf32>
    %116 = arith.addf %111, %115 : vector<8x128xf32>
    %c0_63 = arith.constant 0 : index
    %c0_64 = arith.constant 0 : index
    %117 = vector.load %arg8[%c0_63, %c0_64] : memref<8x32xf32, #tpu.memory_space<vmem>>, vector<8x32xf32>
    %118 = vector.extract_strided_slice %107 {offsets = [0, 0], sizes = [8, 32], strides = [1, 1]} : vector<8x128xf32> to vector<8x32xf32>
    %cst_65 = arith.constant 5.000000e-01 : f32
    %119 = vector.broadcast %cst_65 : f32 to vector<8x32xf32>
    %120 = arith.mulf %119, %118 : vector<8x32xf32>
    %121 = math.tanh %120 : vector<8x32xf32>
    %cst_66 = arith.constant 5.000000e-01 : f32
    %122 = vector.broadcast %cst_66 : f32 to vector<8x32xf32>
    %123 = arith.mulf %122, %121 : vector<8x32xf32>
    %cst_67 = arith.constant 5.000000e-01 : f32
    %124 = vector.broadcast %cst_67 : f32 to vector<8x32xf32>
    %125 = arith.addf %123, %124 : vector<8x32xf32>
    %126 = vector.extract_strided_slice %107 {offsets = [0, 32], sizes = [8, 32], strides = [1, 1]} : vector<8x128xf32> to vector<8x32xf32>
    %cst_68 = arith.constant 5.000000e-01 : f32
    %127 = vector.broadcast %cst_68 : f32 to vector<8x32xf32>
    %128 = arith.mulf %127, %126 : vector<8x32xf32>
    %129 = math.tanh %128 : vector<8x32xf32>
    %cst_69 = arith.constant 5.000000e-01 : f32
    %130 = vector.broadcast %cst_69 : f32 to vector<8x32xf32>
    %131 = arith.mulf %130, %129 : vector<8x32xf32>
    %cst_70 = arith.constant 5.000000e-01 : f32
    %132 = vector.broadcast %cst_70 : f32 to vector<8x32xf32>
    %133 = arith.addf %131, %132 : vector<8x32xf32>
    %134 = vector.extract_strided_slice %107 {offsets = [0, 64], sizes = [8, 32], strides = [1, 1]} : vector<8x128xf32> to vector<8x32xf32>
    %135 = math.tanh %134 : vector<8x32xf32>
    %136 = vector.extract_strided_slice %107 {offsets = [0, 96], sizes = [8, 32], strides = [1, 1]} : vector<8x128xf32> to vector<8x32xf32>
    %cst_71 = arith.constant 5.000000e-01 : f32
    %137 = vector.broadcast %cst_71 : f32 to vector<8x32xf32>
    %138 = arith.mulf %137, %136 : vector<8x32xf32>
    %139 = math.tanh %138 : vector<8x32xf32>
    %cst_72 = arith.constant 5.000000e-01 : f32
    %140 = vector.broadcast %cst_72 : f32 to vector<8x32xf32>
    %141 = arith.mulf %140, %139 : vector<8x32xf32>
    %cst_73 = arith.constant 5.000000e-01 : f32
    %142 = vector.broadcast %cst_73 : f32 to vector<8x32xf32>
    %143 = arith.addf %141, %142 : vector<8x32xf32>
    %144 = arith.mulf %133, %117 : vector<8x32xf32>
    %145 = arith.mulf %125, %135 : vector<8x32xf32>
    %146 = arith.addf %144, %145 : vector<8x32xf32>
    %147 = math.tanh %146 : vector<8x32xf32>
    %148 = arith.mulf %143, %147 : vector<8x32xf32>
    %c0_74 = arith.constant 0 : index
    %c0_75 = arith.constant 0 : index
    %149 = vector.load %arg10[%c0_74, %c0_75] : memref<8x32xf32, #tpu.memory_space<vmem>>, vector<8x32xf32>
    %150 = vector.extract_strided_slice %116 {offsets = [0, 0], sizes = [8, 32], strides = [1, 1]} : vector<8x128xf32> to vector<8x32xf32>
    %cst_76 = arith.constant 5.000000e-01 : f32
    %151 = vector.broadcast %cst_76 : f32 to vector<8x32xf32>
    %152 = arith.mulf %151, %150 : vector<8x32xf32>
    %153 = math.tanh %152 : vector<8x32xf32>
    %cst_77 = arith.constant 5.000000e-01 : f32
    %154 = vector.broadcast %cst_77 : f32 to vector<8x32xf32>
    %155 = arith.mulf %154, %153 : vector<8x32xf32>
    %cst_78 = arith.constant 5.000000e-01 : f32
    %156 = vector.broadcast %cst_78 : f32 to vector<8x32xf32>
    %157 = arith.addf %155, %156 : vector<8x32xf32>
    %158 = vector.extract_strided_slice %116 {offsets = [0, 32], sizes = [8, 32], strides = [1, 1]} : vector<8x128xf32> to vector<8x32xf32>
    %cst_79 = arith.constant 5.000000e-01 : f32
    %159 = vector.broadcast %cst_79 : f32 to vector<8x32xf32>
    %160 = arith.mulf %159, %158 : vector<8x32xf32>
    %161 = math.tanh %160 : vector<8x32xf32>
    %cst_80 = arith.constant 5.000000e-01 : f32
    %162 = vector.broadcast %cst_80 : f32 to vector<8x32xf32>
    %163 = arith.mulf %162, %161 : vector<8x32xf32>
    %cst_81 = arith.constant 5.000000e-01 : f32
    %164 = vector.broadcast %cst_81 : f32 to vector<8x32xf32>
    %165 = arith.addf %163, %164 : vector<8x32xf32>
    %166 = vector.extract_strided_slice %116 {offsets = [0, 64], sizes = [8, 32], strides = [1, 1]} : vector<8x128xf32> to vector<8x32xf32>
    %167 = math.tanh %166 : vector<8x32xf32>
    %168 = vector.extract_strided_slice %116 {offsets = [0, 96], sizes = [8, 32], strides = [1, 1]} : vector<8x128xf32> to vector<8x32xf32>
    %cst_82 = arith.constant 5.000000e-01 : f32
    %169 = vector.broadcast %cst_82 : f32 to vector<8x32xf32>
    %170 = arith.mulf %169, %168 : vector<8x32xf32>
    %171 = math.tanh %170 : vector<8x32xf32>
    %cst_83 = arith.constant 5.000000e-01 : f32
    %172 = vector.broadcast %cst_83 : f32 to vector<8x32xf32>
    %173 = arith.mulf %172, %171 : vector<8x32xf32>
    %cst_84 = arith.constant 5.000000e-01 : f32
    %174 = vector.broadcast %cst_84 : f32 to vector<8x32xf32>
    %175 = arith.addf %173, %174 : vector<8x32xf32>
    %176 = arith.mulf %165, %149 : vector<8x32xf32>
    %177 = arith.mulf %157, %167 : vector<8x32xf32>
    %178 = arith.addf %176, %177 : vector<8x32xf32>
    %179 = math.tanh %178 : vector<8x32xf32>
    %180 = arith.mulf %175, %179 : vector<8x32xf32>
    %c0_85 = arith.constant 0 : index
    %c0_86 = arith.constant 0 : index
    %181 = vector.load %arg7[%c0_85, %c0_86] : memref<8x32xf32, #tpu.memory_space<vmem>>, vector<8x32xf32>
    tpu.vector_store %arg7[%c0_85, %c0_86], %148 {strides = array<i32>} : memref<8x32xf32, #tpu.memory_space<vmem>>, vector<8x32xf32>,
    %c0_87 = arith.constant 0 : index
    %c0_88 = arith.constant 0 : index
    %182 = vector.load %arg8[%c0_87, %c0_88] : memref<8x32xf32, #tpu.memory_space<vmem>>, vector<8x32xf32>
    tpu.vector_store %arg8[%c0_87, %c0_88], %146 {strides = array<i32>} : memref<8x32xf32, #tpu.memory_space<vmem>>, vector<8x32xf32>,
    %c0_89 = arith.constant 0 : index
    %c0_90 = arith.constant 0 : index
    %183 = vector.load %arg9[%c0_89, %c0_90] : memref<8x32xf32, #tpu.memory_space<vmem>>, vector<8x32xf32>
    tpu.vector_store %arg9[%c0_89, %c0_90], %180 {strides = array<i32>} : memref<8x32xf32, #tpu.memory_space<vmem>>, vector<8x32xf32>,
    %c0_91 = arith.constant 0 : index
    %c0_92 = arith.constant 0 : index
    %184 = vector.load %arg10[%c0_91, %c0_92] : memref<8x32xf32, #tpu.memory_space<vmem>>, vector<8x32xf32>
    tpu.vector_store %arg10[%c0_91, %c0_92], %178 {strides = array<i32>} : memref<8x32xf32, #tpu.memory_space<vmem>>, vector<8x32xf32>,
    %185 = arith.index_cast %c1_i32 : i32 to index
    %c0_93 = arith.constant 0 : index
    %c0_94 = arith.constant 0 : index
    %186 = vector.load %arg5[%185, %c0_93, %c0_94] : memref<8x8x32xf32, #tpu.memory_space<vmem>>, vector<1x8x32xf32>
    %187 = vector.shape_cast %186 : vector<1x8x32xf32> to vector<8x32xf32>
    %188 = vector.shape_cast %148 : vector<8x32xf32> to vector<1x8x32xf32>
    tpu.vector_store %arg5[%185, %c0_93, %c0_94], %188 {strides = array<i32>} : memref<8x8x32xf32, #tpu.memory_space<vmem>>, vector<1x8x32xf32>,
    %189 = arith.index_cast %98 : i32 to index
    %c0_95 = arith.constant 0 : index
    %c0_96 = arith.constant 0 : index
    %190 = vector.load %arg6[%189, %c0_95, %c0_96] : memref<8x8x32xf32, #tpu.memory_space<vmem>>, vector<1x8x32xf32>
    %191 = vector.shape_cast %190 : vector<1x8x32xf32> to vector<8x32xf32>
    %192 = vector.shape_cast %180 : vector<8x32xf32> to vector<1x8x32xf32>
    tpu.vector_store %arg6[%189, %c0_95, %c0_96], %192 {strides = array<i32>} : memref<8x8x32xf32, #tpu.memory_space<vmem>>, vector<1x8x32xf32>,
    %c2_i32 = arith.constant 2 : i32
    %c7_i32_97 = arith.constant 7 : i32
    %193 = arith.subi %c7_i32_97, %c2_i32 : i32
    %194 = arith.index_cast %c2_i32 : i32 to index
    %c0_98 = arith.constant 0 : index
    %c0_99 = arith.constant 0 : index
    %195 = vector.load %arg1[%194, %c0_98, %c0_99] : memref<8x8x128xbf16, #tpu.memory_space<vmem>>, vector<1x8x128xbf16>
    %196 = vector.shape_cast %195 : vector<1x8x128xbf16> to vector<8x128xbf16>
    %197 = arith.extf %196 : vector<8x128xbf16> to vector<8x128xf32>
    %c0_100 = arith.constant 0 : index
    %c0_101 = arith.constant 0 : index
    %198 = vector.load %arg7[%c0_100, %c0_101] : memref<8x32xf32, #tpu.memory_space<vmem>>, vector<8x32xf32>
    %199 = arith.truncf %198 : vector<8x32xf32> to vector<8x32xbf16>
    %c0_102 = arith.constant 0 : index
    %c0_103 = arith.constant 0 : index
    %200 = vector.load %arg3[%c0_102, %c0_103] : memref<32x128xbf16, #tpu.memory_space<vmem>>, vector<32x128xbf16>
    %cst_104 = arith.constant dense<0.000000e+00> : vector<8x128xf32>
    %201 = tpu.matmul %199, %200, %cst_104 {dimension_numbers = #tpu.dot_dimension_numbers<[1], [0], [0], [1], [0, 0, 1, 1], [], []>} : vector<8x32xbf16>, vector<32x128xbf16>, vector<8x128xf32> -> vector<8x128xf32>
    %202 = arith.addf %197, %201 : vector<8x128xf32>
    %203 = arith.index_cast %193 : i32 to index
    %c0_105 = arith.constant 0 : index
    %c0_106 = arith.constant 0 : index
    %204 = vector.load %arg2[%203, %c0_105, %c0_106] : memref<8x8x128xbf16, #tpu.memory_space<vmem>>, vector<1x8x128xbf16>
    %205 = vector.shape_cast %204 : vector<1x8x128xbf16> to vector<8x128xbf16>
    %206 = arith.extf %205 : vector<8x128xbf16> to vector<8x128xf32>
    %c0_107 = arith.constant 0 : index
    %c0_108 = arith.constant 0 : index
    %207 = vector.load %arg9[%c0_107, %c0_108] : memref<8x32xf32, #tpu.memory_space<vmem>>, vector<8x32xf32>
    %208 = arith.truncf %207 : vector<8x32xf32> to vector<8x32xbf16>
    %c0_109 = arith.constant 0 : index
    %c0_110 = arith.constant 0 : index
    %209 = vector.load %arg4[%c0_109, %c0_110] : memref<32x128xbf16, #tpu.memory_space<vmem>>, vector<32x128xbf16>
    %cst_111 = arith.constant dense<0.000000e+00> : vector<8x128xf32>
    %210 = tpu.matmul %208, %209, %cst_111 {dimension_numbers = #tpu.dot_dimension_numbers<[1], [0], [0], [1], [0, 0, 1, 1], [], []>} : vector<8x32xbf16>, vector<32x128xbf16>, vector<8x128xf32> -> vector<8x128xf32>
    %211 = arith.addf %206, %210 : vector<8x128xf32>
    %c0_112 = arith.constant 0 : index
    %c0_113 = arith.constant 0 : index
    %212 = vector.load %arg8[%c0_112, %c0_113] : memref<8x32xf32, #tpu.memory_space<vmem>>, vector<8x32xf32>
    %213 = vector.extract_strided_slice %202 {offsets = [0, 0], sizes = [8, 32], strides = [1, 1]} : vector<8x128xf32> to vector<8x32xf32>
    %cst_114 = arith.constant 5.000000e-01 : f32
    %214 = vector.broadcast %cst_114 : f32 to vector<8x32xf32>
    %215 = arith.mulf %214, %213 : vector<8x32xf32>
    %216 = math.tanh %215 : vector<8x32xf32>
    %cst_115 = arith.constant 5.000000e-01 : f32
    %217 = vector.broadcast %cst_115 : f32 to vector<8x32xf32>
    %218 = arith.mulf %217, %216 : vector<8x32xf32>
    %cst_116 = arith.constant 5.000000e-01 : f32
    %219 = vector.broadcast %cst_116 : f32 to vector<8x32xf32>
    %220 = arith.addf %218, %219 : vector<8x32xf32>
    %221 = vector.extract_strided_slice %202 {offsets = [0, 32], sizes = [8, 32], strides = [1, 1]} : vector<8x128xf32> to vector<8x32xf32>
    %cst_117 = arith.constant 5.000000e-01 : f32
    %222 = vector.broadcast %cst_117 : f32 to vector<8x32xf32>
    %223 = arith.mulf %222, %221 : vector<8x32xf32>
    %224 = math.tanh %223 : vector<8x32xf32>
    %cst_118 = arith.constant 5.000000e-01 : f32
    %225 = vector.broadcast %cst_118 : f32 to vector<8x32xf32>
    %226 = arith.mulf %225, %224 : vector<8x32xf32>
    %cst_119 = arith.constant 5.000000e-01 : f32
    %227 = vector.broadcast %cst_119 : f32 to vector<8x32xf32>
    %228 = arith.addf %226, %227 : vector<8x32xf32>
    %229 = vector.extract_strided_slice %202 {offsets = [0, 64], sizes = [8, 32], strides = [1, 1]} : vector<8x128xf32> to vector<8x32xf32>
    %230 = math.tanh %229 : vector<8x32xf32>
    %231 = vector.extract_strided_slice %202 {offsets = [0, 96], sizes = [8, 32], strides = [1, 1]} : vector<8x128xf32> to vector<8x32xf32>
    %cst_120 = arith.constant 5.000000e-01 : f32
    %232 = vector.broadcast %cst_120 : f32 to vector<8x32xf32>
    %233 = arith.mulf %232, %231 : vector<8x32xf32>
    %234 = math.tanh %233 : vector<8x32xf32>
    %cst_121 = arith.constant 5.000000e-01 : f32
    %235 = vector.broadcast %cst_121 : f32 to vector<8x32xf32>
    %236 = arith.mulf %235, %234 : vector<8x32xf32>
    %cst_122 = arith.constant 5.000000e-01 : f32
    %237 = vector.broadcast %cst_122 : f32 to vector<8x32xf32>
    %238 = arith.addf %236, %237 : vector<8x32xf32>
    %239 = arith.mulf %228, %212 : vector<8x32xf32>
    %240 = arith.mulf %220, %230 : vector<8x32xf32>
    %241 = arith.addf %239, %240 : vector<8x32xf32>
    %242 = math.tanh %241 : vector<8x32xf32>
    %243 = arith.mulf %238, %242 : vector<8x32xf32>
    %c0_123 = arith.constant 0 : index
    %c0_124 = arith.constant 0 : index
    %244 = vector.load %arg10[%c0_123, %c0_124] : memref<8x32xf32, #tpu.memory_space<vmem>>, vector<8x32xf32>
    %245 = vector.extract_strided_slice %211 {offsets = [0, 0], sizes = [8, 32], strides = [1, 1]} : vector<8x128xf32> to vector<8x32xf32>
    %cst_125 = arith.constant 5.000000e-01 : f32
    %246 = vector.broadcast %cst_125 : f32 to vector<8x32xf32>
    %247 = arith.mulf %246, %245 : vector<8x32xf32>
    %248 = math.tanh %247 : vector<8x32xf32>
    %cst_126 = arith.constant 5.000000e-01 : f32
    %249 = vector.broadcast %cst_126 : f32 to vector<8x32xf32>
    %250 = arith.mulf %249, %248 : vector<8x32xf32>
    %cst_127 = arith.constant 5.000000e-01 : f32
    %251 = vector.broadcast %cst_127 : f32 to vector<8x32xf32>
    %252 = arith.addf %250, %251 : vector<8x32xf32>
    %253 = vector.extract_strided_slice %211 {offsets = [0, 32], sizes = [8, 32], strides = [1, 1]} : vector<8x128xf32> to vector<8x32xf32>
    %cst_128 = arith.constant 5.000000e-01 : f32
    %254 = vector.broadcast %cst_128 : f32 to vector<8x32xf32>
    %255 = arith.mulf %254, %253 : vector<8x32xf32>
    %256 = math.tanh %255 : vector<8x32xf32>
    %cst_129 = arith.constant 5.000000e-01 : f32
    %257 = vector.broadcast %cst_129 : f32 to vector<8x32xf32>
    %258 = arith.mulf %257, %256 : vector<8x32xf32>
    %cst_130 = arith.constant 5.000000e-01 : f32
    %259 = vector.broadcast %cst_130 : f32 to vector<8x32xf32>
    %260 = arith.addf %258, %259 : vector<8x32xf32>
    %261 = vector.extract_strided_slice %211 {offsets = [0, 64], sizes = [8, 32], strides = [1, 1]} : vector<8x128xf32> to vector<8x32xf32>
    %262 = math.tanh %261 : vector<8x32xf32>
    %263 = vector.extract_strided_slice %211 {offsets = [0, 96], sizes = [8, 32], strides = [1, 1]} : vector<8x128xf32> to vector<8x32xf32>
    %cst_131 = arith.constant 5.000000e-01 : f32
    %264 = vector.broadcast %cst_131 : f32 to vector<8x32xf32>
    %265 = arith.mulf %264, %263 : vector<8x32xf32>
    %266 = math.tanh %265 : vector<8x32xf32>
    %cst_132 = arith.constant 5.000000e-01 : f32
    %267 = vector.broadcast %cst_132 : f32 to vector<8x32xf32>
    %268 = arith.mulf %267, %266 : vector<8x32xf32>
    %cst_133 = arith.constant 5.000000e-01 : f32
    %269 = vector.broadcast %cst_133 : f32 to vector<8x32xf32>
    %270 = arith.addf %268, %269 : vector<8x32xf32>
    %271 = arith.mulf %260, %244 : vector<8x32xf32>
    %272 = arith.mulf %252, %262 : vector<8x32xf32>
    %273 = arith.addf %271, %272 : vector<8x32xf32>
    %274 = math.tanh %273 : vector<8x32xf32>
    %275 = arith.mulf %270, %274 : vector<8x32xf32>
    %c0_134 = arith.constant 0 : index
    %c0_135 = arith.constant 0 : index
    %276 = vector.load %arg7[%c0_134, %c0_135] : memref<8x32xf32, #tpu.memory_space<vmem>>, vector<8x32xf32>
    tpu.vector_store %arg7[%c0_134, %c0_135], %243 {strides = array<i32>} : memref<8x32xf32, #tpu.memory_space<vmem>>, vector<8x32xf32>,
    %c0_136 = arith.constant 0 : index
    %c0_137 = arith.constant 0 : index
    %277 = vector.load %arg8[%c0_136, %c0_137] : memref<8x32xf32, #tpu.memory_space<vmem>>, vector<8x32xf32>
    tpu.vector_store %arg8[%c0_136, %c0_137], %241 {strides = array<i32>} : memref<8x32xf32, #tpu.memory_space<vmem>>, vector<8x32xf32>,
    %c0_138 = arith.constant 0 : index
    %c0_139 = arith.constant 0 : index
    %278 = vector.load %arg9[%c0_138, %c0_139] : memref<8x32xf32, #tpu.memory_space<vmem>>, vector<8x32xf32>
    tpu.vector_store %arg9[%c0_138, %c0_139], %275 {strides = array<i32>} : memref<8x32xf32, #tpu.memory_space<vmem>>, vector<8x32xf32>,
    %c0_140 = arith.constant 0 : index
    %c0_141 = arith.constant 0 : index
    %279 = vector.load %arg10[%c0_140, %c0_141] : memref<8x32xf32, #tpu.memory_space<vmem>>, vector<8x32xf32>
    tpu.vector_store %arg10[%c0_140, %c0_141], %273 {strides = array<i32>} : memref<8x32xf32, #tpu.memory_space<vmem>>, vector<8x32xf32>,
    %280 = arith.index_cast %c2_i32 : i32 to index
    %c0_142 = arith.constant 0 : index
    %c0_143 = arith.constant 0 : index
    %281 = vector.load %arg5[%280, %c0_142, %c0_143] : memref<8x8x32xf32, #tpu.memory_space<vmem>>, vector<1x8x32xf32>
    %282 = vector.shape_cast %281 : vector<1x8x32xf32> to vector<8x32xf32>
    %283 = vector.shape_cast %243 : vector<8x32xf32> to vector<1x8x32xf32>
    tpu.vector_store %arg5[%280, %c0_142, %c0_143], %283 {strides = array<i32>} : memref<8x8x32xf32, #tpu.memory_space<vmem>>, vector<1x8x32xf32>,
    %284 = arith.index_cast %193 : i32 to index
    %c0_144 = arith.constant 0 : index
    %c0_145 = arith.constant 0 : index
    %285 = vector.load %arg6[%284, %c0_144, %c0_145] : memref<8x8x32xf32, #tpu.memory_space<vmem>>, vector<1x8x32xf32>
    %286 = vector.shape_cast %285 : vector<1x8x32xf32> to vector<8x32xf32>
    %287 = vector.shape_cast %275 : vector<8x32xf32> to vector<1x8x32xf32>
    tpu.vector_store %arg6[%284, %c0_144, %c0_145], %287 {strides = array<i32>} : memref<8x8x32xf32, #tpu.memory_space<vmem>>, vector<1x8x32xf32>,
    %c3_i32 = arith.constant 3 : i32
    %c7_i32_146 = arith.constant 7 : i32
    %288 = arith.subi %c7_i32_146, %c3_i32 : i32
    %289 = arith.index_cast %c3_i32 : i32 to index
    %c0_147 = arith.constant 0 : index
    %c0_148 = arith.constant 0 : index
    %290 = vector.load %arg1[%289, %c0_147, %c0_148] : memref<8x8x128xbf16, #tpu.memory_space<vmem>>, vector<1x8x128xbf16>
    %291 = vector.shape_cast %290 : vector<1x8x128xbf16> to vector<8x128xbf16>
    %292 = arith.extf %291 : vector<8x128xbf16> to vector<8x128xf32>
    %c0_149 = arith.constant 0 : index
    %c0_150 = arith.constant 0 : index
    %293 = vector.load %arg7[%c0_149, %c0_150] : memref<8x32xf32, #tpu.memory_space<vmem>>, vector<8x32xf32>
    %294 = arith.truncf %293 : vector<8x32xf32> to vector<8x32xbf16>
    %c0_151 = arith.constant 0 : index
    %c0_152 = arith.constant 0 : index
    %295 = vector.load %arg3[%c0_151, %c0_152] : memref<32x128xbf16, #tpu.memory_space<vmem>>, vector<32x128xbf16>
    %cst_153 = arith.constant dense<0.000000e+00> : vector<8x128xf32>
    %296 = tpu.matmul %294, %295, %cst_153 {dimension_numbers = #tpu.dot_dimension_numbers<[1], [0], [0], [1], [0, 0, 1, 1], [], []>} : vector<8x32xbf16>, vector<32x128xbf16>, vector<8x128xf32> -> vector<8x128xf32>
    %297 = arith.addf %292, %296 : vector<8x128xf32>
    %298 = arith.index_cast %288 : i32 to index
    %c0_154 = arith.constant 0 : index
    %c0_155 = arith.constant 0 : index
    %299 = vector.load %arg2[%298, %c0_154, %c0_155] : memref<8x8x128xbf16, #tpu.memory_space<vmem>>, vector<1x8x128xbf16>
    %300 = vector.shape_cast %299 : vector<1x8x128xbf16> to vector<8x128xbf16>
    %301 = arith.extf %300 : vector<8x128xbf16> to vector<8x128xf32>
    %c0_156 = arith.constant 0 : index
    %c0_157 = arith.constant 0 : index
    %302 = vector.load %arg9[%c0_156, %c0_157] : memref<8x32xf32, #tpu.memory_space<vmem>>, vector<8x32xf32>
    %303 = arith.truncf %302 : vector<8x32xf32> to vector<8x32xbf16>
    %c0_158 = arith.constant 0 : index
    %c0_159 = arith.constant 0 : index
    %304 = vector.load %arg4[%c0_158, %c0_159] : memref<32x128xbf16, #tpu.memory_space<vmem>>, vector<32x128xbf16>
    %cst_160 = arith.constant dense<0.000000e+00> : vector<8x128xf32>
    %305 = tpu.matmul %303, %304, %cst_160 {dimension_numbers = #tpu.dot_dimension_numbers<[1], [0], [0], [1], [0, 0, 1, 1], [], []>} : vector<8x32xbf16>, vector<32x128xbf16>, vector<8x128xf32> -> vector<8x128xf32>
    %306 = arith.addf %301, %305 : vector<8x128xf32>
    %c0_161 = arith.constant 0 : index
    %c0_162 = arith.constant 0 : index
    %307 = vector.load %arg8[%c0_161, %c0_162] : memref<8x32xf32, #tpu.memory_space<vmem>>, vector<8x32xf32>
    %308 = vector.extract_strided_slice %297 {offsets = [0, 0], sizes = [8, 32], strides = [1, 1]} : vector<8x128xf32> to vector<8x32xf32>
    %cst_163 = arith.constant 5.000000e-01 : f32
    %309 = vector.broadcast %cst_163 : f32 to vector<8x32xf32>
    %310 = arith.mulf %309, %308 : vector<8x32xf32>
    %311 = math.tanh %310 : vector<8x32xf32>
    %cst_164 = arith.constant 5.000000e-01 : f32
    %312 = vector.broadcast %cst_164 : f32 to vector<8x32xf32>
    %313 = arith.mulf %312, %311 : vector<8x32xf32>
    %cst_165 = arith.constant 5.000000e-01 : f32
    %314 = vector.broadcast %cst_165 : f32 to vector<8x32xf32>
    %315 = arith.addf %313, %314 : vector<8x32xf32>
    %316 = vector.extract_strided_slice %297 {offsets = [0, 32], sizes = [8, 32], strides = [1, 1]} : vector<8x128xf32> to vector<8x32xf32>
    %cst_166 = arith.constant 5.000000e-01 : f32
    %317 = vector.broadcast %cst_166 : f32 to vector<8x32xf32>
    %318 = arith.mulf %317, %316 : vector<8x32xf32>
    %319 = math.tanh %318 : vector<8x32xf32>
    %cst_167 = arith.constant 5.000000e-01 : f32
    %320 = vector.broadcast %cst_167 : f32 to vector<8x32xf32>
    %321 = arith.mulf %320, %319 : vector<8x32xf32>
    %cst_168 = arith.constant 5.000000e-01 : f32
    %322 = vector.broadcast %cst_168 : f32 to vector<8x32xf32>
    %323 = arith.addf %321, %322 : vector<8x32xf32>
    %324 = vector.extract_strided_slice %297 {offsets = [0, 64], sizes = [8, 32], strides = [1, 1]} : vector<8x128xf32> to vector<8x32xf32>
    %325 = math.tanh %324 : vector<8x32xf32>
    %326 = vector.extract_strided_slice %297 {offsets = [0, 96], sizes = [8, 32], strides = [1, 1]} : vector<8x128xf32> to vector<8x32xf32>
    %cst_169 = arith.constant 5.000000e-01 : f32
    %327 = vector.broadcast %cst_169 : f32 to vector<8x32xf32>
    %328 = arith.mulf %327, %326 : vector<8x32xf32>
    %329 = math.tanh %328 : vector<8x32xf32>
    %cst_170 = arith.constant 5.000000e-01 : f32
    %330 = vector.broadcast %cst_170 : f32 to vector<8x32xf32>
    %331 = arith.mulf %330, %329 : vector<8x32xf32>
    %cst_171 = arith.constant 5.000000e-01 : f32
    %332 = vector.broadcast %cst_171 : f32 to vector<8x32xf32>
    %333 = arith.addf %331, %332 : vector<8x32xf32>
    %334 = arith.mulf %323, %307 : vector<8x32xf32>
    %335 = arith.mulf %315, %325 : vector<8x32xf32>
    %336 = arith.addf %334, %335 : vector<8x32xf32>
    %337 = math.tanh %336 : vector<8x32xf32>
    %338 = arith.mulf %333, %337 : vector<8x32xf32>
    %c0_172 = arith.constant 0 : index
    %c0_173 = arith.constant 0 : index
    %339 = vector.load %arg10[%c0_172, %c0_173] : memref<8x32xf32, #tpu.memory_space<vmem>>, vector<8x32xf32>
    %340 = vector.extract_strided_slice %306 {offsets = [0, 0], sizes = [8, 32], strides = [1, 1]} : vector<8x128xf32> to vector<8x32xf32>
    %cst_174 = arith.constant 5.000000e-01 : f32
    %341 = vector.broadcast %cst_174 : f32 to vector<8x32xf32>
    %342 = arith.mulf %341, %340 : vector<8x32xf32>
    %343 = math.tanh %342 : vector<8x32xf32>
    %cst_175 = arith.constant 5.000000e-01 : f32
    %344 = vector.broadcast %cst_175 : f32 to vector<8x32xf32>
    %345 = arith.mulf %344, %343 : vector<8x32xf32>
    %cst_176 = arith.constant 5.000000e-01 : f32
    %346 = vector.broadcast %cst_176 : f32 to vector<8x32xf32>
    %347 = arith.addf %345, %346 : vector<8x32xf32>
    %348 = vector.extract_strided_slice %306 {offsets = [0, 32], sizes = [8, 32], strides = [1, 1]} : vector<8x128xf32> to vector<8x32xf32>
    %cst_177 = arith.constant 5.000000e-01 : f32
    %349 = vector.broadcast %cst_177 : f32 to vector<8x32xf32>
    %350 = arith.mulf %349, %348 : vector<8x32xf32>
    %351 = math.tanh %350 : vector<8x32xf32>
    %cst_178 = arith.constant 5.000000e-01 : f32
    %352 = vector.broadcast %cst_178 : f32 to vector<8x32xf32>
    %353 = arith.mulf %352, %351 : vector<8x32xf32>
    %cst_179 = arith.constant 5.000000e-01 : f32
    %354 = vector.broadcast %cst_179 : f32 to vector<8x32xf32>
    %355 = arith.addf %353, %354 : vector<8x32xf32>
    %356 = vector.extract_strided_slice %306 {offsets = [0, 64], sizes = [8, 32], strides = [1, 1]} : vector<8x128xf32> to vector<8x32xf32>
    %357 = math.tanh %356 : vector<8x32xf32>
    %358 = vector.extract_strided_slice %306 {offsets = [0, 96], sizes = [8, 32], strides = [1, 1]} : vector<8x128xf32> to vector<8x32xf32>
    %cst_180 = arith.constant 5.000000e-01 : f32
    %359 = vector.broadcast %cst_180 : f32 to vector<8x32xf32>
    %360 = arith.mulf %359, %358 : vector<8x32xf32>
    %361 = math.tanh %360 : vector<8x32xf32>
    %cst_181 = arith.constant 5.000000e-01 : f32
    %362 = vector.broadcast %cst_181 : f32 to vector<8x32xf32>
    %363 = arith.mulf %362, %361 : vector<8x32xf32>
    %cst_182 = arith.constant 5.000000e-01 : f32
    %364 = vector.broadcast %cst_182 : f32 to vector<8x32xf32>
    %365 = arith.addf %363, %364 : vector<8x32xf32>
    %366 = arith.mulf %355, %339 : vector<8x32xf32>
    %367 = arith.mulf %347, %357 : vector<8x32xf32>
    %368 = arith.addf %366, %367 : vector<8x32xf32>
    %369 = math.tanh %368 : vector<8x32xf32>
    %370 = arith.mulf %365, %369 : vector<8x32xf32>
    %c0_183 = arith.constant 0 : index
    %c0_184 = arith.constant 0 : index
    %371 = vector.load %arg7[%c0_183, %c0_184] : memref<8x32xf32, #tpu.memory_space<vmem>>, vector<8x32xf32>
    tpu.vector_store %arg7[%c0_183, %c0_184], %338 {strides = array<i32>} : memref<8x32xf32, #tpu.memory_space<vmem>>, vector<8x32xf32>,
    %c0_185 = arith.constant 0 : index
    %c0_186 = arith.constant 0 : index
    %372 = vector.load %arg8[%c0_185, %c0_186] : memref<8x32xf32, #tpu.memory_space<vmem>>, vector<8x32xf32>
    tpu.vector_store %arg8[%c0_185, %c0_186], %336 {strides = array<i32>} : memref<8x32xf32, #tpu.memory_space<vmem>>, vector<8x32xf32>,
    %c0_187 = arith.constant 0 : index
    %c0_188 = arith.constant 0 : index
    %373 = vector.load %arg9[%c0_187, %c0_188] : memref<8x32xf32, #tpu.memory_space<vmem>>, vector<8x32xf32>
    tpu.vector_store %arg9[%c0_187, %c0_188], %370 {strides = array<i32>} : memref<8x32xf32, #tpu.memory_space<vmem>>, vector<8x32xf32>,
    %c0_189 = arith.constant 0 : index
    %c0_190 = arith.constant 0 : index
    %374 = vector.load %arg10[%c0_189, %c0_190] : memref<8x32xf32, #tpu.memory_space<vmem>>, vector<8x32xf32>
    tpu.vector_store %arg10[%c0_189, %c0_190], %368 {strides = array<i32>} : memref<8x32xf32, #tpu.memory_space<vmem>>, vector<8x32xf32>,
    %375 = arith.index_cast %c3_i32 : i32 to index
    %c0_191 = arith.constant 0 : index
    %c0_192 = arith.constant 0 : index
    %376 = vector.load %arg5[%375, %c0_191, %c0_192] : memref<8x8x32xf32, #tpu.memory_space<vmem>>, vector<1x8x32xf32>
    %377 = vector.shape_cast %376 : vector<1x8x32xf32> to vector<8x32xf32>
    %378 = vector.shape_cast %338 : vector<8x32xf32> to vector<1x8x32xf32>
    tpu.vector_store %arg5[%375, %c0_191, %c0_192], %378 {strides = array<i32>} : memref<8x8x32xf32, #tpu.memory_space<vmem>>, vector<1x8x32xf32>,
    %379 = arith.index_cast %288 : i32 to index
    %c0_193 = arith.constant 0 : index
    %c0_194 = arith.constant 0 : index
    %380 = vector.load %arg6[%379, %c0_193, %c0_194] : memref<8x8x32xf32, #tpu.memory_space<vmem>>, vector<1x8x32xf32>
    %381 = vector.shape_cast %380 : vector<1x8x32xf32> to vector<8x32xf32>
    %382 = vector.shape_cast %370 : vector<8x32xf32> to vector<1x8x32xf32>
    tpu.vector_store %arg6[%379, %c0_193, %c0_194], %382 {strides = array<i32>} : memref<8x8x32xf32, #tpu.memory_space<vmem>>, vector<1x8x32xf32>,
    %c4_i32 = arith.constant 4 : i32
    %c7_i32_195 = arith.constant 7 : i32
    %383 = arith.subi %c7_i32_195, %c4_i32 : i32
    %384 = arith.index_cast %c4_i32 : i32 to index
    %c0_196 = arith.constant 0 : index
    %c0_197 = arith.constant 0 : index
    %385 = vector.load %arg1[%384, %c0_196, %c0_197] : memref<8x8x128xbf16, #tpu.memory_space<vmem>>, vector<1x8x128xbf16>
    %386 = vector.shape_cast %385 : vector<1x8x128xbf16> to vector<8x128xbf16>
    %387 = arith.extf %386 : vector<8x128xbf16> to vector<8x128xf32>
    %c0_198 = arith.constant 0 : index
    %c0_199 = arith.constant 0 : index
    %388 = vector.load %arg7[%c0_198, %c0_199] : memref<8x32xf32, #tpu.memory_space<vmem>>, vector<8x32xf32>
    %389 = arith.truncf %388 : vector<8x32xf32> to vector<8x32xbf16>
    %c0_200 = arith.constant 0 : index
    %c0_201 = arith.constant 0 : index
    %390 = vector.load %arg3[%c0_200, %c0_201] : memref<32x128xbf16, #tpu.memory_space<vmem>>, vector<32x128xbf16>
    %cst_202 = arith.constant dense<0.000000e+00> : vector<8x128xf32>
    %391 = tpu.matmul %389, %390, %cst_202 {dimension_numbers = #tpu.dot_dimension_numbers<[1], [0], [0], [1], [0, 0, 1, 1], [], []>} : vector<8x32xbf16>, vector<32x128xbf16>, vector<8x128xf32> -> vector<8x128xf32>
    %392 = arith.addf %387, %391 : vector<8x128xf32>
    %393 = arith.index_cast %383 : i32 to index
    %c0_203 = arith.constant 0 : index
    %c0_204 = arith.constant 0 : index
    %394 = vector.load %arg2[%393, %c0_203, %c0_204] : memref<8x8x128xbf16, #tpu.memory_space<vmem>>, vector<1x8x128xbf16>
    %395 = vector.shape_cast %394 : vector<1x8x128xbf16> to vector<8x128xbf16>
    %396 = arith.extf %395 : vector<8x128xbf16> to vector<8x128xf32>
    %c0_205 = arith.constant 0 : index
    %c0_206 = arith.constant 0 : index
    %397 = vector.load %arg9[%c0_205, %c0_206] : memref<8x32xf32, #tpu.memory_space<vmem>>, vector<8x32xf32>
    %398 = arith.truncf %397 : vector<8x32xf32> to vector<8x32xbf16>
    %c0_207 = arith.constant 0 : index
    %c0_208 = arith.constant 0 : index
    %399 = vector.load %arg4[%c0_207, %c0_208] : memref<32x128xbf16, #tpu.memory_space<vmem>>, vector<32x128xbf16>
    %cst_209 = arith.constant dense<0.000000e+00> : vector<8x128xf32>
    %400 = tpu.matmul %398, %399, %cst_209 {dimension_numbers = #tpu.dot_dimension_numbers<[1], [0], [0], [1], [0, 0, 1, 1], [], []>} : vector<8x32xbf16>, vector<32x128xbf16>, vector<8x128xf32> -> vector<8x128xf32>
    %401 = arith.addf %396, %400 : vector<8x128xf32>
    %c0_210 = arith.constant 0 : index
    %c0_211 = arith.constant 0 : index
    %402 = vector.load %arg8[%c0_210, %c0_211] : memref<8x32xf32, #tpu.memory_space<vmem>>, vector<8x32xf32>
    %403 = vector.extract_strided_slice %392 {offsets = [0, 0], sizes = [8, 32], strides = [1, 1]} : vector<8x128xf32> to vector<8x32xf32>
    %cst_212 = arith.constant 5.000000e-01 : f32
    %404 = vector.broadcast %cst_212 : f32 to vector<8x32xf32>
    %405 = arith.mulf %404, %403 : vector<8x32xf32>
    %406 = math.tanh %405 : vector<8x32xf32>
    %cst_213 = arith.constant 5.000000e-01 : f32
    %407 = vector.broadcast %cst_213 : f32 to vector<8x32xf32>
    %408 = arith.mulf %407, %406 : vector<8x32xf32>
    %cst_214 = arith.constant 5.000000e-01 : f32
    %409 = vector.broadcast %cst_214 : f32 to vector<8x32xf32>
    %410 = arith.addf %408, %409 : vector<8x32xf32>
    %411 = vector.extract_strided_slice %392 {offsets = [0, 32], sizes = [8, 32], strides = [1, 1]} : vector<8x128xf32> to vector<8x32xf32>
    %cst_215 = arith.constant 5.000000e-01 : f32
    %412 = vector.broadcast %cst_215 : f32 to vector<8x32xf32>
    %413 = arith.mulf %412, %411 : vector<8x32xf32>
    %414 = math.tanh %413 : vector<8x32xf32>
    %cst_216 = arith.constant 5.000000e-01 : f32
    %415 = vector.broadcast %cst_216 : f32 to vector<8x32xf32>
    %416 = arith.mulf %415, %414 : vector<8x32xf32>
    %cst_217 = arith.constant 5.000000e-01 : f32
    %417 = vector.broadcast %cst_217 : f32 to vector<8x32xf32>
    %418 = arith.addf %416, %417 : vector<8x32xf32>
    %419 = vector.extract_strided_slice %392 {offsets = [0, 64], sizes = [8, 32], strides = [1, 1]} : vector<8x128xf32> to vector<8x32xf32>
    %420 = math.tanh %419 : vector<8x32xf32>
    %421 = vector.extract_strided_slice %392 {offsets = [0, 96], sizes = [8, 32], strides = [1, 1]} : vector<8x128xf32> to vector<8x32xf32>
    %cst_218 = arith.constant 5.000000e-01 : f32
    %422 = vector.broadcast %cst_218 : f32 to vector<8x32xf32>
    %423 = arith.mulf %422, %421 : vector<8x32xf32>
    %424 = math.tanh %423 : vector<8x32xf32>
    %cst_219 = arith.constant 5.000000e-01 : f32
    %425 = vector.broadcast %cst_219 : f32 to vector<8x32xf32>
    %426 = arith.mulf %425, %424 : vector<8x32xf32>
    %cst_220 = arith.constant 5.000000e-01 : f32
    %427 = vector.broadcast %cst_220 : f32 to vector<8x32xf32>
    %428 = arith.addf %426, %427 : vector<8x32xf32>
    %429 = arith.mulf %418, %402 : vector<8x32xf32>
    %430 = arith.mulf %410, %420 : vector<8x32xf32>
    %431 = arith.addf %429, %430 : vector<8x32xf32>
    %432 = math.tanh %431 : vector<8x32xf32>
    %433 = arith.mulf %428, %432 : vector<8x32xf32>
    %c0_221 = arith.constant 0 : index
    %c0_222 = arith.constant 0 : index
    %434 = vector.load %arg10[%c0_221, %c0_222] : memref<8x32xf32, #tpu.memory_space<vmem>>, vector<8x32xf32>
    %435 = vector.extract_strided_slice %401 {offsets = [0, 0], sizes = [8, 32], strides = [1, 1]} : vector<8x128xf32> to vector<8x32xf32>
    %cst_223 = arith.constant 5.000000e-01 : f32
    %436 = vector.broadcast %cst_223 : f32 to vector<8x32xf32>
    %437 = arith.mulf %436, %435 : vector<8x32xf32>
    %438 = math.tanh %437 : vector<8x32xf32>
    %cst_224 = arith.constant 5.000000e-01 : f32
    %439 = vector.broadcast %cst_224 : f32 to vector<8x32xf32>
    %440 = arith.mulf %439, %438 : vector<8x32xf32>
    %cst_225 = arith.constant 5.000000e-01 : f32
    %441 = vector.broadcast %cst_225 : f32 to vector<8x32xf32>
    %442 = arith.addf %440, %441 : vector<8x32xf32>
    %443 = vector.extract_strided_slice %401 {offsets = [0, 32], sizes = [8, 32], strides = [1, 1]} : vector<8x128xf32> to vector<8x32xf32>
    %cst_226 = arith.constant 5.000000e-01 : f32
    %444 = vector.broadcast %cst_226 : f32 to vector<8x32xf32>
    %445 = arith.mulf %444, %443 : vector<8x32xf32>
    %446 = math.tanh %445 : vector<8x32xf32>
    %cst_227 = arith.constant 5.000000e-01 : f32
    %447 = vector.broadcast %cst_227 : f32 to vector<8x32xf32>
    %448 = arith.mulf %447, %446 : vector<8x32xf32>
    %cst_228 = arith.constant 5.000000e-01 : f32
    %449 = vector.broadcast %cst_228 : f32 to vector<8x32xf32>
    %450 = arith.addf %448, %449 : vector<8x32xf32>
    %451 = vector.extract_strided_slice %401 {offsets = [0, 64], sizes = [8, 32], strides = [1, 1]} : vector<8x128xf32> to vector<8x32xf32>
    %452 = math.tanh %451 : vector<8x32xf32>
    %453 = vector.extract_strided_slice %401 {offsets = [0, 96], sizes = [8, 32], strides = [1, 1]} : vector<8x128xf32> to vector<8x32xf32>
    %cst_229 = arith.constant 5.000000e-01 : f32
    %454 = vector.broadcast %cst_229 : f32 to vector<8x32xf32>
    %455 = arith.mulf %454, %453 : vector<8x32xf32>
    %456 = math.tanh %455 : vector<8x32xf32>
    %cst_230 = arith.constant 5.000000e-01 : f32
    %457 = vector.broadcast %cst_230 : f32 to vector<8x32xf32>
    %458 = arith.mulf %457, %456 : vector<8x32xf32>
    %cst_231 = arith.constant 5.000000e-01 : f32
    %459 = vector.broadcast %cst_231 : f32 to vector<8x32xf32>
    %460 = arith.addf %458, %459 : vector<8x32xf32>
    %461 = arith.mulf %450, %434 : vector<8x32xf32>
    %462 = arith.mulf %442, %452 : vector<8x32xf32>
    %463 = arith.addf %461, %462 : vector<8x32xf32>
    %464 = math.tanh %463 : vector<8x32xf32>
    %465 = arith.mulf %460, %464 : vector<8x32xf32>
    %c0_232 = arith.constant 0 : index
    %c0_233 = arith.constant 0 : index
    %466 = vector.load %arg7[%c0_232, %c0_233] : memref<8x32xf32, #tpu.memory_space<vmem>>, vector<8x32xf32>
    tpu.vector_store %arg7[%c0_232, %c0_233], %433 {strides = array<i32>} : memref<8x32xf32, #tpu.memory_space<vmem>>, vector<8x32xf32>,
    %c0_234 = arith.constant 0 : index
    %c0_235 = arith.constant 0 : index
    %467 = vector.load %arg8[%c0_234, %c0_235] : memref<8x32xf32, #tpu.memory_space<vmem>>, vector<8x32xf32>
    tpu.vector_store %arg8[%c0_234, %c0_235], %431 {strides = array<i32>} : memref<8x32xf32, #tpu.memory_space<vmem>>, vector<8x32xf32>,
    %c0_236 = arith.constant 0 : index
    %c0_237 = arith.constant 0 : index
    %468 = vector.load %arg9[%c0_236, %c0_237] : memref<8x32xf32, #tpu.memory_space<vmem>>, vector<8x32xf32>
    tpu.vector_store %arg9[%c0_236, %c0_237], %465 {strides = array<i32>} : memref<8x32xf32, #tpu.memory_space<vmem>>, vector<8x32xf32>,
    %c0_238 = arith.constant 0 : index
    %c0_239 = arith.constant 0 : index
    %469 = vector.load %arg10[%c0_238, %c0_239] : memref<8x32xf32, #tpu.memory_space<vmem>>, vector<8x32xf32>
    tpu.vector_store %arg10[%c0_238, %c0_239], %463 {strides = array<i32>} : memref<8x32xf32, #tpu.memory_space<vmem>>, vector<8x32xf32>,
    %470 = arith.index_cast %c4_i32 : i32 to index
    %c0_240 = arith.constant 0 : index
    %c0_241 = arith.constant 0 : index
    %471 = vector.load %arg5[%470, %c0_240, %c0_241] : memref<8x8x32xf32, #tpu.memory_space<vmem>>, vector<1x8x32xf32>
    %472 = vector.shape_cast %471 : vector<1x8x32xf32> to vector<8x32xf32>
    %473 = vector.shape_cast %433 : vector<8x32xf32> to vector<1x8x32xf32>
    tpu.vector_store %arg5[%470, %c0_240, %c0_241], %473 {strides = array<i32>} : memref<8x8x32xf32, #tpu.memory_space<vmem>>, vector<1x8x32xf32>,
    %474 = arith.index_cast %383 : i32 to index
    %c0_242 = arith.constant 0 : index
    %c0_243 = arith.constant 0 : index
    %475 = vector.load %arg6[%474, %c0_242, %c0_243] : memref<8x8x32xf32, #tpu.memory_space<vmem>>, vector<1x8x32xf32>
    %476 = vector.shape_cast %475 : vector<1x8x32xf32> to vector<8x32xf32>
    %477 = vector.shape_cast %465 : vector<8x32xf32> to vector<1x8x32xf32>
    tpu.vector_store %arg6[%474, %c0_242, %c0_243], %477 {strides = array<i32>} : memref<8x8x32xf32, #tpu.memory_space<vmem>>, vector<1x8x32xf32>,
    %c5_i32 = arith.constant 5 : i32
    %c7_i32_244 = arith.constant 7 : i32
    %478 = arith.subi %c7_i32_244, %c5_i32 : i32
    %479 = arith.index_cast %c5_i32 : i32 to index
    %c0_245 = arith.constant 0 : index
    %c0_246 = arith.constant 0 : index
    %480 = vector.load %arg1[%479, %c0_245, %c0_246] : memref<8x8x128xbf16, #tpu.memory_space<vmem>>, vector<1x8x128xbf16>
    %481 = vector.shape_cast %480 : vector<1x8x128xbf16> to vector<8x128xbf16>
    %482 = arith.extf %481 : vector<8x128xbf16> to vector<8x128xf32>
    %c0_247 = arith.constant 0 : index
    %c0_248 = arith.constant 0 : index
    %483 = vector.load %arg7[%c0_247, %c0_248] : memref<8x32xf32, #tpu.memory_space<vmem>>, vector<8x32xf32>
    %484 = arith.truncf %483 : vector<8x32xf32> to vector<8x32xbf16>
    %c0_249 = arith.constant 0 : index
    %c0_250 = arith.constant 0 : index
    %485 = vector.load %arg3[%c0_249, %c0_250] : memref<32x128xbf16, #tpu.memory_space<vmem>>, vector<32x128xbf16>
    %cst_251 = arith.constant dense<0.000000e+00> : vector<8x128xf32>
    %486 = tpu.matmul %484, %485, %cst_251 {dimension_numbers = #tpu.dot_dimension_numbers<[1], [0], [0], [1], [0, 0, 1, 1], [], []>} : vector<8x32xbf16>, vector<32x128xbf16>, vector<8x128xf32> -> vector<8x128xf32>
    %487 = arith.addf %482, %486 : vector<8x128xf32>
    %488 = arith.index_cast %478 : i32 to index
    %c0_252 = arith.constant 0 : index
    %c0_253 = arith.constant 0 : index
    %489 = vector.load %arg2[%488, %c0_252, %c0_253] : memref<8x8x128xbf16, #tpu.memory_space<vmem>>, vector<1x8x128xbf16>
    %490 = vector.shape_cast %489 : vector<1x8x128xbf16> to vector<8x128xbf16>
    %491 = arith.extf %490 : vector<8x128xbf16> to vector<8x128xf32>
    %c0_254 = arith.constant 0 : index
    %c0_255 = arith.constant 0 : index
    %492 = vector.load %arg9[%c0_254, %c0_255] : memref<8x32xf32, #tpu.memory_space<vmem>>, vector<8x32xf32>
    %493 = arith.truncf %492 : vector<8x32xf32> to vector<8x32xbf16>
    %c0_256 = arith.constant 0 : index
    %c0_257 = arith.constant 0 : index
    %494 = vector.load %arg4[%c0_256, %c0_257] : memref<32x128xbf16, #tpu.memory_space<vmem>>, vector<32x128xbf16>
    %cst_258 = arith.constant dense<0.000000e+00> : vector<8x128xf32>
    %495 = tpu.matmul %493, %494, %cst_258 {dimension_numbers = #tpu.dot_dimension_numbers<[1], [0], [0], [1], [0, 0, 1, 1], [], []>} : vector<8x32xbf16>, vector<32x128xbf16>, vector<8x128xf32> -> vector<8x128xf32>
    %496 = arith.addf %491, %495 : vector<8x128xf32>
    %c0_259 = arith.constant 0 : index
    %c0_260 = arith.constant 0 : index
    %497 = vector.load %arg8[%c0_259, %c0_260] : memref<8x32xf32, #tpu.memory_space<vmem>>, vector<8x32xf32>
    %498 = vector.extract_strided_slice %487 {offsets = [0, 0], sizes = [8, 32], strides = [1, 1]} : vector<8x128xf32> to vector<8x32xf32>
    %cst_261 = arith.constant 5.000000e-01 : f32
    %499 = vector.broadcast %cst_261 : f32 to vector<8x32xf32>
    %500 = arith.mulf %499, %498 : vector<8x32xf32>
    %501 = math.tanh %500 : vector<8x32xf32>
    %cst_262 = arith.constant 5.000000e-01 : f32
    %502 = vector.broadcast %cst_262 : f32 to vector<8x32xf32>
    %503 = arith.mulf %502, %501 : vector<8x32xf32>
    %cst_263 = arith.constant 5.000000e-01 : f32
    %504 = vector.broadcast %cst_263 : f32 to vector<8x32xf32>
    %505 = arith.addf %503, %504 : vector<8x32xf32>
    %506 = vector.extract_strided_slice %487 {offsets = [0, 32], sizes = [8, 32], strides = [1, 1]} : vector<8x128xf32> to vector<8x32xf32>
    %cst_264 = arith.constant 5.000000e-01 : f32
    %507 = vector.broadcast %cst_264 : f32 to vector<8x32xf32>
    %508 = arith.mulf %507, %506 : vector<8x32xf32>
    %509 = math.tanh %508 : vector<8x32xf32>
    %cst_265 = arith.constant 5.000000e-01 : f32
    %510 = vector.broadcast %cst_265 : f32 to vector<8x32xf32>
    %511 = arith.mulf %510, %509 : vector<8x32xf32>
    %cst_266 = arith.constant 5.000000e-01 : f32
    %512 = vector.broadcast %cst_266 : f32 to vector<8x32xf32>
    %513 = arith.addf %511, %512 : vector<8x32xf32>
    %514 = vector.extract_strided_slice %487 {offsets = [0, 64], sizes = [8, 32], strides = [1, 1]} : vector<8x128xf32> to vector<8x32xf32>
    %515 = math.tanh %514 : vector<8x32xf32>
    %516 = vector.extract_strided_slice %487 {offsets = [0, 96], sizes = [8, 32], strides = [1, 1]} : vector<8x128xf32> to vector<8x32xf32>
    %cst_267 = arith.constant 5.000000e-01 : f32
    %517 = vector.broadcast %cst_267 : f32 to vector<8x32xf32>
    %518 = arith.mulf %517, %516 : vector<8x32xf32>
    %519 = math.tanh %518 : vector<8x32xf32>
    %cst_268 = arith.constant 5.000000e-01 : f32
    %520 = vector.broadcast %cst_268 : f32 to vector<8x32xf32>
    %521 = arith.mulf %520, %519 : vector<8x32xf32>
    %cst_269 = arith.constant 5.000000e-01 : f32
    %522 = vector.broadcast %cst_269 : f32 to vector<8x32xf32>
    %523 = arith.addf %521, %522 : vector<8x32xf32>
    %524 = arith.mulf %513, %497 : vector<8x32xf32>
    %525 = arith.mulf %505, %515 : vector<8x32xf32>
    %526 = arith.addf %524, %525 : vector<8x32xf32>
    %527 = math.tanh %526 : vector<8x32xf32>
    %528 = arith.mulf %523, %527 : vector<8x32xf32>
    %c0_270 = arith.constant 0 : index
    %c0_271 = arith.constant 0 : index
    %529 = vector.load %arg10[%c0_270, %c0_271] : memref<8x32xf32, #tpu.memory_space<vmem>>, vector<8x32xf32>
    %530 = vector.extract_strided_slice %496 {offsets = [0, 0], sizes = [8, 32], strides = [1, 1]} : vector<8x128xf32> to vector<8x32xf32>
    %cst_272 = arith.constant 5.000000e-01 : f32
    %531 = vector.broadcast %cst_272 : f32 to vector<8x32xf32>
    %532 = arith.mulf %531, %530 : vector<8x32xf32>
    %533 = math.tanh %532 : vector<8x32xf32>
    %cst_273 = arith.constant 5.000000e-01 : f32
    %534 = vector.broadcast %cst_273 : f32 to vector<8x32xf32>
    %535 = arith.mulf %534, %533 : vector<8x32xf32>
    %cst_274 = arith.constant 5.000000e-01 : f32
    %536 = vector.broadcast %cst_274 : f32 to vector<8x32xf32>
    %537 = arith.addf %535, %536 : vector<8x32xf32>
    %538 = vector.extract_strided_slice %496 {offsets = [0, 32], sizes = [8, 32], strides = [1, 1]} : vector<8x128xf32> to vector<8x32xf32>
    %cst_275 = arith.constant 5.000000e-01 : f32
    %539 = vector.broadcast %cst_275 : f32 to vector<8x32xf32>
    %540 = arith.mulf %539, %538 : vector<8x32xf32>
    %541 = math.tanh %540 : vector<8x32xf32>
    %cst_276 = arith.constant 5.000000e-01 : f32
    %542 = vector.broadcast %cst_276 : f32 to vector<8x32xf32>
    %543 = arith.mulf %542, %541 : vector<8x32xf32>
    %cst_277 = arith.constant 5.000000e-01 : f32
    %544 = vector.broadcast %cst_277 : f32 to vector<8x32xf32>
    %545 = arith.addf %543, %544 : vector<8x32xf32>
    %546 = vector.extract_strided_slice %496 {offsets = [0, 64], sizes = [8, 32], strides = [1, 1]} : vector<8x128xf32> to vector<8x32xf32>
    %547 = math.tanh %546 : vector<8x32xf32>
    %548 = vector.extract_strided_slice %496 {offsets = [0, 96], sizes = [8, 32], strides = [1, 1]} : vector<8x128xf32> to vector<8x32xf32>
    %cst_278 = arith.constant 5.000000e-01 : f32
    %549 = vector.broadcast %cst_278 : f32 to vector<8x32xf32>
    %550 = arith.mulf %549, %548 : vector<8x32xf32>
    %551 = math.tanh %550 : vector<8x32xf32>
    %cst_279 = arith.constant 5.000000e-01 : f32
    %552 = vector.broadcast %cst_279 : f32 to vector<8x32xf32>
    %553 = arith.mulf %552, %551 : vector<8x32xf32>
    %cst_280 = arith.constant 5.000000e-01 : f32
    %554 = vector.broadcast %cst_280 : f32 to vector<8x32xf32>
    %555 = arith.addf %553, %554 : vector<8x32xf32>
    %556 = arith.mulf %545, %529 : vector<8x32xf32>
    %557 = arith.mulf %537, %547 : vector<8x32xf32>
    %558 = arith.addf %556, %557 : vector<8x32xf32>
    %559 = math.tanh %558 : vector<8x32xf32>
    %560 = arith.mulf %555, %559 : vector<8x32xf32>
    %c0_281 = arith.constant 0 : index
    %c0_282 = arith.constant 0 : index
    %561 = vector.load %arg7[%c0_281, %c0_282] : memref<8x32xf32, #tpu.memory_space<vmem>>, vector<8x32xf32>
    tpu.vector_store %arg7[%c0_281, %c0_282], %528 {strides = array<i32>} : memref<8x32xf32, #tpu.memory_space<vmem>>, vector<8x32xf32>,
    %c0_283 = arith.constant 0 : index
    %c0_284 = arith.constant 0 : index
    %562 = vector.load %arg8[%c0_283, %c0_284] : memref<8x32xf32, #tpu.memory_space<vmem>>, vector<8x32xf32>
    tpu.vector_store %arg8[%c0_283, %c0_284], %526 {strides = array<i32>} : memref<8x32xf32, #tpu.memory_space<vmem>>, vector<8x32xf32>,
    %c0_285 = arith.constant 0 : index
    %c0_286 = arith.constant 0 : index
    %563 = vector.load %arg9[%c0_285, %c0_286] : memref<8x32xf32, #tpu.memory_space<vmem>>, vector<8x32xf32>
    tpu.vector_store %arg9[%c0_285, %c0_286], %560 {strides = array<i32>} : memref<8x32xf32, #tpu.memory_space<vmem>>, vector<8x32xf32>,
    %c0_287 = arith.constant 0 : index
    %c0_288 = arith.constant 0 : index
    %564 = vector.load %arg10[%c0_287, %c0_288] : memref<8x32xf32, #tpu.memory_space<vmem>>, vector<8x32xf32>
    tpu.vector_store %arg10[%c0_287, %c0_288], %558 {strides = array<i32>} : memref<8x32xf32, #tpu.memory_space<vmem>>, vector<8x32xf32>,
    %565 = arith.index_cast %c5_i32 : i32 to index
    %c0_289 = arith.constant 0 : index
    %c0_290 = arith.constant 0 : index
    %566 = vector.load %arg5[%565, %c0_289, %c0_290] : memref<8x8x32xf32, #tpu.memory_space<vmem>>, vector<1x8x32xf32>
    %567 = vector.shape_cast %566 : vector<1x8x32xf32> to vector<8x32xf32>
    %568 = vector.shape_cast %528 : vector<8x32xf32> to vector<1x8x32xf32>
    tpu.vector_store %arg5[%565, %c0_289, %c0_290], %568 {strides = array<i32>} : memref<8x8x32xf32, #tpu.memory_space<vmem>>, vector<1x8x32xf32>,
    %569 = arith.index_cast %478 : i32 to index
    %c0_291 = arith.constant 0 : index
    %c0_292 = arith.constant 0 : index
    %570 = vector.load %arg6[%569, %c0_291, %c0_292] : memref<8x8x32xf32, #tpu.memory_space<vmem>>, vector<1x8x32xf32>
    %571 = vector.shape_cast %570 : vector<1x8x32xf32> to vector<8x32xf32>
    %572 = vector.shape_cast %560 : vector<8x32xf32> to vector<1x8x32xf32>
    tpu.vector_store %arg6[%569, %c0_291, %c0_292], %572 {strides = array<i32>} : memref<8x8x32xf32, #tpu.memory_space<vmem>>, vector<1x8x32xf32>,
    %c6_i32 = arith.constant 6 : i32
    %c7_i32_293 = arith.constant 7 : i32
    %573 = arith.subi %c7_i32_293, %c6_i32 : i32
    %574 = arith.index_cast %c6_i32 : i32 to index
    %c0_294 = arith.constant 0 : index
    %c0_295 = arith.constant 0 : index
    %575 = vector.load %arg1[%574, %c0_294, %c0_295] : memref<8x8x128xbf16, #tpu.memory_space<vmem>>, vector<1x8x128xbf16>
    %576 = vector.shape_cast %575 : vector<1x8x128xbf16> to vector<8x128xbf16>
    %577 = arith.extf %576 : vector<8x128xbf16> to vector<8x128xf32>
    %c0_296 = arith.constant 0 : index
    %c0_297 = arith.constant 0 : index
    %578 = vector.load %arg7[%c0_296, %c0_297] : memref<8x32xf32, #tpu.memory_space<vmem>>, vector<8x32xf32>
    %579 = arith.truncf %578 : vector<8x32xf32> to vector<8x32xbf16>
    %c0_298 = arith.constant 0 : index
    %c0_299 = arith.constant 0 : index
    %580 = vector.load %arg3[%c0_298, %c0_299] : memref<32x128xbf16, #tpu.memory_space<vmem>>, vector<32x128xbf16>
    %cst_300 = arith.constant dense<0.000000e+00> : vector<8x128xf32>
    %581 = tpu.matmul %579, %580, %cst_300 {dimension_numbers = #tpu.dot_dimension_numbers<[1], [0], [0], [1], [0, 0, 1, 1], [], []>} : vector<8x32xbf16>, vector<32x128xbf16>, vector<8x128xf32> -> vector<8x128xf32>
    %582 = arith.addf %577, %581 : vector<8x128xf32>
    %583 = arith.index_cast %573 : i32 to index
    %c0_301 = arith.constant 0 : index
    %c0_302 = arith.constant 0 : index
    %584 = vector.load %arg2[%583, %c0_301, %c0_302] : memref<8x8x128xbf16, #tpu.memory_space<vmem>>, vector<1x8x128xbf16>
    %585 = vector.shape_cast %584 : vector<1x8x128xbf16> to vector<8x128xbf16>
    %586 = arith.extf %585 : vector<8x128xbf16> to vector<8x128xf32>
    %c0_303 = arith.constant 0 : index
    %c0_304 = arith.constant 0 : index
    %587 = vector.load %arg9[%c0_303, %c0_304] : memref<8x32xf32, #tpu.memory_space<vmem>>, vector<8x32xf32>
    %588 = arith.truncf %587 : vector<8x32xf32> to vector<8x32xbf16>
    %c0_305 = arith.constant 0 : index
    %c0_306 = arith.constant 0 : index
    %589 = vector.load %arg4[%c0_305, %c0_306] : memref<32x128xbf16, #tpu.memory_space<vmem>>, vector<32x128xbf16>
    %cst_307 = arith.constant dense<0.000000e+00> : vector<8x128xf32>
    %590 = tpu.matmul %588, %589, %cst_307 {dimension_numbers = #tpu.dot_dimension_numbers<[1], [0], [0], [1], [0, 0, 1, 1], [], []>} : vector<8x32xbf16>, vector<32x128xbf16>, vector<8x128xf32> -> vector<8x128xf32>
    %591 = arith.addf %586, %590 : vector<8x128xf32>
    %c0_308 = arith.constant 0 : index
    %c0_309 = arith.constant 0 : index
    %592 = vector.load %arg8[%c0_308, %c0_309] : memref<8x32xf32, #tpu.memory_space<vmem>>, vector<8x32xf32>
    %593 = vector.extract_strided_slice %582 {offsets = [0, 0], sizes = [8, 32], strides = [1, 1]} : vector<8x128xf32> to vector<8x32xf32>
    %cst_310 = arith.constant 5.000000e-01 : f32
    %594 = vector.broadcast %cst_310 : f32 to vector<8x32xf32>
    %595 = arith.mulf %594, %593 : vector<8x32xf32>
    %596 = math.tanh %595 : vector<8x32xf32>
    %cst_311 = arith.constant 5.000000e-01 : f32
    %597 = vector.broadcast %cst_311 : f32 to vector<8x32xf32>
    %598 = arith.mulf %597, %596 : vector<8x32xf32>
    %cst_312 = arith.constant 5.000000e-01 : f32
    %599 = vector.broadcast %cst_312 : f32 to vector<8x32xf32>
    %600 = arith.addf %598, %599 : vector<8x32xf32>
    %601 = vector.extract_strided_slice %582 {offsets = [0, 32], sizes = [8, 32], strides = [1, 1]} : vector<8x128xf32> to vector<8x32xf32>
    %cst_313 = arith.constant 5.000000e-01 : f32
    %602 = vector.broadcast %cst_313 : f32 to vector<8x32xf32>
    %603 = arith.mulf %602, %601 : vector<8x32xf32>
    %604 = math.tanh %603 : vector<8x32xf32>
    %cst_314 = arith.constant 5.000000e-01 : f32
    %605 = vector.broadcast %cst_314 : f32 to vector<8x32xf32>
    %606 = arith.mulf %605, %604 : vector<8x32xf32>
    %cst_315 = arith.constant 5.000000e-01 : f32
    %607 = vector.broadcast %cst_315 : f32 to vector<8x32xf32>
    %608 = arith.addf %606, %607 : vector<8x32xf32>
    %609 = vector.extract_strided_slice %582 {offsets = [0, 64], sizes = [8, 32], strides = [1, 1]} : vector<8x128xf32> to vector<8x32xf32>
    %610 = math.tanh %609 : vector<8x32xf32>
    %611 = vector.extract_strided_slice %582 {offsets = [0, 96], sizes = [8, 32], strides = [1, 1]} : vector<8x128xf32> to vector<8x32xf32>
    %cst_316 = arith.constant 5.000000e-01 : f32
    %612 = vector.broadcast %cst_316 : f32 to vector<8x32xf32>
    %613 = arith.mulf %612, %611 : vector<8x32xf32>
    %614 = math.tanh %613 : vector<8x32xf32>
    %cst_317 = arith.constant 5.000000e-01 : f32
    %615 = vector.broadcast %cst_317 : f32 to vector<8x32xf32>
    %616 = arith.mulf %615, %614 : vector<8x32xf32>
    %cst_318 = arith.constant 5.000000e-01 : f32
    %617 = vector.broadcast %cst_318 : f32 to vector<8x32xf32>
    %618 = arith.addf %616, %617 : vector<8x32xf32>
    %619 = arith.mulf %608, %592 : vector<8x32xf32>
    %620 = arith.mulf %600, %610 : vector<8x32xf32>
    %621 = arith.addf %619, %620 : vector<8x32xf32>
    %622 = math.tanh %621 : vector<8x32xf32>
    %623 = arith.mulf %618, %622 : vector<8x32xf32>
    %c0_319 = arith.constant 0 : index
    %c0_320 = arith.constant 0 : index
    %624 = vector.load %arg10[%c0_319, %c0_320] : memref<8x32xf32, #tpu.memory_space<vmem>>, vector<8x32xf32>
    %625 = vector.extract_strided_slice %591 {offsets = [0, 0], sizes = [8, 32], strides = [1, 1]} : vector<8x128xf32> to vector<8x32xf32>
    %cst_321 = arith.constant 5.000000e-01 : f32
    %626 = vector.broadcast %cst_321 : f32 to vector<8x32xf32>
    %627 = arith.mulf %626, %625 : vector<8x32xf32>
    %628 = math.tanh %627 : vector<8x32xf32>
    %cst_322 = arith.constant 5.000000e-01 : f32
    %629 = vector.broadcast %cst_322 : f32 to vector<8x32xf32>
    %630 = arith.mulf %629, %628 : vector<8x32xf32>
    %cst_323 = arith.constant 5.000000e-01 : f32
    %631 = vector.broadcast %cst_323 : f32 to vector<8x32xf32>
    %632 = arith.addf %630, %631 : vector<8x32xf32>
    %633 = vector.extract_strided_slice %591 {offsets = [0, 32], sizes = [8, 32], strides = [1, 1]} : vector<8x128xf32> to vector<8x32xf32>
    %cst_324 = arith.constant 5.000000e-01 : f32
    %634 = vector.broadcast %cst_324 : f32 to vector<8x32xf32>
    %635 = arith.mulf %634, %633 : vector<8x32xf32>
    %636 = math.tanh %635 : vector<8x32xf32>
    %cst_325 = arith.constant 5.000000e-01 : f32
    %637 = vector.broadcast %cst_325 : f32 to vector<8x32xf32>
    %638 = arith.mulf %637, %636 : vector<8x32xf32>
    %cst_326 = arith.constant 5.000000e-01 : f32
    %639 = vector.broadcast %cst_326 : f32 to vector<8x32xf32>
    %640 = arith.addf %638, %639 : vector<8x32xf32>
    %641 = vector.extract_strided_slice %591 {offsets = [0, 64], sizes = [8, 32], strides = [1, 1]} : vector<8x128xf32> to vector<8x32xf32>
    %642 = math.tanh %641 : vector<8x32xf32>
    %643 = vector.extract_strided_slice %591 {offsets = [0, 96], sizes = [8, 32], strides = [1, 1]} : vector<8x128xf32> to vector<8x32xf32>
    %cst_327 = arith.constant 5.000000e-01 : f32
    %644 = vector.broadcast %cst_327 : f32 to vector<8x32xf32>
    %645 = arith.mulf %644, %643 : vector<8x32xf32>
    %646 = math.tanh %645 : vector<8x32xf32>
    %cst_328 = arith.constant 5.000000e-01 : f32
    %647 = vector.broadcast %cst_328 : f32 to vector<8x32xf32>
    %648 = arith.mulf %647, %646 : vector<8x32xf32>
    %cst_329 = arith.constant 5.000000e-01 : f32
    %649 = vector.broadcast %cst_329 : f32 to vector<8x32xf32>
    %650 = arith.addf %648, %649 : vector<8x32xf32>
    %651 = arith.mulf %640, %624 : vector<8x32xf32>
    %652 = arith.mulf %632, %642 : vector<8x32xf32>
    %653 = arith.addf %651, %652 : vector<8x32xf32>
    %654 = math.tanh %653 : vector<8x32xf32>
    %655 = arith.mulf %650, %654 : vector<8x32xf32>
    %c0_330 = arith.constant 0 : index
    %c0_331 = arith.constant 0 : index
    %656 = vector.load %arg7[%c0_330, %c0_331] : memref<8x32xf32, #tpu.memory_space<vmem>>, vector<8x32xf32>
    tpu.vector_store %arg7[%c0_330, %c0_331], %623 {strides = array<i32>} : memref<8x32xf32, #tpu.memory_space<vmem>>, vector<8x32xf32>,
    %c0_332 = arith.constant 0 : index
    %c0_333 = arith.constant 0 : index
    %657 = vector.load %arg8[%c0_332, %c0_333] : memref<8x32xf32, #tpu.memory_space<vmem>>, vector<8x32xf32>
    tpu.vector_store %arg8[%c0_332, %c0_333], %621 {strides = array<i32>} : memref<8x32xf32, #tpu.memory_space<vmem>>, vector<8x32xf32>,
    %c0_334 = arith.constant 0 : index
    %c0_335 = arith.constant 0 : index
    %658 = vector.load %arg9[%c0_334, %c0_335] : memref<8x32xf32, #tpu.memory_space<vmem>>, vector<8x32xf32>
    tpu.vector_store %arg9[%c0_334, %c0_335], %655 {strides = array<i32>} : memref<8x32xf32, #tpu.memory_space<vmem>>, vector<8x32xf32>,
    %c0_336 = arith.constant 0 : index
    %c0_337 = arith.constant 0 : index
    %659 = vector.load %arg10[%c0_336, %c0_337] : memref<8x32xf32, #tpu.memory_space<vmem>>, vector<8x32xf32>
    tpu.vector_store %arg10[%c0_336, %c0_337], %653 {strides = array<i32>} : memref<8x32xf32, #tpu.memory_space<vmem>>, vector<8x32xf32>,
    %660 = arith.index_cast %c6_i32 : i32 to index
    %c0_338 = arith.constant 0 : index
    %c0_339 = arith.constant 0 : index
    %661 = vector.load %arg5[%660, %c0_338, %c0_339] : memref<8x8x32xf32, #tpu.memory_space<vmem>>, vector<1x8x32xf32>
    %662 = vector.shape_cast %661 : vector<1x8x32xf32> to vector<8x32xf32>
    %663 = vector.shape_cast %623 : vector<8x32xf32> to vector<1x8x32xf32>
    tpu.vector_store %arg5[%660, %c0_338, %c0_339], %663 {strides = array<i32>} : memref<8x8x32xf32, #tpu.memory_space<vmem>>, vector<1x8x32xf32>,
    %664 = arith.index_cast %573 : i32 to index
    %c0_340 = arith.constant 0 : index
    %c0_341 = arith.constant 0 : index
    %665 = vector.load %arg6[%664, %c0_340, %c0_341] : memref<8x8x32xf32, #tpu.memory_space<vmem>>, vector<1x8x32xf32>
    %666 = vector.shape_cast %665 : vector<1x8x32xf32> to vector<8x32xf32>
    %667 = vector.shape_cast %655 : vector<8x32xf32> to vector<1x8x32xf32>
    tpu.vector_store %arg6[%664, %c0_340, %c0_341], %667 {strides = array<i32>} : memref<8x8x32xf32, #tpu.memory_space<vmem>>, vector<1x8x32xf32>,
    %c7_i32_342 = arith.constant 7 : i32
    %c7_i32_343 = arith.constant 7 : i32
    %668 = arith.subi %c7_i32_343, %c7_i32_342 : i32
    %669 = arith.index_cast %c7_i32_342 : i32 to index
    %c0_344 = arith.constant 0 : index
    %c0_345 = arith.constant 0 : index
    %670 = vector.load %arg1[%669, %c0_344, %c0_345] : memref<8x8x128xbf16, #tpu.memory_space<vmem>>, vector<1x8x128xbf16>
    %671 = vector.shape_cast %670 : vector<1x8x128xbf16> to vector<8x128xbf16>
    %672 = arith.extf %671 : vector<8x128xbf16> to vector<8x128xf32>
    %c0_346 = arith.constant 0 : index
    %c0_347 = arith.constant 0 : index
    %673 = vector.load %arg7[%c0_346, %c0_347] : memref<8x32xf32, #tpu.memory_space<vmem>>, vector<8x32xf32>
    %674 = arith.truncf %673 : vector<8x32xf32> to vector<8x32xbf16>
    %c0_348 = arith.constant 0 : index
    %c0_349 = arith.constant 0 : index
    %675 = vector.load %arg3[%c0_348, %c0_349] : memref<32x128xbf16, #tpu.memory_space<vmem>>, vector<32x128xbf16>
    %cst_350 = arith.constant dense<0.000000e+00> : vector<8x128xf32>
    %676 = tpu.matmul %674, %675, %cst_350 {dimension_numbers = #tpu.dot_dimension_numbers<[1], [0], [0], [1], [0, 0, 1, 1], [], []>} : vector<8x32xbf16>, vector<32x128xbf16>, vector<8x128xf32> -> vector<8x128xf32>
    %677 = arith.addf %672, %676 : vector<8x128xf32>
    %678 = arith.index_cast %668 : i32 to index
    %c0_351 = arith.constant 0 : index
    %c0_352 = arith.constant 0 : index
    %679 = vector.load %arg2[%678, %c0_351, %c0_352] : memref<8x8x128xbf16, #tpu.memory_space<vmem>>, vector<1x8x128xbf16>
    %680 = vector.shape_cast %679 : vector<1x8x128xbf16> to vector<8x128xbf16>
    %681 = arith.extf %680 : vector<8x128xbf16> to vector<8x128xf32>
    %c0_353 = arith.constant 0 : index
    %c0_354 = arith.constant 0 : index
    %682 = vector.load %arg9[%c0_353, %c0_354] : memref<8x32xf32, #tpu.memory_space<vmem>>, vector<8x32xf32>
    %683 = arith.truncf %682 : vector<8x32xf32> to vector<8x32xbf16>
    %c0_355 = arith.constant 0 : index
    %c0_356 = arith.constant 0 : index
    %684 = vector.load %arg4[%c0_355, %c0_356] : memref<32x128xbf16, #tpu.memory_space<vmem>>, vector<32x128xbf16>
    %cst_357 = arith.constant dense<0.000000e+00> : vector<8x128xf32>
    %685 = tpu.matmul %683, %684, %cst_357 {dimension_numbers = #tpu.dot_dimension_numbers<[1], [0], [0], [1], [0, 0, 1, 1], [], []>} : vector<8x32xbf16>, vector<32x128xbf16>, vector<8x128xf32> -> vector<8x128xf32>
    %686 = arith.addf %681, %685 : vector<8x128xf32>
    %c0_358 = arith.constant 0 : index
    %c0_359 = arith.constant 0 : index
    %687 = vector.load %arg8[%c0_358, %c0_359] : memref<8x32xf32, #tpu.memory_space<vmem>>, vector<8x32xf32>
    %688 = vector.extract_strided_slice %677 {offsets = [0, 0], sizes = [8, 32], strides = [1, 1]} : vector<8x128xf32> to vector<8x32xf32>
    %cst_360 = arith.constant 5.000000e-01 : f32
    %689 = vector.broadcast %cst_360 : f32 to vector<8x32xf32>
    %690 = arith.mulf %689, %688 : vector<8x32xf32>
    %691 = math.tanh %690 : vector<8x32xf32>
    %cst_361 = arith.constant 5.000000e-01 : f32
    %692 = vector.broadcast %cst_361 : f32 to vector<8x32xf32>
    %693 = arith.mulf %692, %691 : vector<8x32xf32>
    %cst_362 = arith.constant 5.000000e-01 : f32
    %694 = vector.broadcast %cst_362 : f32 to vector<8x32xf32>
    %695 = arith.addf %693, %694 : vector<8x32xf32>
    %696 = vector.extract_strided_slice %677 {offsets = [0, 32], sizes = [8, 32], strides = [1, 1]} : vector<8x128xf32> to vector<8x32xf32>
    %cst_363 = arith.constant 5.000000e-01 : f32
    %697 = vector.broadcast %cst_363 : f32 to vector<8x32xf32>
    %698 = arith.mulf %697, %696 : vector<8x32xf32>
    %699 = math.tanh %698 : vector<8x32xf32>
    %cst_364 = arith.constant 5.000000e-01 : f32
    %700 = vector.broadcast %cst_364 : f32 to vector<8x32xf32>
    %701 = arith.mulf %700, %699 : vector<8x32xf32>
    %cst_365 = arith.constant 5.000000e-01 : f32
    %702 = vector.broadcast %cst_365 : f32 to vector<8x32xf32>
    %703 = arith.addf %701, %702 : vector<8x32xf32>
    %704 = vector.extract_strided_slice %677 {offsets = [0, 64], sizes = [8, 32], strides = [1, 1]} : vector<8x128xf32> to vector<8x32xf32>
    %705 = math.tanh %704 : vector<8x32xf32>
    %706 = vector.extract_strided_slice %677 {offsets = [0, 96], sizes = [8, 32], strides = [1, 1]} : vector<8x128xf32> to vector<8x32xf32>
    %cst_366 = arith.constant 5.000000e-01 : f32
    %707 = vector.broadcast %cst_366 : f32 to vector<8x32xf32>
    %708 = arith.mulf %707, %706 : vector<8x32xf32>
    %709 = math.tanh %708 : vector<8x32xf32>
    %cst_367 = arith.constant 5.000000e-01 : f32
    %710 = vector.broadcast %cst_367 : f32 to vector<8x32xf32>
    %711 = arith.mulf %710, %709 : vector<8x32xf32>
    %cst_368 = arith.constant 5.000000e-01 : f32
    %712 = vector.broadcast %cst_368 : f32 to vector<8x32xf32>
    %713 = arith.addf %711, %712 : vector<8x32xf32>
    %714 = arith.mulf %703, %687 : vector<8x32xf32>
    %715 = arith.mulf %695, %705 : vector<8x32xf32>
    %716 = arith.addf %714, %715 : vector<8x32xf32>
    %717 = math.tanh %716 : vector<8x32xf32>
    %718 = arith.mulf %713, %717 : vector<8x32xf32>
    %c0_369 = arith.constant 0 : index
    %c0_370 = arith.constant 0 : index
    %719 = vector.load %arg10[%c0_369, %c0_370] : memref<8x32xf32, #tpu.memory_space<vmem>>, vector<8x32xf32>
    %720 = vector.extract_strided_slice %686 {offsets = [0, 0], sizes = [8, 32], strides = [1, 1]} : vector<8x128xf32> to vector<8x32xf32>
    %cst_371 = arith.constant 5.000000e-01 : f32
    %721 = vector.broadcast %cst_371 : f32 to vector<8x32xf32>
    %722 = arith.mulf %721, %720 : vector<8x32xf32>
    %723 = math.tanh %722 : vector<8x32xf32>
    %cst_372 = arith.constant 5.000000e-01 : f32
    %724 = vector.broadcast %cst_372 : f32 to vector<8x32xf32>
    %725 = arith.mulf %724, %723 : vector<8x32xf32>
    %cst_373 = arith.constant 5.000000e-01 : f32
    %726 = vector.broadcast %cst_373 : f32 to vector<8x32xf32>
    %727 = arith.addf %725, %726 : vector<8x32xf32>
    %728 = vector.extract_strided_slice %686 {offsets = [0, 32], sizes = [8, 32], strides = [1, 1]} : vector<8x128xf32> to vector<8x32xf32>
    %cst_374 = arith.constant 5.000000e-01 : f32
    %729 = vector.broadcast %cst_374 : f32 to vector<8x32xf32>
    %730 = arith.mulf %729, %728 : vector<8x32xf32>
    %731 = math.tanh %730 : vector<8x32xf32>
    %cst_375 = arith.constant 5.000000e-01 : f32
    %732 = vector.broadcast %cst_375 : f32 to vector<8x32xf32>
    %733 = arith.mulf %732, %731 : vector<8x32xf32>
    %cst_376 = arith.constant 5.000000e-01 : f32
    %734 = vector.broadcast %cst_376 : f32 to vector<8x32xf32>
    %735 = arith.addf %733, %734 : vector<8x32xf32>
    %736 = vector.extract_strided_slice %686 {offsets = [0, 64], sizes = [8, 32], strides = [1, 1]} : vector<8x128xf32> to vector<8x32xf32>
    %737 = math.tanh %736 : vector<8x32xf32>
    %738 = vector.extract_strided_slice %686 {offsets = [0, 96], sizes = [8, 32], strides = [1, 1]} : vector<8x128xf32> to vector<8x32xf32>
    %cst_377 = arith.constant 5.000000e-01 : f32
    %739 = vector.broadcast %cst_377 : f32 to vector<8x32xf32>
    %740 = arith.mulf %739, %738 : vector<8x32xf32>
    %741 = math.tanh %740 : vector<8x32xf32>
    %cst_378 = arith.constant 5.000000e-01 : f32
    %742 = vector.broadcast %cst_378 : f32 to vector<8x32xf32>
    %743 = arith.mulf %742, %741 : vector<8x32xf32>
    %cst_379 = arith.constant 5.000000e-01 : f32
    %744 = vector.broadcast %cst_379 : f32 to vector<8x32xf32>
    %745 = arith.addf %743, %744 : vector<8x32xf32>
    %746 = arith.mulf %735, %719 : vector<8x32xf32>
    %747 = arith.mulf %727, %737 : vector<8x32xf32>
    %748 = arith.addf %746, %747 : vector<8x32xf32>
    %749 = math.tanh %748 : vector<8x32xf32>
    %750 = arith.mulf %745, %749 : vector<8x32xf32>
    %c0_380 = arith.constant 0 : index
    %c0_381 = arith.constant 0 : index
    %751 = vector.load %arg7[%c0_380, %c0_381] : memref<8x32xf32, #tpu.memory_space<vmem>>, vector<8x32xf32>
    tpu.vector_store %arg7[%c0_380, %c0_381], %718 {strides = array<i32>} : memref<8x32xf32, #tpu.memory_space<vmem>>, vector<8x32xf32>,
    %c0_382 = arith.constant 0 : index
    %c0_383 = arith.constant 0 : index
    %752 = vector.load %arg8[%c0_382, %c0_383] : memref<8x32xf32, #tpu.memory_space<vmem>>, vector<8x32xf32>
    tpu.vector_store %arg8[%c0_382, %c0_383], %716 {strides = array<i32>} : memref<8x32xf32, #tpu.memory_space<vmem>>, vector<8x32xf32>,
    %c0_384 = arith.constant 0 : index
    %c0_385 = arith.constant 0 : index
    %753 = vector.load %arg9[%c0_384, %c0_385] : memref<8x32xf32, #tpu.memory_space<vmem>>, vector<8x32xf32>
    tpu.vector_store %arg9[%c0_384, %c0_385], %750 {strides = array<i32>} : memref<8x32xf32, #tpu.memory_space<vmem>>, vector<8x32xf32>,
    %c0_386 = arith.constant 0 : index
    %c0_387 = arith.constant 0 : index
    %754 = vector.load %arg10[%c0_386, %c0_387] : memref<8x32xf32, #tpu.memory_space<vmem>>, vector<8x32xf32>
    tpu.vector_store %arg10[%c0_386, %c0_387], %748 {strides = array<i32>} : memref<8x32xf32, #tpu.memory_space<vmem>>, vector<8x32xf32>,
    %755 = arith.index_cast %c7_i32_342 : i32 to index
    %c0_388 = arith.constant 0 : index
    %c0_389 = arith.constant 0 : index
    %756 = vector.load %arg5[%755, %c0_388, %c0_389] : memref<8x8x32xf32, #tpu.memory_space<vmem>>, vector<1x8x32xf32>
    %757 = vector.shape_cast %756 : vector<1x8x32xf32> to vector<8x32xf32>
    %758 = vector.shape_cast %718 : vector<8x32xf32> to vector<1x8x32xf32>
    tpu.vector_store %arg5[%755, %c0_388, %c0_389], %758 {strides = array<i32>} : memref<8x8x32xf32, #tpu.memory_space<vmem>>, vector<1x8x32xf32>,
    %759 = arith.index_cast %668 : i32 to index
    %c0_390 = arith.constant 0 : index
    %c0_391 = arith.constant 0 : index
    %760 = vector.load %arg6[%759, %c0_390, %c0_391] : memref<8x8x32xf32, #tpu.memory_space<vmem>>, vector<1x8x32xf32>
    %761 = vector.shape_cast %760 : vector<1x8x32xf32> to vector<8x32xf32>
    %762 = vector.shape_cast %750 : vector<8x32xf32> to vector<1x8x32xf32>
    tpu.vector_store %arg6[%759, %c0_390, %c0_391], %762 {strides = array<i32>} : memref<8x8x32xf32, #tpu.memory_space<vmem>>, vector<1x8x32xf32>,
    %c8_i32 = arith.constant 8 : i32
    return
  }
  func.func @transform_0(%arg0: i32) -> (i32, i32, i32) {
    %c0_i32 = arith.constant 0 : i32
    %c0_i32_0 = arith.constant 0 : i32
    %c0_i32_1 = arith.constant 0 : i32
    return %arg0, %c0_i32, %c0_i32_0 : i32, i32, i32
  }
  func.func @transform_1(%arg0: i32) -> (i32, i32, i32) {
    %c0_i32 = arith.constant 0 : i32
    %0 = arith.subi %c0_i32, %arg0 : i32
    %c0_i32_0 = arith.constant 0 : i32
    %c0_i32_1 = arith.constant 0 : i32
    %c0_i32_2 = arith.constant 0 : i32
    return %0, %c0_i32_0, %c0_i32_1 : i32, i32, i32
  }
  func.func @transform_2(%arg0: i32) -> (i32, i32) {
    %c0_i32 = arith.constant 0 : i32
    %c0_i32_0 = arith.constant 0 : i32
    %c0_i32_1 = arith.constant 0 : i32
    return %c0_i32, %c0_i32_0 : i32, i32
  }
  func.func @transform_3(%arg0: i32) -> (i32, i32) {
    %c0_i32 = arith.constant 0 : i32
    %c0_i32_0 = arith.constant 0 : i32
    %c0_i32_1 = arith.constant 0 : i32
    return %c0_i32, %c0_i32_0 : i32, i32
  }
  func.func @transform_4(%arg0: i32) -> (i32, i32, i32) {
    %c0_i32 = arith.constant 0 : i32
    %c0_i32_0 = arith.constant 0 : i32
    %c0_i32_1 = arith.constant 0 : i32
    return %arg0, %c0_i32, %c0_i32_0 : i32, i32, i32
  }
  func.func @transform_5(%arg0: i32) -> (i32, i32, i32) {
    %c0_i32 = arith.constant 0 : i32
    %0 = arith.subi %c0_i32, %arg0 : i32
    %c0_i32_0 = arith.constant 0 : i32
    %c0_i32_1 = arith.constant 0 : i32
    %c0_i32_2 = arith.constant 0 : i32
    return %0, %c0_i32_0, %c0_i32_1 : i32, i32, i32
  }
}

</mosaic_0001>

<llo_original>
// kernel: tpu_custom_call.1
$region0: #{tpu_custom_call.1}
  #allocation0 [shape = 'u32[]', space=smem, size = 0x4, offset = 0x4, fixed_abs, tag = 'smem constant byte address 0x4 - core index']
  #allocation1 [shape = 'u32[144,128]{1,0:T(1,128)}', space=vmem, size = 0x12000, scoped, tag = 'internal scratch']
  #allocation2 [shape = 'f32[8,32]{1,0:T(8,128)}', space=vmem, size = 0x1000, scoped, tag = 'scratch operand']
  #allocation3 [shape = 'f32[8,32]{1,0:T(8,128)}', space=vmem, size = 0x1000, scoped, tag = 'scratch operand']
  #allocation4 [shape = 'f32[8,32]{1,0:T(8,128)}', space=vmem, size = 0x1000, scoped, tag = 'scratch operand']
  #allocation5 [shape = 'f32[8,32]{1,0:T(8,128)}', space=vmem, size = 0x1000, scoped, tag = 'scratch operand']
  %s0 = inlined_call_operand.hbm [shape: bf16[8,8,128], index: 0, kind: input, shape index: {}]
  %s1 = inlined_call_operand.hbm [shape: bf16[8,8,128], index: 1, kind: input, shape index: {}]
  %s2 = inlined_call_operand.hbm [shape: bf16[32,128], index: 2, kind: input, shape index: {}]
  %s3 = inlined_call_operand.hbm [shape: bf16[32,128], index: 3, kind: input, shape index: {}]
  %s4 = inlined_call_operand.hbm [shape: f32[8,8,32], index: 4, kind: output, shape index: {0}]
  %s5 = inlined_call_operand.hbm [shape: f32[8,8,32], index: 5, kind: output, shape index: {1}]
  %6 = xla_tuple %s4, %s5
  %s7 = sld [smem:[#allocation0]]
  $region54: #{tpu_custom_call.1} parent=0
    _
  %s9 = ssub.s32 1, %s7
  %s10 = scalar_select 0, %s9, %s7
  $region1: #{tpu_custom_call.1} parent=0
    #allocation6 [shape = 'u8[16384]{0}', space=vmem, size = 0x4000, scoped, tag = 'input window, operand 0, single buffered']
    #allocation7 [shape = 's32[1]{0}', space=sflag, size = 0x4, scoped, tag = 'scoped memory for tpu_custom_call.1']
    #allocation8 [shape = 's32[1]{0}', space=sflag, size = 0x4, scoped, tag = 'scoped memory for tpu_custom_call.1']
    #allocation9 [shape = 'u8[16384]{0}', space=vmem, size = 0x4000, scoped, tag = 'input window, operand 1, single buffered']
    #allocation10 [shape = 's32[1]{0}', space=sflag, size = 0x4, scoped, tag = 'scoped memory for tpu_custom_call.1']
    #allocation11 [shape = 'u8[8192]{0}', space=vmem, size = 0x2000, scoped, tag = 'input window, operand 2, single buffered']
    #allocation12 [shape = 'u8[8192]{0}', space=vmem, size = 0x2000, scoped, tag = 'input window, operand 3, single buffered']
    #allocation13 [shape = 's32[1]{0}', space=sflag, size = 0x4, scoped, tag = 'scoped memory for tpu_custom_call.1']
    #allocation14 [shape = 'u8[32768]{0}', space=vmem, size = 0x8000, scoped, tag = 'output window, operand 0, single buffered']
    #allocation15 [shape = 'u8[32768]{0}', space=vmem, size = 0x8000, scoped, tag = 'output window, operand 1, single buffered']
    #allocation16 [shape = 's32[1]{0}', space=sflag, size = 0x4, scoped, tag = 'scoped memory for tpu_custom_call.1']
    %11 = vsyncpa [#allocation7], 0
    %12 = vsyncpa [#allocation10], 0
    %13 = vsyncpa [#allocation13], 0
    %14 = vsyncpa [#allocation8], 0
    %15 = vsyncpa [#allocation16], 0
    // Predicated region
    $region2: #{tpu_custom_call.1} parent=1 // pred_check
      _
    $region3: #{tpu_custom_call.1} parent=1 // pred_check_branch
      %17 = sbr.rel (0) target = $region5
    $region4: #{tpu_custom_call.1} parent=1 // pred_region
      %s19 = ssub.s32 512, 512
      %20 = vsyncadd [#allocation7], %s19
      %s21 = sshll.u32 [#allocation6], 4
      %s22 = int_to_ptr.vmem [resolvable:$true] %s21
      %27 = dma.hbm_to_vmem [thread:$0]  %s0, 512, %s22, [#allocation7], 64, 64, 4
    $region5: #{tpu_custom_call.1} parent=1 // pred_fallthru
      _
    // Predicated region
    $region6: #{tpu_custom_call.1} parent=1 // pred_check
      _
    $region7: #{tpu_custom_call.1} parent=1 // pred_check_branch
      %29 = sbr.rel (0) target = $region9
    $region8: #{tpu_custom_call.1} parent=1 // pred_region
      %s30 = ssub.s32 0, 0
      %s31 = smul.u32 8, %s30
      %s33 = ssub.s32 512, 512
      %34 = vsyncadd [#allocation10], %s33
      %s35 = smul.addr %s31, 64
      %s36 = scalar_lea.hbm %s1, %s35
      %s37 = sshll.u32 [#allocation9], 4
      %s38 = int_to_ptr.vmem [resolvable:$true] %s37
      %43 = dma.hbm_to_vmem [thread:$0]  %s36, 512, %s38, [#allocation10], 64, 64, 4
    $region9: #{tpu_custom_call.1} parent=1 // pred_fallthru
      _
    // Predicated region
    $region10: #{tpu_custom_call.1} parent=1 // pred_check
      _
    $region11: #{tpu_custom_call.1} parent=1 // pred_check_branch
      %45 = sbr.rel (0) target = $region13
    $region12: #{tpu_custom_call.1} parent=1 // pred_region
      %s47 = ssub.s32 256, 256
      %48 = vsyncadd [#allocation10], %s47
      %s49 = sshll.u32 [#allocation11], 4
      %s50 = int_to_ptr.vmem [resolvable:$true] %s49
      %55 = dma.hbm_to_vmem [thread:$0]  %s2, 256, %s50, [#allocation10], 64, 64, 4
    $region13: #{tpu_custom_call.1} parent=1 // pred_fallthru
      _
    // Predicated region
    $region14: #{tpu_custom_call.1} parent=1 // pred_check
      _
    $region15: #{tpu_custom_call.1} parent=1 // pred_check_branch
      %57 = sbr.rel (0) target = $region17
    $region16: #{tpu_custom_call.1} parent=1 // pred_region
      %s59 = ssub.s32 256, 256
      %60 = vsyncadd [#allocation13], %s59
      %s61 = sshll.u32 [#allocation12], 4
      %s62 = int_to_ptr.vmem [resolvable:$true] %s61
      %67 = dma.hbm_to_vmem [thread:$0]  %s3, 256, %s62, [#allocation13], 64, 64, 4
    $region17: #{tpu_custom_call.1} parent=1 // pred_fallthru
      _
    // Predicated region
    $region18: #{tpu_custom_call.1} parent=1 // pred_check
      _
    $region19: #{tpu_custom_call.1} parent=1 // pred_check_branch
      %69 = sbr.rel (0) target = $region21
    $region20: #{tpu_custom_call.1} parent=1 // pred_region
      %70 = dma.done [#allocation7], 512
    $region21: #{tpu_custom_call.1} parent=1 // pred_fallthru
      _
    // Predicated region
    $region22: #{tpu_custom_call.1} parent=1 // pred_check
      _
    $region23: #{tpu_custom_call.1} parent=1 // pred_check_branch
      %72 = sbr.rel (0) target = $region25
    $region24: #{tpu_custom_call.1} parent=1 // pred_region
      %73 = dma.done [#allocation10], 512
    $region25: #{tpu_custom_call.1} parent=1 // pred_fallthru
      _
    // Predicated region
    $region26: #{tpu_custom_call.1} parent=1 // pred_check
      _
    $region27: #{tpu_custom_call.1} parent=1 // pred_check_branch
      %75 = sbr.rel (0) target = $region29
    $region28: #{tpu_custom_call.1} parent=1 // pred_region
      %76 = dma.done [#allocation10], 256
    $region29: #{tpu_custom_call.1} parent=1 // pred_fallthru
      _
    // Predicated region
    $region30: #{tpu_custom_call.1} parent=1 // pred_check
      _
    $region31: #{tpu_custom_call.1} parent=1 // pred_check_branch
      %78 = sbr.rel (0) target = $region33
    $region32: #{tpu_custom_call.1} parent=1 // pred_region
      %79 = dma.done [#allocation13], 256
    $region33: #{tpu_custom_call.1} parent=1 // pred_fallthru
      _
    %s80 = ssub.s32 0, 0
    %s81 = smul.u32 8, %s80
    %s82 = ssub.s32 0, 0
    %s83 = smul.u32 8, %s82
    %p85 = scmp.eq.s32.totalorder 0, 0
    // Predicated region
    $region34: #{tpu_custom_call.1} parent=1 // pred_check
      %p86 = pneg %p85
    $region35: #{tpu_custom_call.1} parent=1 // pred_check_branch
      %88 = sbr.rel (%p86) target = $region37
    $region36: #{tpu_custom_call.1} parent=1 // pred_region
      %vm89 = vcmask 261120
      %90 = vst.msk [vmem:[#allocation2] sm:$0xff] %vm89, 0.0
      %91 = vst.msk [vmem:[#allocation3] sm:$0xff] %vm89, 0.0
      %92 = vst.msk [vmem:[#allocation4] sm:$0xff] %vm89, 0.0
      %93 = vst.msk [vmem:[#allocation5] sm:$0xff] %vm89, 0.0
    $region37: #{tpu_custom_call.1} parent=1 // pred_fallthru
      _
    %v94 = vld [vmem:[#allocation6] sm:$0xf]
    %v95 = vunpack.c.l.bf16 %v94
    %v96 = vld [vmem:[#allocation2] sm:$0xff]
    %v97 = vpack.c.bf16 %v96, %v96
    %v98 = vld [vmem:[#allocation11] sm:$0xf]
    %v99 = vld [vmem:[#allocation11 + $0x4] sm:$0xf]
    %v100 = vld [vmem:[#allocation11 + $0x8] sm:$0xf]
    %v101 = vld [vmem:[#allocation11 + $0xc] sm:$0xf]
    %v106 = vunpack.c.l.b16 %v98
    %v107 = vunpack.c.l.b16 %v99
    %v108 = vunpack.c.l.b16 %v100
    %v109 = vunpack.c.l.b16 %v101
    %v110 = vpack.c.b16 %v107, %v106
    %v111 = vpack.c.b16 %v109, %v108
    %vm114 = vcmask 261120
    %v116 = vsel %vm114, %v97, 0
    %118 = vmatprep.subr.bf16.mxu0 0
    %119 = vmatpush1.bf16.msra.mxu0 %v110
    %120 = vmatprep.subr.bf16.mxu0 0
    %121 = vmatpush1.bf16.msra.mxu0 %v111
    %122 = vmatprep.subr.bf16.mxu0 0
    %123 = vmatpush1.bf16.msra.mxu0 0
    %124 = vmatprep.subr.bf16.mxu0 0
    %125 = vmatpush1.bf16.msra.mxu0 0
    %126 = vmatprep.subr.bf16.mxu0 0
    %127 = vmatpush1.bf16.msra.mxu0 0
    %128 = vmatprep.subr.bf16.mxu0 0
    %129 = vmatpush1.bf16.msra.mxu0 0
    %130 = vmatprep.subr.bf16.mxu0 0
    %131 = vmatpush1.bf16.msra.mxu0 0
    %132 = vmatprep.subr.bf16.mxu0 0
    %133 = vmatpush1.bf16.msra.mxu0 0
    %134 = vmatprep.subr.bf16.mxu0 0
    %135 = vmatpush1.bf16.msra.mxu0 0
    %136 = vmatprep.subr.bf16.mxu0 0
    %137 = vmatpush1.bf16.msra.mxu0 0
    %138 = vmatprep.subr.bf16.mxu0 0
    %139 = vmatpush1.bf16.msra.mxu0 0
    %140 = vmatprep.subr.bf16.mxu0 0
    %141 = vmatpush1.bf16.msra.mxu0 0
    %142 = vmatprep.subr.bf16.mxu0 0
    %143 = vmatpush1.bf16.msra.mxu0 0
    %144 = vmatprep.subr.bf16.mxu0 0
    %145 = vmatpush1.bf16.msra.mxu0 0
    %146 = vmatprep.subr.bf16.mxu0 0
    %147 = vmatpush1.bf16.msra.mxu0 0
    %148 = vmatprep.subr.bf16.mxu0 0
    %149 = vmatpush1.bf16.msra.mxu0 0
    %150 = vmatprep.mubr.bf16.mxu0 0
    %151 = vmatmul.mubr.bf16.gmra.mrb[0].mxu0 %v116
    %v152 = vpop.f32.mrb[0].mxu0
    %v153 = vadd.f32 0.0, %v152
    %v154 = vpop.f32.mrb[0].mxu0
    %v155 = vpop.f32.mrb[0].mxu0
    %v156 = vpop.f32.mrb[0].mxu0
    %157 = vdwg.mxu0
    %v158 = vadd.f32 %v95, %v153
    %s159 = scalar_lea.vmem [#allocation9], 28
    %v160 = vld [vmem:[%s159] sm:$0xf]
    %v161 = vunpack.c.l.bf16 %v160
    %v162 = vld [vmem:[#allocation4] sm:$0xff]
    %v163 = vpack.c.bf16 %v162, %v162
    %v164 = vld [vmem:[#allocation12] sm:$0xf]
    %v165 = vld [vmem:[#allocation12 + $0x4] sm:$0xf]
    %v166 = vld [vmem:[#allocation12 + $0x8] sm:$0xf]
    %v167 = vld [vmem:[#allocation12 + $0xc] sm:$0xf]
    %v172 = vunpack.c.l.b16 %v164
    %v173 = vunpack.c.l.b16 %v165
    %v174 = vunpack.c.l.b16 %v166
    %v175 = vunpack.c.l.b16 %v167
    %v176 = vpack.c.b16 %v173, %v172
    %v177 = vpack.c.b16 %v175, %v174
    %v181 = vsel %vm114, %v163, 0
    %183 = vmatprep.subr.bf16.mxu0 0
    %184 = vmatpush1.bf16.msra.mxu0 %v176
    %185 = vmatprep.subr.bf16.mxu0 0
    %186 = vmatpush1.bf16.msra.mxu0 %v177
    %187 = vmatprep.subr.bf16.mxu0 0
    %188 = vmatpush1.bf16.msra.mxu0 0
    %189 = vmatprep.subr.bf16.mxu0 0
    %190 = vmatpush1.bf16.msra.mxu0 0
    %191 = vmatprep.subr.bf16.mxu0 0
    %192 = vmatpush1.bf16.msra.mxu0 0
    %193 = vmatprep.subr.bf16.mxu0 0
    %194 = vmatpush1.bf16.msra.mxu0 0
    %195 = vmatprep.subr.bf16.mxu0 0
    %196 = vmatpush1.bf16.msra.mxu0 0
    %197 = vmatprep.subr.bf16.mxu0 0
    %198 = vmatpush1.bf16.msra.mxu0 0
    %199 = vmatprep.subr.bf16.mxu0 0
    %200 = vmatpush1.bf16.msra.mxu0 0
    %201 = vmatprep.subr.bf16.mxu0 0
    %202 = vmatpush1.bf16.msra.mxu0 0
    %203 = vmatprep.subr.bf16.mxu0 0
    %204 = vmatpush1.bf16.msra.mxu0 0
    %205 = vmatprep.subr.bf16.mxu0 0
    %206 = vmatpush1.bf16.msra.mxu0 0
    %207 = vmatprep.subr.bf16.mxu0 0
    %208 = vmatpush1.bf16.msra.mxu0 0
    %209 = vmatprep.subr.bf16.mxu0 0
    %210 = vmatpush1.bf16.msra.mxu0 0
    %211 = vmatprep.subr.bf16.mxu0 0
    %212 = vmatpush1.bf16.msra.mxu0 0
    %213 = vmatprep.subr.bf16.mxu0 0
    %214 = vmatpush1.bf16.msra.mxu0 0
    %215 = vmatprep.mubr.bf16.mxu0 0
    %216 = vmatmul.mubr.bf16.gmra.mrb[0].mxu0 %v181
    %v217 = vpop.f32.mrb[0].mxu0
    %v218 = vadd.f32 0.0, %v217
    %v219 = vpop.f32.mrb[0].mxu0
    %v220 = vpop.f32.mrb[0].mxu0
    %v221 = vpop.f32.mrb[0].mxu0
    %222 = vdwg.mxu0
    %v223 = vadd.f32 %v161, %v218
    %v224 = vld [vmem:[#allocation3] sm:$0xff]
    %v225 = vmul.f32 %v158, 0.5
    %v226 = vtanh.pop %v225
    %v227 = vmul.f32 %v226, 0.5
    %v228 = vadd.f32 %v227, 0.5
    %v229 = vtanh.pop %v158
    %231 = vrot.lane.b32.xlu0 %v224, 32
    %v232 = vpop.permute.xlu0 %231
    %v234 = vmul.f32 %v228, %v232
    %236 = vrot.lane.b32.xlu0 %v229, 64
    %v237 = vpop.permute.xlu0 %236
    %v239 = vmul.f32 %v228, %v237
    %241 = vrot.lane.b32.xlu0 %v239, 32
    %v242 = vpop.permute.xlu0 %241
    %v244 = vadd.f32 %v234, %v242
    %v245 = vtanh.pop %v244
    %247 = vrot.lane.b32.xlu0 %v245, 64
    %v248 = vpop.permute.xlu0 %247
    %v250 = vmul.f32 %v228, %v248
    %v251 = vld [vmem:[#allocation5] sm:$0xff]
    %v252 = vmul.f32 %v223, 0.5
    %v253 = vtanh.pop %v252
    %v254 = vmul.f32 %v253, 0.5
    %v255 = vadd.f32 %v254, 0.5
    %v256 = vtanh.pop %v223
    %258 = vrot.lane.b32.xlu0 %v251, 32
    %v259 = vpop.permute.xlu0 %258
    %v261 = vmul.f32 %v255, %v259
    %263 = vrot.lane.b32.xlu0 %v256, 64
    %v264 = vpop.permute.xlu0 %263
    %v266 = vmul.f32 %v255, %v264
    %268 = vrot.lane.b32.xlu0 %v266, 32
    %v269 = vpop.permute.xlu0 %268
    %v271 = vadd.f32 %v261, %v269
    %v272 = vtanh.pop %v271
    %274 = vrot.lane.b32.xlu0 %v272, 64
    %v275 = vpop.permute.xlu0 %274
    %v277 = vmul.f32 %v255, %v275
    %279 = vrot.lane.b32.xlu0 %v250, 32
    %v280 = vpop.permute.xlu0 %279
    %282 = vst.msk [vmem:[#allocation2] sm:$0xff] %vm114, %v280
    %284 = vrot.lane.b32.xlu0 %v244, 96
    %v285 = vpop.permute.xlu0 %284
    %287 = vst.msk [vmem:[#allocation3] sm:$0xff] %vm114, %v285
    %289 = vrot.lane.b32.xlu0 %v277, 32
    %v290 = vpop.permute.xlu0 %289
    %292 = vst.msk [vmem:[#allocation4] sm:$0xff] %vm114, %v290
    %294 = vrot.lane.b32.xlu0 %v271, 96
    %v295 = vpop.permute.xlu0 %294
    %297 = vst.msk [vmem:[#allocation5] sm:$0xff] %vm114, %v295
    %298 = vst.msk [vmem:[#allocation14] sm:$0xff] %vm114, %v280
    %s299 = scalar_lea.vmem [#allocation15], 56
    %300 = vst.msk [vmem:[%s299] sm:$0xff] %vm114, %v290
    %s301 = scalar_lea.vmem [#allocation6], 4
    %v302 = vld [vmem:[%s301] sm:$0xf]
    %v303 = vunpack.c.l.bf16 %v302
    %v304 = vld [vmem:[#allocation2] sm:$0xff]
    %v305 = vpack.c.bf16 %v304, %v304
    %v306 = vld [vmem:[#allocation11] sm:$0xf]
    %v307 = vld [vmem:[#allocation11 + $0x4] sm:$0xf]
    %v308 = vld [vmem:[#allocation11 + $0x8] sm:$0xf]
    %v309 = vld [vmem:[#allocation11 + $0xc] sm:$0xf]
    %v314 = vunpack.c.l.b16 %v306
    %v315 = vunpack.c.l.b16 %v307
    %v316 = vunpack.c.l.b16 %v308
    %v317 = vunpack.c.l.b16 %v309
    %v318 = vpack.c.b16 %v315, %v314
    %v319 = vpack.c.b16 %v317, %v316
    %v323 = vsel %vm114, %v305, 0
    %325 = vmatprep.subr.bf16.mxu0 0
    %326 = vmatpush1.bf16.msra.mxu0 %v318
    %327 = vmatprep.subr.bf16.mxu0 0
    %328 = vmatpush1.bf16.msra.mxu0 %v319
    %329 = vmatprep.subr.bf16.mxu0 0
    %330 = vmatpush1.bf16.msra.mxu0 0
    %331 = vmatprep.subr.bf16.mxu0 0
    %332 = vmatpush1.bf16.msra.mxu0 0
    %333 = vmatprep.subr.bf16.mxu0 0
    %334 = vmatpush1.bf16.msra.mxu0 0
    %335 = vmatprep.subr.bf16.mxu0 0
    %336 = vmatpush1.bf16.msra.mxu0 0
    %337 = vmatprep.subr.bf16.mxu0 0
    %338 = vmatpush1.bf16.msra.mxu0 0
    %339 = vmatprep.subr.bf16.mxu0 0
    %340 = vmatpush1.bf16.msra.mxu0 0
    %341 = vmatprep.subr.bf16.mxu0 0
    %342 = vmatpush1.bf16.msra.mxu0 0
    %343 = vmatprep.subr.bf16.mxu0 0
    %344 = vmatpush1.bf16.msra.mxu0 0
    %345 = vmatprep.subr.bf16.mxu0 0
    %346 = vmatpush1.bf16.msra.mxu0 0
    %347 = vmatprep.subr.bf16.mxu0 0
    %348 = vmatpush1.bf16.msra.mxu0 0
    %349 = vmatprep.subr.bf16.mxu0 0
    %350 = vmatpush1.bf16.msra.mxu0 0
    %351 = vmatprep.subr.bf16.mxu0 0
    %352 = vmatpush1.bf16.msra.mxu0 0
    %353 = vmatprep.subr.bf16.mxu0 0
    %354 = vmatpush1.bf16.msra.mxu0 0
    %355 = vmatprep.subr.bf16.mxu0 0
    %356 = vmatpush1.bf16.msra.mxu0 0
    %357 = vmatprep.mubr.bf16.mxu0 0
    %358 = vmatmul.mubr.bf16.gmra.mrb[0].mxu0 %v323
    %v359 = vpop.f32.mrb[0].mxu0
    %v360 = vadd.f32 0.0, %v359
    %v361 = vpop.f32.mrb[0].mxu0
    %v362 = vpop.f32.mrb[0].mxu0
    %v363 = vpop.f32.mrb[0].mxu0
    %364 = vdwg.mxu0
    %v365 = vadd.f32 %v303, %v360
    %s366 = scalar_lea.vmem [#allocation9], 24
    %v367 = vld [vmem:[%s366] sm:$0xf]
    %v368 = vunpack.c.l.bf16 %v367
    %v369 = vld [vmem:[#allocation4] sm:$0xff]
    %v370 = vpack.c.bf16 %v369, %v369
    %v371 = vld [vmem:[#allocation12] sm:$0xf]
    %v372 = vld [vmem:[#allocation12 + $0x4] sm:$0xf]
    %v373 = vld [vmem:[#allocation12 + $0x8] sm:$0xf]
    %v374 = vld [vmem:[#allocation12 + $0xc] sm:$0xf]
    %v379 = vunpack.c.l.b16 %v371
    %v380 = vunpack.c.l.b16 %v372
    %v381 = vunpack.c.l.b16 %v373
    %v382 = vunpack.c.l.b16 %v374
    %v383 = vpack.c.b16 %v380, %v379
    %v384 = vpack.c.b16 %v382, %v381
    %v388 = vsel %vm114, %v370, 0
    %390 = vmatprep.subr.bf16.mxu0 0
    %391 = vmatpush1.bf16.msra.mxu0 %v383
    %392 = vmatprep.subr.bf16.mxu0 0
    %393 = vmatpush1.bf16.msra.mxu0 %v384
    %394 = vmatprep.subr.bf16.mxu0 0
    %395 = vmatpush1.bf16.msra.mxu0 0
    %396 = vmatprep.subr.bf16.mxu0 0
    %397 = vmatpush1.bf16.msra.mxu0 0
    %398 = vmatprep.subr.bf16.mxu0 0
    %399 = vmatpush1.bf16.msra.mxu0 0
    %400 = vmatprep.subr.bf16.mxu0 0
    %401 = vmatpush1.bf16.msra.mxu0 0
    %402 = vmatprep.subr.bf16.mxu0 0
    %403 = vmatpush1.bf16.msra.mxu0 0
    %404 = vmatprep.subr.bf16.mxu0 0
    %405 = vmatpush1.bf16.msra.mxu0 0
    %406 = vmatprep.subr.bf16.mxu0 0
    %407 = vmatpush1.bf16.msra.mxu0 0
    %408 = vmatprep.subr.bf16.mxu0 0
    %409 = vmatpush1.bf16.msra.mxu0 0
    %410 = vmatprep.subr.bf16.mxu0 0
    %411 = vmatpush1.bf16.msra.mxu0 0
    %412 = vmatprep.subr.bf16.mxu0 0
    %413 = vmatpush1.bf16.msra.mxu0 0
    %414 = vmatprep.subr.bf16.mxu0 0
    %415 = vmatpush1.bf16.msra.mxu0 0
    %416 = vmatprep.subr.bf16.mxu0 0
    %417 = vmatpush1.bf16.msra.mxu0 0
    %418 = vmatprep.subr.bf16.mxu0 0
    %419 = vmatpush1.bf16.msra.mxu0 0
    %420 = vmatprep.subr.bf16.mxu0 0
    %421 = vmatpush1.bf16.msra.mxu0 0
    %422 = vmatprep.mubr.bf16.mxu0 0
    %423 = vmatmul.mubr.bf16.gmra.mrb[0].mxu0 %v388
    %v424 = vpop.f32.mrb[0].mxu0
    %v425 = vadd.f32 0.0, %v424
    %v426 = vpop.f32.mrb[0].mxu0
    %v427 = vpop.f32.mrb[0].mxu0
    %v428 = vpop.f32.mrb[0].mxu0
    %429 = vdwg.mxu0
    %v430 = vadd.f32 %v368, %v425
    %v431 = vld [vmem:[#allocation3] sm:$0xff]
    %v432 = vmul.f32 %v365, 0.5
    %v433 = vtanh.pop %v432
    %v434 = vmul.f32 %v433, 0.5
    %v435 = vadd.f32 %v434, 0.5
    %v436 = vtanh.pop %v365
    %438 = vrot.lane.b32.xlu0 %v431, 32
    %v439 = vpop.permute.xlu0 %438
    %v441 = vmul.f32 %v435, %v439
    %443 = vrot.lane.b32.xlu0 %v436, 64
    %v444 = vpop.permute.xlu0 %443
    %v446 = vmul.f32 %v435, %v444
    %448 = vrot.lane.b32.xlu0 %v446, 32
    %v449 = vpop.permute.xlu0 %448
    %v451 = vadd.f32 %v441, %v449
    %v452 = vtanh.pop %v451
    %454 = vrot.lane.b32.xlu0 %v452, 64
    %v455 = vpop.permute.xlu0 %454
    %v457 = vmul.f32 %v435, %v455
    %v458 = vld [vmem:[#allocation5] sm:$0xff]
    %v459 = vmul.f32 %v430, 0.5
    %v460 = vtanh.pop %v459
    %v461 = vmul.f32 %v460, 0.5
    %v462 = vadd.f32 %v461, 0.5
    %v463 = vtanh.pop %v430
    %465 = vrot.lane.b32.xlu0 %v458, 32
    %v466 = vpop.permute.xlu0 %465
    %v468 = vmul.f32 %v462, %v466
    %470 = vrot.lane.b32.xlu0 %v463, 64
    %v471 = vpop.permute.xlu0 %470
    %v473 = vmul.f32 %v462, %v471
    %475 = vrot.lane.b32.xlu0 %v473, 32
    %v476 = vpop.permute.xlu0 %475
    %v478 = vadd.f32 %v468, %v476
    %v479 = vtanh.pop %v478
    %481 = vrot.lane.b32.xlu0 %v479, 64
    %v482 = vpop.permute.xlu0 %481
    %v484 = vmul.f32 %v462, %v482
    %486 = vrot.lane.b32.xlu0 %v457, 32
    %v487 = vpop.permute.xlu0 %486
    %489 = vst.msk [vmem:[#allocation2] sm:$0xff] %vm114, %v487
    %491 = vrot.lane.b32.xlu0 %v451, 96
    %v492 = vpop.permute.xlu0 %491
    %494 = vst.msk [vmem:[#allocation3] sm:$0xff] %vm114, %v492
    %496 = vrot.lane.b32.xlu0 %v484, 32
    %v497 = vpop.permute.xlu0 %496
    %499 = vst.msk [vmem:[#allocation4] sm:$0xff] %vm114, %v497
    %501 = vrot.lane.b32.xlu0 %v478, 96
    %v502 = vpop.permute.xlu0 %501
    %504 = vst.msk [vmem:[#allocation5] sm:$0xff] %vm114, %v502
    %s505 = scalar_lea.vmem [#allocation14], 8
    %506 = vst.msk [vmem:[%s505] sm:$0xff] %vm114, %v487
    %s507 = scalar_lea.vmem [#allocation15], 48
    %508 = vst.msk [vmem:[%s507] sm:$0xff] %vm114, %v497
    %s509 = scalar_lea.vmem [#allocation6], 8
    %v510 = vld [vmem:[%s509] sm:$0xf]
    %v511 = vunpack.c.l.bf16 %v510
    %v512 = vld [vmem:[#allocation2] sm:$0xff]
    %v513 = vpack.c.bf16 %v512, %v512
    %v514 = vld [vmem:[#allocation11] sm:$0xf]
    %v515 = vld [vmem:[#allocation11 + $0x4] sm:$0xf]
    %v516 = vld [vmem:[#allocation11 + $0x8] sm:$0xf]
    %v517 = vld [vmem:[#allocation11 + $0xc] sm:$0xf]
    %v522 = vunpack.c.l.b16 %v514
    %v523 = vunpack.c.l.b16 %v515
    %v524 = vunpack.c.l.b16 %v516
    %v525 = vunpack.c.l.b16 %v517
    %v526 = vpack.c.b16 %v523, %v522
    %v527 = vpack.c.b16 %v525, %v524
    %v531 = vsel %vm114, %v513, 0
    %533 = vmatprep.subr.bf16.mxu0 0
    %534 = vmatpush1.bf16.msra.mxu0 %v526
    %535 = vmatprep.subr.bf16.mxu0 0
    %536 = vmatpush1.bf16.msra.mxu0 %v527
    %537 = vmatprep.subr.bf16.mxu0 0
    %538 = vmatpush1.bf16.msra.mxu0 0
    %539 = vmatprep.subr.bf16.mxu0 0
    %540 = vmatpush1.bf16.msra.mxu0 0
    %541 = vmatprep.subr.bf16.mxu0 0
    %542 = vmatpush1.bf16.msra.mxu0 0
    %543 = vmatprep.subr.bf16.mxu0 0
    %544 = vmatpush1.bf16.msra.mxu0 0
    %545 = vmatprep.subr.bf16.mxu0 0
    %546 = vmatpush1.bf16.msra.mxu0 0
    %547 = vmatprep.subr.bf16.mxu0 0
    %548 = vmatpush1.bf16.msra.mxu0 0
    %549 = vmatprep.subr.bf16.mxu0 0
    %550 = vmatpush1.bf16.msra.mxu0 0
    %551 = vmatprep.subr.bf16.mxu0 0
    %552 = vmatpush1.bf16.msra.mxu0 0
    %553 = vmatprep.subr.bf16.mxu0 0
    %554 = vmatpush1.bf16.msra.mxu0 0
    %555 = vmatprep.subr.bf16.mxu0 0
    %556 = vmatpush1.bf16.msra.mxu0 0
    %557 = vmatprep.subr.bf16.mxu0 0
    %558 = vmatpush1.bf16.msra.mxu0 0
    %559 = vmatprep.subr.bf16.mxu0 0
    %560 = vmatpush1.bf16.msra.mxu0 0
    %561 = vmatprep.subr.bf16.mxu0 0
    %562 = vmatpush1.bf16.msra.mxu0 0
    %563 = vmatprep.subr.bf16.mxu0 0
    %564 = vmatpush1.bf16.msra.mxu0 0
    %565 = vmatprep.mubr.bf16.mxu0 0
    %566 = vmatmul.mubr.bf16.gmra.mrb[0].mxu0 %v531
    %v567 = vpop.f32.mrb[0].mxu0
    %v568 = vadd.f32 0.0, %v567
    %v569 = vpop.f32.mrb[0].mxu0
    %v570 = vpop.f32.mrb[0].mxu0
    %v571 = vpop.f32.mrb[0].mxu0
    %572 = vdwg.mxu0
    %v573 = vadd.f32 %v511, %v568
    %s574 = scalar_lea.vmem [#allocation9], 20
    %v575 = vld [vmem:[%s574] sm:$0xf]
    %v576 = vunpack.c.l.bf16 %v575
    %v577 = vld [vmem:[#allocation4] sm:$0xff]
    %v578 = vpack.c.bf16 %v577, %v577
    %v579 = vld [vmem:[#allocation12] sm:$0xf]
    %v580 = vld [vmem:[#allocation12 + $0x4] sm:$0xf]
    %v581 = vld [vmem:[#allocation12 + $0x8] sm:$0xf]
    %v582 = vld [vmem:[#allocation12 + $0xc] sm:$0xf]
    %v587 = vunpack.c.l.b16 %v579
    %v588 = vunpack.c.l.b16 %v580
    %v589 = vunpack.c.l.b16 %v581
    %v590 = vunpack.c.l.b16 %v582
    %v591 = vpack.c.b16 %v588, %v587
    %v592 = vpack.c.b16 %v590, %v589
    %v596 = vsel %vm114, %v578, 0
    %598 = vmatprep.subr.bf16.mxu0 0
    %599 = vmatpush1.bf16.msra.mxu0 %v591
    %600 = vmatprep.subr.bf16.mxu0 0
    %601 = vmatpush1.bf16.msra.mxu0 %v592
    %602 = vmatprep.subr.bf16.mxu0 0
    %603 = vmatpush1.bf16.msra.mxu0 0
    %604 = vmatprep.subr.bf16.mxu0 0
    %605 = vmatpush1.bf16.msra.mxu0 0
    %606 = vmatprep.subr.bf16.mxu0 0
    %607 = vmatpush1.bf16.msra.mxu0 0
    %608 = vmatprep.subr.bf16.mxu0 0
    %609 = vmatpush1.bf16.msra.mxu0 0
    %610 = vmatprep.subr.bf16.mxu0 0
    %611 = vmatpush1.bf16.msra.mxu0 0
    %612 = vmatprep.subr.bf16.mxu0 0
    %613 = vmatpush1.bf16.msra.mxu0 0
    %614 = vmatprep.subr.bf16.mxu0 0
    %615 = vmatpush1.bf16.msra.mxu0 0
    %616 = vmatprep.subr.bf16.mxu0 0
    %617 = vmatpush1.bf16.msra.mxu0 0
    %618 = vmatprep.subr.bf16.mxu0 0
    %619 = vmatpush1.bf16.msra.mxu0 0
    %620 = vmatprep.subr.bf16.mxu0 0
    %621 = vmatpush1.bf16.msra.mxu0 0
    %622 = vmatprep.subr.bf16.mxu0 0
    %623 = vmatpush1.bf16.msra.mxu0 0
    %624 = vmatprep.subr.bf16.mxu0 0
    %625 = vmatpush1.bf16.msra.mxu0 0
    %626 = vmatprep.subr.bf16.mxu0 0
    %627 = vmatpush1.bf16.msra.mxu0 0
    %628 = vmatprep.subr.bf16.mxu0 0
    %629 = vmatpush1.bf16.msra.mxu0 0
    %630 = vmatprep.mubr.bf16.mxu0 0
    %631 = vmatmul.mubr.bf16.gmra.mrb[0].mxu0 %v596
    %v632 = vpop.f32.mrb[0].mxu0
    %v633 = vadd.f32 0.0, %v632
    %v634 = vpop.f32.mrb[0].mxu0
    %v635 = vpop.f32.mrb[0].mxu0
    %v636 = vpop.f32.mrb[0].mxu0
    %637 = vdwg.mxu0
    %v638 = vadd.f32 %v576, %v633
    %v639 = vld [vmem:[#allocation3] sm:$0xff]
    %v640 = vmul.f32 %v573, 0.5
    %v641 = vtanh.pop %v640
    %v642 = vmul.f32 %v641, 0.5
    %v643 = vadd.f32 %v642, 0.5
    %v644 = vtanh.pop %v573
    %646 = vrot.lane.b32.xlu0 %v639, 32
    %v647 = vpop.permute.xlu0 %646
    %v649 = vmul.f32 %v643, %v647
    %651 = vrot.lane.b32.xlu0 %v644, 64
    %v652 = vpop.permute.xlu0 %651
    %v654 = vmul.f32 %v643, %v652
    %656 = vrot.lane.b32.xlu0 %v654, 32
    %v657 = vpop.permute.xlu0 %656
    %v659 = vadd.f32 %v649, %v657
    %v660 = vtanh.pop %v659
    %662 = vrot.lane.b32.xlu0 %v660, 64
    %v663 = vpop.permute.xlu0 %662
    %v665 = vmul.f32 %v643, %v663
    %v666 = vld [vmem:[#allocation5] sm:$0xff]
    %v667 = vmul.f32 %v638, 0.5
    %v668 = vtanh.pop %v667
    %v669 = vmul.f32 %v668, 0.5
    %v670 = vadd.f32 %v669, 0.5
    %v671 = vtanh.pop %v638
    %673 = vrot.lane.b32.xlu0 %v666, 32
    %v674 = vpop.permute.xlu0 %673
    %v676 = vmul.f32 %v670, %v674
    %678 = vrot.lane.b32.xlu0 %v671, 64
    %v679 = vpop.permute.xlu0 %678
    %v681 = vmul.f32 %v670, %v679
    %683 = vrot.lane.b32.xlu0 %v681, 32
    %v684 = vpop.permute.xlu0 %683
    %v686 = vadd.f32 %v676, %v684
    %v687 = vtanh.pop %v686
    %689 = vrot.lane.b32.xlu0 %v687, 64
    %v690 = vpop.permute.xlu0 %689
    %v692 = vmul.f32 %v670, %v690
    %694 = vrot.lane.b32.xlu0 %v665, 32
    %v695 = vpop.permute.xlu0 %694
    %697 = vst.msk [vmem:[#allocation2] sm:$0xff] %vm114, %v695
    %699 = vrot.lane.b32.xlu0 %v659, 96
    %v700 = vpop.permute.xlu0 %699
    %702 = vst.msk [vmem:[#allocation3] sm:$0xff] %vm114, %v700
    %704 = vrot.lane.b32.xlu0 %v692, 32
    %v705 = vpop.permute.xlu0 %704
    %707 = vst.msk [vmem:[#allocation4] sm:$0xff] %vm114, %v705
    %709 = vrot.lane.b32.xlu0 %v686, 96
    %v710 = vpop.permute.xlu0 %709
    %712 = vst.msk [vmem:[#allocation5] sm:$0xff] %vm114, %v710
    %s713 = scalar_lea.vmem [#allocation14], 16
    %714 = vst.msk [vmem:[%s713] sm:$0xff] %vm114, %v695
    %s715 = scalar_lea.vmem [#allocation15], 40
    %716 = vst.msk [vmem:[%s715] sm:$0xff] %vm114, %v705
    %s717 = scalar_lea.vmem [#allocation6], 12
    %v718 = vld [vmem:[%s717] sm:$0xf]
    %v719 = vunpack.c.l.bf16 %v718
    %v720 = vld [vmem:[#allocation2] sm:$0xff]
    %v721 = vpack.c.bf16 %v720, %v720
    %v722 = vld [vmem:[#allocation11] sm:$0xf]
    %v723 = vld [vmem:[#allocation11 + $0x4] sm:$0xf]
    %v724 = vld [vmem:[#allocation11 + $0x8] sm:$0xf]
    %v725 = vld [vmem:[#allocation11 + $0xc] sm:$0xf]
    %v730 = vunpack.c.l.b16 %v722
    %v731 = vunpack.c.l.b16 %v723
    %v732 = vunpack.c.l.b16 %v724
    %v733 = vunpack.c.l.b16 %v725
    %v734 = vpack.c.b16 %v731, %v730
    %v735 = vpack.c.b16 %v733, %v732
    %v739 = vsel %vm114, %v721, 0
    %741 = vmatprep.subr.bf16.mxu0 0
    %742 = vmatpush1.bf16.msra.mxu0 %v734
    %743 = vmatprep.subr.bf16.mxu0 0
    %744 = vmatpush1.bf16.msra.mxu0 %v735
    %745 = vmatprep.subr.bf16.mxu0 0
    %746 = vmatpush1.bf16.msra.mxu0 0
    %747 = vmatprep.subr.bf16.mxu0 0
    %748 = vmatpush1.bf16.msra.mxu0 0
    %749 = vmatprep.subr.bf16.mxu0 0
    %750 = vmatpush1.bf16.msra.mxu0 0
    %751 = vmatprep.subr.bf16.mxu0 0
    %752 = vmatpush1.bf16.msra.mxu0 0
    %753 = vmatprep.subr.bf16.mxu0 0
    %754 = vmatpush1.bf16.msra.mxu0 0
    %755 = vmatprep.subr.bf16.mxu0 0
    %756 = vmatpush1.bf16.msra.mxu0 0
    %757 = vmatprep.subr.bf16.mxu0 0
    %758 = vmatpush1.bf16.msra.mxu0 0
    %759 = vmatprep.subr.bf16.mxu0 0
    %760 = vmatpush1.bf16.msra.mxu0 0
    %761 = vmatprep.subr.bf16.mxu0 0
    %762 = vmatpush1.bf16.msra.mxu0 0
    %763 = vmatprep.subr.bf16.mxu0 0
    %764 = vmatpush1.bf16.msra.mxu0 0
    %765 = vmatprep.subr.bf16.mxu0 0
    %766 = vmatpush1.bf16.msra.mxu0 0
    %767 = vmatprep.subr.bf16.mxu0 0
    %768 = vmatpush1.bf16.msra.mxu0 0
    %769 = vmatprep.subr.bf16.mxu0 0
    %770 = vmatpush1.bf16.msra.mxu0 0
    %771 = vmatprep.subr.bf16.mxu0 0
    %772 = vmatpush1.bf16.msra.mxu0 0
    %773 = vmatprep.mubr.bf16.mxu0 0
    %774 = vmatmul.mubr.bf16.gmra.mrb[0].mxu0 %v739
    %v775 = vpop.f32.mrb[0].mxu0
    %v776 = vadd.f32 0.0, %v775
    %v777 = vpop.f32.mrb[0].mxu0
    %v778 = vpop.f32.mrb[0].mxu0
    %v779 = vpop.f32.mrb[0].mxu0
    %780 = vdwg.mxu0
    %v781 = vadd.f32 %v719, %v776
    %s782 = scalar_lea.vmem [#allocation9], 16
    %v783 = vld [vmem:[%s782] sm:$0xf]
    %v784 = vunpack.c.l.bf16 %v783
    %v785 = vld [vmem:[#allocation4] sm:$0xff]
    %v786 = vpack.c.bf16 %v785, %v785
    %v787 = vld [vmem:[#allocation12] sm:$0xf]
    %v788 = vld [vmem:[#allocation12 + $0x4] sm:$0xf]
    %v789 = vld [vmem:[#allocation12 + $0x8] sm:$0xf]
    %v790 = vld [vmem:[#allocation12 + $0xc] sm:$0xf]
    %v795 = vunpack.c.l.b16 %v787
    %v796 = vunpack.c.l.b16 %v788
    %v797 = vunpack.c.l.b16 %v789
    %v798 = vunpack.c.l.b16 %v790
    %v799 = vpack.c.b16 %v796, %v795
    %v800 = vpack.c.b16 %v798, %v797
    %v804 = vsel %vm114, %v786, 0
    %806 = vmatprep.subr.bf16.mxu0 0
    %807 = vmatpush1.bf16.msra.mxu0 %v799
    %808 = vmatprep.subr.bf16.mxu0 0
    %809 = vmatpush1.bf16.msra.mxu0 %v800
    %810 = vmatprep.subr.bf16.mxu0 0
    %811 = vmatpush1.bf16.msra.mxu0 0
    %812 = vmatprep.subr.bf16.mxu0 0
    %813 = vmatpush1.bf16.msra.mxu0 0
    %814 = vmatprep.subr.bf16.mxu0 0
    %815 = vmatpush1.bf16.msra.mxu0 0
    %816 = vmatprep.subr.bf16.mxu0 0
    %817 = vmatpush1.bf16.msra.mxu0 0
    %818 = vmatprep.subr.bf16.mxu0 0
    %819 = vmatpush1.bf16.msra.mxu0 0
    %820 = vmatprep.subr.bf16.mxu0 0
    %821 = vmatpush1.bf16.msra.mxu0 0
    %822 = vmatprep.subr.bf16.mxu0 0
    %823 = vmatpush1.bf16.msra.mxu0 0
    %824 = vmatprep.subr.bf16.mxu0 0
    %825 = vmatpush1.bf16.msra.mxu0 0
    %826 = vmatprep.subr.bf16.mxu0 0
    %827 = vmatpush1.bf16.msra.mxu0 0
    %828 = vmatprep.subr.bf16.mxu0 0
    %829 = vmatpush1.bf16.msra.mxu0 0
    %830 = vmatprep.subr.bf16.mxu0 0
    %831 = vmatpush1.bf16.msra.mxu0 0
    %832 = vmatprep.subr.bf16.mxu0 0
    %833 = vmatpush1.bf16.msra.mxu0 0
    %834 = vmatprep.subr.bf16.mxu0 0
    %835 = vmatpush1.bf16.msra.mxu0 0
    %836 = vmatprep.subr.bf16.mxu0 0
    %837 = vmatpush1.bf16.msra.mxu0 0
    %838 = vmatprep.mubr.bf16.mxu0 0
    %839 = vmatmul.mubr.bf16.gmra.mrb[0].mxu0 %v804
    %v840 = vpop.f32.mrb[0].mxu0
    %v841 = vadd.f32 0.0, %v840
    %v842 = vpop.f32.mrb[0].mxu0
    %v843 = vpop.f32.mrb[0].mxu0
    %v844 = vpop.f32.mrb[0].mxu0
    %845 = vdwg.mxu0
    %v846 = vadd.f32 %v784, %v841
    %v847 = vld [vmem:[#allocation3] sm:$0xff]
    %v848 = vmul.f32 %v781, 0.5
    %v849 = vtanh.pop %v848
    %v850 = vmul.f32 %v849, 0.5
    %v851 = vadd.f32 %v850, 0.5
    %v852 = vtanh.pop %v781
    %854 = vrot.lane.b32.xlu0 %v847, 32
    %v855 = vpop.permute.xlu0 %854
    %v857 = vmul.f32 %v851, %v855
    %859 = vrot.lane.b32.xlu0 %v852, 64
    %v860 = vpop.permute.xlu0 %859
    %v862 = vmul.f32 %v851, %v860
    %864 = vrot.lane.b32.xlu0 %v862, 32
    %v865 = vpop.permute.xlu0 %864
    %v867 = vadd.f32 %v857, %v865
    %v868 = vtanh.pop %v867
    %870 = vrot.lane.b32.xlu0 %v868, 64
    %v871 = vpop.permute.xlu0 %870
    %v873 = vmul.f32 %v851, %v871
    %v874 = vld [vmem:[#allocation5] sm:$0xff]
    %v875 = vmul.f32 %v846, 0.5
    %v876 = vtanh.pop %v875
    %v877 = vmul.f32 %v876, 0.5
    %v878 = vadd.f32 %v877, 0.5
    %v879 = vtanh.pop %v846
    %881 = vrot.lane.b32.xlu0 %v874, 32
    %v882 = vpop.permute.xlu0 %881
    %v884 = vmul.f32 %v878, %v882
    %886 = vrot.lane.b32.xlu0 %v879, 64
    %v887 = vpop.permute.xlu0 %886
    %v889 = vmul.f32 %v878, %v887
    %891 = vrot.lane.b32.xlu0 %v889, 32
    %v892 = vpop.permute.xlu0 %891
    %v894 = vadd.f32 %v884, %v892
    %v895 = vtanh.pop %v894
    %897 = vrot.lane.b32.xlu0 %v895, 64
    %v898 = vpop.permute.xlu0 %897
    %v900 = vmul.f32 %v878, %v898
    %902 = vrot.lane.b32.xlu0 %v873, 32
    %v903 = vpop.permute.xlu0 %902
    %905 = vst.msk [vmem:[#allocation2] sm:$0xff] %vm114, %v903
    %907 = vrot.lane.b32.xlu0 %v867, 96
    %v908 = vpop.permute.xlu0 %907
    %910 = vst.msk [vmem:[#allocation3] sm:$0xff] %vm114, %v908
    %912 = vrot.lane.b32.xlu0 %v900, 32
    %v913 = vpop.permute.xlu0 %912
    %915 = vst.msk [vmem:[#allocation4] sm:$0xff] %vm114, %v913
    %917 = vrot.lane.b32.xlu0 %v894, 96
    %v918 = vpop.permute.xlu0 %917
    %920 = vst.msk [vmem:[#allocation5] sm:$0xff] %vm114, %v918
    %s921 = scalar_lea.vmem [#allocation14], 24
    %922 = vst.msk [vmem:[%s921] sm:$0xff] %vm114, %v903
    %s923 = scalar_lea.vmem [#allocation15], 32
    %924 = vst.msk [vmem:[%s923] sm:$0xff] %vm114, %v913
    %s925 = scalar_lea.vmem [#allocation6], 16
    %v926 = vld [vmem:[%s925] sm:$0xf]
    %v927 = vunpack.c.l.bf16 %v926
    %v928 = vld [vmem:[#allocation2] sm:$0xff]
    %v929 = vpack.c.bf16 %v928, %v928
    %v930 = vld [vmem:[#allocation11] sm:$0xf]
    %v931 = vld [vmem:[#allocation11 + $0x4] sm:$0xf]
    %v932 = vld [vmem:[#allocation11 + $0x8] sm:$0xf]
    %v933 = vld [vmem:[#allocation11 + $0xc] sm:$0xf]
    %v938 = vunpack.c.l.b16 %v930
    %v939 = vunpack.c.l.b16 %v931
    %v940 = vunpack.c.l.b16 %v932
    %v941 = vunpack.c.l.b16 %v933
    %v942 = vpack.c.b16 %v939, %v938
    %v943 = vpack.c.b16 %v941, %v940
    %v947 = vsel %vm114, %v929, 0
    %949 = vmatprep.subr.bf16.mxu0 0
    %950 = vmatpush1.bf16.msra.mxu0 %v942
    %951 = vmatprep.subr.bf16.mxu0 0
    %952 = vmatpush1.bf16.msra.mxu0 %v943
    %953 = vmatprep.subr.bf16.mxu0 0
    %954 = vmatpush1.bf16.msra.mxu0 0
    %955 = vmatprep.subr.bf16.mxu0 0
    %956 = vmatpush1.bf16.msra.mxu0 0
    %957 = vmatprep.subr.bf16.mxu0 0
    %958 = vmatpush1.bf16.msra.mxu0 0
    %959 = vmatprep.subr.bf16.mxu0 0
    %960 = vmatpush1.bf16.msra.mxu0 0
    %961 = vmatprep.subr.bf16.mxu0 0
    %962 = vmatpush1.bf16.msra.mxu0 0
    %963 = vmatprep.subr.bf16.mxu0 0
    %964 = vmatpush1.bf16.msra.mxu0 0
    %965 = vmatprep.subr.bf16.mxu0 0
    %966 = vmatpush1.bf16.msra.mxu0 0
    %967 = vmatprep.subr.bf16.mxu0 0
    %968 = vmatpush1.bf16.msra.mxu0 0
    %969 = vmatprep.subr.bf16.mxu0 0
    %970 = vmatpush1.bf16.msra.mxu0 0
    %971 = vmatprep.subr.bf16.mxu0 0
    %972 = vmatpush1.bf16.msra.mxu0 0
    %973 = vmatprep.subr.bf16.mxu0 0
    %974 = vmatpush1.bf16.msra.mxu0 0
    %975 = vmatprep.subr.bf16.mxu0 0
    %976 = vmatpush1.bf16.msra.mxu0 0
    %977 = vmatprep.subr.bf16.mxu0 0
    %978 = vmatpush1.bf16.msra.mxu0 0
    %979 = vmatprep.subr.bf16.mxu0 0
    %980 = vmatpush1.bf16.msra.mxu0 0
    %981 = vmatprep.mubr.bf16.mxu0 0
    %982 = vmatmul.mubr.bf16.gmra.mrb[0].mxu0 %v947
    %v983 = vpop.f32.mrb[0].mxu0
    %v984 = vadd.f32 0.0, %v983
    %v985 = vpop.f32.mrb[0].mxu0
    %v986 = vpop.f32.mrb[0].mxu0
    %v987 = vpop.f32.mrb[0].mxu0
    %988 = vdwg.mxu0
    %v989 = vadd.f32 %v927, %v984
    %s990 = scalar_lea.vmem [#allocation9], 12
    %v991 = vld [vmem:[%s990] sm:$0xf]
    %v992 = vunpack.c.l.bf16 %v991
    %v993 = vld [vmem:[#allocation4] sm:$0xff]
    %v994 = vpack.c.bf16 %v993, %v993
    %v995 = vld [vmem:[#allocation12] sm:$0xf]
    %v996 = vld [vmem:[#allocation12 + $0x4] sm:$0xf]
    %v997 = vld [vmem:[#allocation12 + $0x8] sm:$0xf]
    %v998 = vld [vmem:[#allocation12 + $0xc] sm:$0xf]
    %v1003 = vunpack.c.l.b16 %v995
    %v1004 = vunpack.c.l.b16 %v996
    %v1005 = vunpack.c.l.b16 %v997
    %v1006 = vunpack.c.l.b16 %v998
    %v1007 = vpack.c.b16 %v1004, %v1003
    %v1008 = vpack.c.b16 %v1006, %v1005
    %v1012 = vsel %vm114, %v994, 0
    %1014 = vmatprep.subr.bf16.mxu0 0
    %1015 = vmatpush1.bf16.msra.mxu0 %v1007
    %1016 = vmatprep.subr.bf16.mxu0 0
    %1017 = vmatpush1.bf16.msra.mxu0 %v1008
    %1018 = vmatprep.subr.bf16.mxu0 0
    %1019 = vmatpush1.bf16.msra.mxu0 0
    %1020 = vmatprep.subr.bf16.mxu0 0
    %1021 = vmatpush1.bf16.msra.mxu0 0
    %1022 = vmatprep.subr.bf16.mxu0 0
    %1023 = vmatpush1.bf16.msra.mxu0 0
    %1024 = vmatprep.subr.bf16.mxu0 0
    %1025 = vmatpush1.bf16.msra.mxu0 0
    %1026 = vmatprep.subr.bf16.mxu0 0
    %1027 = vmatpush1.bf16.msra.mxu0 0
    %1028 = vmatprep.subr.bf16.mxu0 0
    %1029 = vmatpush1.bf16.msra.mxu0 0
    %1030 = vmatprep.subr.bf16.mxu0 0
    %1031 = vmatpush1.bf16.msra.mxu0 0
    %1032 = vmatprep.subr.bf16.mxu0 0
    %1033 = vmatpush1.bf16.msra.mxu0 0
    %1034 = vmatprep.subr.bf16.mxu0 0
    %1035 = vmatpush1.bf16.msra.mxu0 0
    %1036 = vmatprep.subr.bf16.mxu0 0
    %1037 = vmatpush1.bf16.msra.mxu0 0
    %1038 = vmatprep.subr.bf16.mxu0 0
    %1039 = vmatpush1.bf16.msra.mxu0 0
    %1040 = vmatprep.subr.bf16.mxu0 0
    %1041 = vmatpush1.bf16.msra.mxu0 0
    %1042 = vmatprep.subr.bf16.mxu0 0
    %1043 = vmatpush1.bf16.msra.mxu0 0
    %1044 = vmatprep.subr.bf16.mxu0 0
    %1045 = vmatpush1.bf16.msra.mxu0 0
    %1046 = vmatprep.mubr.bf16.mxu0 0
    %1047 = vmatmul.mubr.bf16.gmra.mrb[0].mxu0 %v1012
    %v1048 = vpop.f32.mrb[0].mxu0
    %v1049 = vadd.f32 0.0, %v1048
    %v1050 = vpop.f32.mrb[0].mxu0
    %v1051 = vpop.f32.mrb[0].mxu0
    %v1052 = vpop.f32.mrb[0].mxu0
    %1053 = vdwg.mxu0
    %v1054 = vadd.f32 %v992, %v1049
    %v1055 = vld [vmem:[#allocation3] sm:$0xff]
    %v1056 = vmul.f32 %v989, 0.5
    %v1057 = vtanh.pop %v1056
    %v1058 = vmul.f32 %v1057, 0.5
    %v1059 = vadd.f32 %v1058, 0.5
    %v1060 = vtanh.pop %v989
    %1062 = vrot.lane.b32.xlu0 %v1055, 32
    %v1063 = vpop.permute.xlu0 %1062
    %v1065 = vmul.f32 %v1059, %v1063
    %1067 = vrot.lane.b32.xlu0 %v1060, 64
    %v1068 = vpop.permute.xlu0 %1067
    %v1070 = vmul.f32 %v1059, %v1068
    %1072 = vrot.lane.b32.xlu0 %v1070, 32
    %v1073 = vpop.permute.xlu0 %1072
    %v1075 = vadd.f32 %v1065, %v1073
    %v1076 = vtanh.pop %v1075
    %1078 = vrot.lane.b32.xlu0 %v1076, 64
    %v1079 = vpop.permute.xlu0 %1078
    %v1081 = vmul.f32 %v1059, %v1079
    %v1082 = vld [vmem:[#allocation5] sm:$0xff]
    %v1083 = vmul.f32 %v1054, 0.5
    %v1084 = vtanh.pop %v1083
    %v1085 = vmul.f32 %v1084, 0.5
    %v1086 = vadd.f32 %v1085, 0.5
    %v1087 = vtanh.pop %v1054
    %1089 = vrot.lane.b32.xlu0 %v1082, 32
    %v1090 = vpop.permute.xlu0 %1089
    %v1092 = vmul.f32 %v1086, %v1090
    %1094 = vrot.lane.b32.xlu0 %v1087, 64
    %v1095 = vpop.permute.xlu0 %1094
    %v1097 = vmul.f32 %v1086, %v1095
    %1099 = vrot.lane.b32.xlu0 %v1097, 32
    %v1100 = vpop.permute.xlu0 %1099
    %v1102 = vadd.f32 %v1092, %v1100
    %v1103 = vtanh.pop %v1102
    %1105 = vrot.lane.b32.xlu0 %v1103, 64
    %v1106 = vpop.permute.xlu0 %1105
    %v1108 = vmul.f32 %v1086, %v1106
    %1110 = vrot.lane.b32.xlu0 %v1081, 32
    %v1111 = vpop.permute.xlu0 %1110
    %1113 = vst.msk [vmem:[#allocation2] sm:$0xff] %vm114, %v1111
    %1115 = vrot.lane.b32.xlu0 %v1075, 96
    %v1116 = vpop.permute.xlu0 %1115
    %1118 = vst.msk [vmem:[#allocation3] sm:$0xff] %vm114, %v1116
    %1120 = vrot.lane.b32.xlu0 %v1108, 32
    %v1121 = vpop.permute.xlu0 %1120
    %1123 = vst.msk [vmem:[#allocation4] sm:$0xff] %vm114, %v1121
    %1125 = vrot.lane.b32.xlu0 %v1102, 96
    %v1126 = vpop.permute.xlu0 %1125
    %1128 = vst.msk [vmem:[#allocation5] sm:$0xff] %vm114, %v1126
    %s1129 = scalar_lea.vmem [#allocation14], 32
    %1130 = vst.msk [vmem:[%s1129] sm:$0xff] %vm114, %v1111
    %s1131 = scalar_lea.vmem [#allocation15], 24
    %1132 = vst.msk [vmem:[%s1131] sm:$0xff] %vm114, %v1121
    %s1133 = scalar_lea.vmem [#allocation6], 20
    %v1134 = vld [vmem:[%s1133] sm:$0xf]
    %v1135 = vunpack.c.l.bf16 %v1134
    %v1136 = vld [vmem:[#allocation2] sm:$0xff]
    %v1137 = vpack.c.bf16 %v1136, %v1136
    %v1138 = vld [vmem:[#allocation11] sm:$0xf]
    %v1139 = vld [vmem:[#allocation11 + $0x4] sm:$0xf]
    %v1140 = vld [vmem:[#allocation11 + $0x8] sm:$0xf]
    %v1141 = vld [vmem:[#allocation11 + $0xc] sm:$0xf]
    %v1146 = vunpack.c.l.b16 %v1138
    %v1147 = vunpack.c.l.b16 %v1139
    %v1148 = vunpack.c.l.b16 %v1140
    %v1149 = vunpack.c.l.b16 %v1141
    %v1150 = vpack.c.b16 %v1147, %v1146
    %v1151 = vpack.c.b16 %v1149, %v1148
    %v1155 = vsel %vm114, %v1137, 0
    %1157 = vmatprep.subr.bf16.mxu0 0
    %1158 = vmatpush1.bf16.msra.mxu0 %v1150
    %1159 = vmatprep.subr.bf16.mxu0 0
    %1160 = vmatpush1.bf16.msra.mxu0 %v1151
    %1161 = vmatprep.subr.bf16.mxu0 0
    %1162 = vmatpush1.bf16.msra.mxu0 0
    %1163 = vmatprep.subr.bf16.mxu0 0
    %1164 = vmatpush1.bf16.msra.mxu0 0
    %1165 = vmatprep.subr.bf16.mxu0 0
    %1166 = vmatpush1.bf16.msra.mxu0 0
    %1167 = vmatprep.subr.bf16.mxu0 0
    %1168 = vmatpush1.bf16.msra.mxu0 0
    %1169 = vmatprep.subr.bf16.mxu0 0
    %1170 = vmatpush1.bf16.msra.mxu0 0
    %1171 = vmatprep.subr.bf16.mxu0 0
    %1172 = vmatpush1.bf16.msra.mxu0 0
    %1173 = vmatprep.subr.bf16.mxu0 0
    %1174 = vmatpush1.bf16.msra.mxu0 0
    %1175 = vmatprep.subr.bf16.mxu0 0
    %1176 = vmatpush1.bf16.msra.mxu0 0
    %1177 = vmatprep.subr.bf16.mxu0 0
    %1178 = vmatpush1.bf16.msra.mxu0 0
    %1179 = vmatprep.subr.bf16.mxu0 0
    %1180 = vmatpush1.bf16.msra.mxu0 0
    %1181 = vmatprep.subr.bf16.mxu0 0
    %1182 = vmatpush1.bf16.msra.mxu0 0
    %1183 = vmatprep.subr.bf16.mxu0 0
    %1184 = vmatpush1.bf16.msra.mxu0 0
    %1185 = vmatprep.subr.bf16.mxu0 0
    %1186 = vmatpush1.bf16.msra.mxu0 0
    %1187 = vmatprep.subr.bf16.mxu0 0
    %1188 = vmatpush1.bf16.msra.mxu0 0
    %1189 = vmatprep.mubr.bf16.mxu0 0
    %1190 = vmatmul.mubr.bf16.gmra.mrb[0].mxu0 %v1155
    %v1191 = vpop.f32.mrb[0].mxu0
    %v1192 = vadd.f32 0.0, %v1191
    %v1193 = vpop.f32.mrb[0].mxu0
    %v1194 = vpop.f32.mrb[0].mxu0
    %v1195 = vpop.f32.mrb[0].mxu0
    %1196 = vdwg.mxu0
    %v1197 = vadd.f32 %v1135, %v1192
    %s1198 = scalar_lea.vmem [#allocation9], 8
    %v1199 = vld [vmem:[%s1198] sm:$0xf]
    %v1200 = vunpack.c.l.bf16 %v1199
    %v1201 = vld [vmem:[#allocation4] sm:$0xff]
    %v1202 = vpack.c.bf16 %v1201, %v1201
    %v1203 = vld [vmem:[#allocation12] sm:$0xf]
    %v1204 = vld [vmem:[#allocation12 + $0x4] sm:$0xf]
    %v1205 = vld [vmem:[#allocation12 + $0x8] sm:$0xf]
    %v1206 = vld [vmem:[#allocation12 + $0xc] sm:$0xf]
    %v1211 = vunpack.c.l.b16 %v1203
    %v1212 = vunpack.c.l.b16 %v1204
    %v1213 = vunpack.c.l.b16 %v1205
    %v1214 = vunpack.c.l.b16 %v1206
    %v1215 = vpack.c.b16 %v1212, %v1211
    %v1216 = vpack.c.b16 %v1214, %v1213
    %v1220 = vsel %vm114, %v1202, 0
    %1222 = vmatprep.subr.bf16.mxu0 0
    %1223 = vmatpush1.bf16.msra.mxu0 %v1215
    %1224 = vmatprep.subr.bf16.mxu0 0
    %1225 = vmatpush1.bf16.msra.mxu0 %v1216
    %1226 = vmatprep.subr.bf16.mxu0 0
    %1227 = vmatpush1.bf16.msra.mxu0 0
    %1228 = vmatprep.subr.bf16.mxu0 0
    %1229 = vmatpush1.bf16.msra.mxu0 0
    %1230 = vmatprep.subr.bf16.mxu0 0
    %1231 = vmatpush1.bf16.msra.mxu0 0
    %1232 = vmatprep.subr.bf16.mxu0 0
    %1233 = vmatpush1.bf16.msra.mxu0 0
    %1234 = vmatprep.subr.bf16.mxu0 0
    %1235 = vmatpush1.bf16.msra.mxu0 0
    %1236 = vmatprep.subr.bf16.mxu0 0
    %1237 = vmatpush1.bf16.msra.mxu0 0
    %1238 = vmatprep.subr.bf16.mxu0 0
    %1239 = vmatpush1.bf16.msra.mxu0 0
    %1240 = vmatprep.subr.bf16.mxu0 0
    %1241 = vmatpush1.bf16.msra.mxu0 0
    %1242 = vmatprep.subr.bf16.mxu0 0
    %1243 = vmatpush1.bf16.msra.mxu0 0
    %1244 = vmatprep.subr.bf16.mxu0 0
    %1245 = vmatpush1.bf16.msra.mxu0 0
    %1246 = vmatprep.subr.bf16.mxu0 0
    %1247 = vmatpush1.bf16.msra.mxu0 0
    %1248 = vmatprep.subr.bf16.mxu0 0
    %1249 = vmatpush1.bf16.msra.mxu0 0
    %1250 = vmatprep.subr.bf16.mxu0 0
    %1251 = vmatpush1.bf16.msra.mxu0 0
    %1252 = vmatprep.subr.bf16.mxu0 0
    %1253 = vmatpush1.bf16.msra.mxu0 0
    %1254 = vmatprep.mubr.bf16.mxu0 0
    %1255 = vmatmul.mubr.bf16.gmra.mrb[0].mxu0 %v1220
    %v1256 = vpop.f32.mrb[0].mxu0
    %v1257 = vadd.f32 0.0, %v1256
    %v1258 = vpop.f32.mrb[0].mxu0
    %v1259 = vpop.f32.mrb[0].mxu0
    %v1260 = vpop.f32.mrb[0].mxu0
    %1261 = vdwg.mxu0
    %v1262 = vadd.f32 %v1200, %v1257
    %v1263 = vld [vmem:[#allocation3] sm:$0xff]
    %v1264 = vmul.f32 %v1197, 0.5
    %v1265 = vtanh.pop %v1264
    %v1266 = vmul.f32 %v1265, 0.5
    %v1267 = vadd.f32 %v1266, 0.5
    %v1268 = vtanh.pop %v1197
    %1270 = vrot.lane.b32.xlu0 %v1263, 32
    %v1271 = vpop.permute.xlu0 %1270
    %v1273 = vmul.f32 %v1267, %v1271
    %1275 = vrot.lane.b32.xlu0 %v1268, 64
    %v1276 = vpop.permute.xlu0 %1275
    %v1278 = vmul.f32 %v1267, %v1276
    %1280 = vrot.lane.b32.xlu0 %v1278, 32
    %v1281 = vpop.permute.xlu0 %1280
    %v1283 = vadd.f32 %v1273, %v1281
    %v1284 = vtanh.pop %v1283
    %1286 = vrot.lane.b32.xlu0 %v1284, 64
    %v1287 = vpop.permute.xlu0 %1286
    %v1289 = vmul.f32 %v1267, %v1287
    %v1290 = vld [vmem:[#allocation5] sm:$0xff]
    %v1291 = vmul.f32 %v1262, 0.5
    %v1292 = vtanh.pop %v1291
    %v1293 = vmul.f32 %v1292, 0.5
    %v1294 = vadd.f32 %v1293, 0.5
    %v1295 = vtanh.pop %v1262
    %1297 = vrot.lane.b32.xlu0 %v1290, 32
    %v1298 = vpop.permute.xlu0 %1297
    %v1300 = vmul.f32 %v1294, %v1298
    %1302 = vrot.lane.b32.xlu0 %v1295, 64
    %v1303 = vpop.permute.xlu0 %1302
    %v1305 = vmul.f32 %v1294, %v1303
    %1307 = vrot.lane.b32.xlu0 %v1305, 32
    %v1308 = vpop.permute.xlu0 %1307
    %v1310 = vadd.f32 %v1300, %v1308
    %v1311 = vtanh.pop %v1310
    %1313 = vrot.lane.b32.xlu0 %v1311, 64
    %v1314 = vpop.permute.xlu0 %1313
    %v1316 = vmul.f32 %v1294, %v1314
    %1318 = vrot.lane.b32.xlu0 %v1289, 32
    %v1319 = vpop.permute.xlu0 %1318
    %1321 = vst.msk [vmem:[#allocation2] sm:$0xff] %vm114, %v1319
    %1323 = vrot.lane.b32.xlu0 %v1283, 96
    %v1324 = vpop.permute.xlu0 %1323
    %1326 = vst.msk [vmem:[#allocation3] sm:$0xff] %vm114, %v1324
    %1328 = vrot.lane.b32.xlu0 %v1316, 32
    %v1329 = vpop.permute.xlu0 %1328
    %1331 = vst.msk [vmem:[#allocation4] sm:$0xff] %vm114, %v1329
    %1333 = vrot.lane.b32.xlu0 %v1310, 96
    %v1334 = vpop.permute.xlu0 %1333
    %1336 = vst.msk [vmem:[#allocation5] sm:$0xff] %vm114, %v1334
    %s1337 = scalar_lea.vmem [#allocation14], 40
    %1338 = vst.msk [vmem:[%s1337] sm:$0xff] %vm114, %v1319
    %s1339 = scalar_lea.vmem [#allocation15], 16
    %1340 = vst.msk [vmem:[%s1339] sm:$0xff] %vm114, %v1329
    %s1341 = scalar_lea.vmem [#allocation6], 24
    %v1342 = vld [vmem:[%s1341] sm:$0xf]
    %v1343 = vunpack.c.l.bf16 %v1342
    %v1344 = vld [vmem:[#allocation2] sm:$0xff]
    %v1345 = vpack.c.bf16 %v1344, %v1344
    %v1346 = vld [vmem:[#allocation11] sm:$0xf]
    %v1347 = vld [vmem:[#allocation11 + $0x4] sm:$0xf]
    %v1348 = vld [vmem:[#allocation11 + $0x8] sm:$0xf]
    %v1349 = vld [vmem:[#allocation11 + $0xc] sm:$0xf]
    %v1354 = vunpack.c.l.b16 %v1346
    %v1355 = vunpack.c.l.b16 %v1347
    %v1356 = vunpack.c.l.b16 %v1348
    %v1357 = vunpack.c.l.b16 %v1349
    %v1358 = vpack.c.b16 %v1355, %v1354
    %v1359 = vpack.c.b16 %v1357, %v1356
    %v1363 = vsel %vm114, %v1345, 0
    %1365 = vmatprep.subr.bf16.mxu0 0
    %1366 = vmatpush1.bf16.msra.mxu0 %v1358
    %1367 = vmatprep.subr.bf16.mxu0 0
    %1368 = vmatpush1.bf16.msra.mxu0 %v1359
    %1369 = vmatprep.subr.bf16.mxu0 0
    %1370 = vmatpush1.bf16.msra.mxu0 0
    %1371 = vmatprep.subr.bf16.mxu0 0
    %1372 = vmatpush1.bf16.msra.mxu0 0
    %1373 = vmatprep.subr.bf16.mxu0 0
    %1374 = vmatpush1.bf16.msra.mxu0 0
    %1375 = vmatprep.subr.bf16.mxu0 0
    %1376 = vmatpush1.bf16.msra.mxu0 0
    %1377 = vmatprep.subr.bf16.mxu0 0
    %1378 = vmatpush1.bf16.msra.mxu0 0
    %1379 = vmatprep.subr.bf16.mxu0 0
    %1380 = vmatpush1.bf16.msra.mxu0 0
    %1381 = vmatprep.subr.bf16.mxu0 0
    %1382 = vmatpush1.bf16.msra.mxu0 0
    %1383 = vmatprep.subr.bf16.mxu0 0
    %1384 = vmatpush1.bf16.msra.mxu0 0
    %1385 = vmatprep.subr.bf16.mxu0 0
    %1386 = vmatpush1.bf16.msra.mxu0 0
    %1387 = vmatprep.subr.bf16.mxu0 0
    %1388 = vmatpush1.bf16.msra.mxu0 0
    %1389 = vmatprep.subr.bf16.mxu0 0
    %1390 = vmatpush1.bf16.msra.mxu0 0
    %1391 = vmatprep.subr.bf16.mxu0 0
    %1392 = vmatpush1.bf16.msra.mxu0 0
    %1393 = vmatprep.subr.bf16.mxu0 0
    %1394 = vmatpush1.bf16.msra.mxu0 0
    %1395 = vmatprep.subr.bf16.mxu0 0
    %1396 = vmatpush1.bf16.msra.mxu0 0
    %1397 = vmatprep.mubr.bf16.mxu0 0
    %1398 = vmatmul.mubr.bf16.gmra.mrb[0].mxu0 %v1363
    %v1399 = vpop.f32.mrb[0].mxu0
    %v1400 = vadd.f32 0.0, %v1399
    %v1401 = vpop.f32.mrb[0].mxu0
    %v1402 = vpop.f32.mrb[0].mxu0
    %v1403 = vpop.f32.mrb[0].mxu0
    %1404 = vdwg.mxu0
    %v1405 = vadd.f32 %v1343, %v1400
    %s1406 = scalar_lea.vmem [#allocation9], 4
    %v1407 = vld [vmem:[%s1406] sm:$0xf]
    %v1408 = vunpack.c.l.bf16 %v1407
    %v1409 = vld [vmem:[#allocation4] sm:$0xff]
    %v1410 = vpack.c.bf16 %v1409, %v1409
    %v1411 = vld [vmem:[#allocation12] sm:$0xf]
    %v1412 = vld [vmem:[#allocation12 + $0x4] sm:$0xf]
    %v1413 = vld [vmem:[#allocation12 + $0x8] sm:$0xf]
    %v1414 = vld [vmem:[#allocation12 + $0xc] sm:$0xf]
    %v1419 = vunpack.c.l.b16 %v1411
    %v1420 = vunpack.c.l.b16 %v1412
    %v1421 = vunpack.c.l.b16 %v1413
    %v1422 = vunpack.c.l.b16 %v1414
    %v1423 = vpack.c.b16 %v1420, %v1419
    %v1424 = vpack.c.b16 %v1422, %v1421
    %v1428 = vsel %vm114, %v1410, 0
    %1430 = vmatprep.subr.bf16.mxu0 0
    %1431 = vmatpush1.bf16.msra.mxu0 %v1423
    %1432 = vmatprep.subr.bf16.mxu0 0
    %1433 = vmatpush1.bf16.msra.mxu0 %v1424
    %1434 = vmatprep.subr.bf16.mxu0 0
    %1435 = vmatpush1.bf16.msra.mxu0 0
    %1436 = vmatprep.subr.bf16.mxu0 0
    %1437 = vmatpush1.bf16.msra.mxu0 0
    %1438 = vmatprep.subr.bf16.mxu0 0
    %1439 = vmatpush1.bf16.msra.mxu0 0
    %1440 = vmatprep.subr.bf16.mxu0 0
    %1441 = vmatpush1.bf16.msra.mxu0 0
    %1442 = vmatprep.subr.bf16.mxu0 0
    %1443 = vmatpush1.bf16.msra.mxu0 0
    %1444 = vmatprep.subr.bf16.mxu0 0
    %1445 = vmatpush1.bf16.msra.mxu0 0
    %1446 = vmatprep.subr.bf16.mxu0 0
    %1447 = vmatpush1.bf16.msra.mxu0 0
    %1448 = vmatprep.subr.bf16.mxu0 0
    %1449 = vmatpush1.bf16.msra.mxu0 0
    %1450 = vmatprep.subr.bf16.mxu0 0
    %1451 = vmatpush1.bf16.msra.mxu0 0
    %1452 = vmatprep.subr.bf16.mxu0 0
    %1453 = vmatpush1.bf16.msra.mxu0 0
    %1454 = vmatprep.subr.bf16.mxu0 0
    %1455 = vmatpush1.bf16.msra.mxu0 0
    %1456 = vmatprep.subr.bf16.mxu0 0
    %1457 = vmatpush1.bf16.msra.mxu0 0
    %1458 = vmatprep.subr.bf16.mxu0 0
    %1459 = vmatpush1.bf16.msra.mxu0 0
    %1460 = vmatprep.subr.bf16.mxu0 0
    %1461 = vmatpush1.bf16.msra.mxu0 0
    %1462 = vmatprep.mubr.bf16.mxu0 0
    %1463 = vmatmul.mubr.bf16.gmra.mrb[0].mxu0 %v1428
    %v1464 = vpop.f32.mrb[0].mxu0
    %v1465 = vadd.f32 0.0, %v1464
    %v1466 = vpop.f32.mrb[0].mxu0
    %v1467 = vpop.f32.mrb[0].mxu0
    %v1468 = vpop.f32.mrb[0].mxu0
    %1469 = vdwg.mxu0
    %v1470 = vadd.f32 %v1408, %v1465
    %v1471 = vld [vmem:[#allocation3] sm:$0xff]
    %v1472 = vmul.f32 %v1405, 0.5
    %v1473 = vtanh.pop %v1472
    %v1474 = vmul.f32 %v1473, 0.5
    %v1475 = vadd.f32 %v1474, 0.5
    %v1476 = vtanh.pop %v1405
    %1478 = vrot.lane.b32.xlu0 %v1471, 32
    %v1479 = vpop.permute.xlu0 %1478
    %v1481 = vmul.f32 %v1475, %v1479
    %1483 = vrot.lane.b32.xlu0 %v1476, 64
    %v1484 = vpop.permute.xlu0 %1483
    %v1486 = vmul.f32 %v1475, %v1484
    %1488 = vrot.lane.b32.xlu0 %v1486, 32
    %v1489 = vpop.permute.xlu0 %1488
    %v1491 = vadd.f32 %v1481, %v1489
    %v1492 = vtanh.pop %v1491
    %1494 = vrot.lane.b32.xlu0 %v1492, 64
    %v1495 = vpop.permute.xlu0 %1494
    %v1497 = vmul.f32 %v1475, %v1495
    %v1498 = vld [vmem:[#allocation5] sm:$0xff]
    %v1499 = vmul.f32 %v1470, 0.5
    %v1500 = vtanh.pop %v1499
    %v1501 = vmul.f32 %v1500, 0.5
    %v1502 = vadd.f32 %v1501, 0.5
    %v1503 = vtanh.pop %v1470
    %1505 = vrot.lane.b32.xlu0 %v1498, 32
    %v1506 = vpop.permute.xlu0 %1505
    %v1508 = vmul.f32 %v1502, %v1506
    %1510 = vrot.lane.b32.xlu0 %v1503, 64
    %v1511 = vpop.permute.xlu0 %1510
    %v1513 = vmul.f32 %v1502, %v1511
    %1515 = vrot.lane.b32.xlu0 %v1513, 32
    %v1516 = vpop.permute.xlu0 %1515
    %v1518 = vadd.f32 %v1508, %v1516
    %v1519 = vtanh.pop %v1518
    %1521 = vrot.lane.b32.xlu0 %v1519, 64
    %v1522 = vpop.permute.xlu0 %1521
    %v1524 = vmul.f32 %v1502, %v1522
    %1526 = vrot.lane.b32.xlu0 %v1497, 32
    %v1527 = vpop.permute.xlu0 %1526
    %1529 = vst.msk [vmem:[#allocation2] sm:$0xff] %vm114, %v1527
    %1531 = vrot.lane.b32.xlu0 %v1491, 96
    %v1532 = vpop.permute.xlu0 %1531
    %1534 = vst.msk [vmem:[#allocation3] sm:$0xff] %vm114, %v1532
    %1536 = vrot.lane.b32.xlu0 %v1524, 32
    %v1537 = vpop.permute.xlu0 %1536
    %1539 = vst.msk [vmem:[#allocation4] sm:$0xff] %vm114, %v1537
    %1541 = vrot.lane.b32.xlu0 %v1518, 96
    %v1542 = vpop.permute.xlu0 %1541
    %1544 = vst.msk [vmem:[#allocation5] sm:$0xff] %vm114, %v1542
    %s1545 = scalar_lea.vmem [#allocation14], 48
    %1546 = vst.msk [vmem:[%s1545] sm:$0xff] %vm114, %v1527
    %s1547 = scalar_lea.vmem [#allocation15], 8
    %1548 = vst.msk [vmem:[%s1547] sm:$0xff] %vm114, %v1537
    %s1549 = scalar_lea.vmem [#allocation6], 28
    %v1550 = vld [vmem:[%s1549] sm:$0xf]
    %v1551 = vunpack.c.l.bf16 %v1550
    %v1552 = vld [vmem:[#allocation2] sm:$0xff]
    %v1553 = vpack.c.bf16 %v1552, %v1552
    %v1554 = vld [vmem:[#allocation11] sm:$0xf]
    %v1555 = vld [vmem:[#allocation11 + $0x4] sm:$0xf]
    %v1556 = vld [vmem:[#allocation11 + $0x8] sm:$0xf]
    %v1557 = vld [vmem:[#allocation11 + $0xc] sm:$0xf]
    %v1562 = vunpack.c.l.b16 %v1554
    %v1563 = vunpack.c.l.b16 %v1555
    %v1564 = vunpack.c.l.b16 %v1556
    %v1565 = vunpack.c.l.b16 %v1557
    %v1566 = vpack.c.b16 %v1563, %v1562
    %v1567 = vpack.c.b16 %v1565, %v1564
    %v1571 = vsel %vm114, %v1553, 0
    %1573 = vmatprep.subr.bf16.mxu0 0
    %1574 = vmatpush1.bf16.msra.mxu0 %v1566
    %1575 = vmatprep.subr.bf16.mxu0 0
    %1576 = vmatpush1.bf16.msra.mxu0 %v1567
    %1577 = vmatprep.subr.bf16.mxu0 0
    %1578 = vmatpush1.bf16.msra.mxu0 0
    %1579 = vmatprep.subr.bf16.mxu0 0
    %1580 = vmatpush1.bf16.msra.mxu0 0
    %1581 = vmatprep.subr.bf16.mxu0 0
    %1582 = vmatpush1.bf16.msra.mxu0 0
    %1583 = vmatprep.subr.bf16.mxu0 0
    %1584 = vmatpush1.bf16.msra.mxu0 0
    %1585 = vmatprep.subr.bf16.mxu0 0
    %1586 = vmatpush1.bf16.msra.mxu0 0
    %1587 = vmatprep.subr.bf16.mxu0 0
    %1588 = vmatpush1.bf16.msra.mxu0 0
    %1589 = vmatprep.subr.bf16.mxu0 0
    %1590 = vmatpush1.bf16.msra.mxu0 0
    %1591 = vmatprep.subr.bf16.mxu0 0
    %1592 = vmatpush1.bf16.msra.mxu0 0
    %1593 = vmatprep.subr.bf16.mxu0 0
    %1594 = vmatpush1.bf16.msra.mxu0 0
    %1595 = vmatprep.subr.bf16.mxu0 0
    %1596 = vmatpush1.bf16.msra.mxu0 0
    %1597 = vmatprep.subr.bf16.mxu0 0
    %1598 = vmatpush1.bf16.msra.mxu0 0
    %1599 = vmatprep.subr.bf16.mxu0 0
    %1600 = vmatpush1.bf16.msra.mxu0 0
    %1601 = vmatprep.subr.bf16.mxu0 0
    %1602 = vmatpush1.bf16.msra.mxu0 0
    %1603 = vmatprep.subr.bf16.mxu0 0
    %1604 = vmatpush1.bf16.msra.mxu0 0
    %1605 = vmatprep.mubr.bf16.mxu0 0
    %1606 = vmatmul.mubr.bf16.gmra.mrb[0].mxu0 %v1571
    %v1607 = vpop.f32.mrb[0].mxu0
    %v1608 = vadd.f32 0.0, %v1607
    %v1609 = vpop.f32.mrb[0].mxu0
    %v1610 = vpop.f32.mrb[0].mxu0
    %v1611 = vpop.f32.mrb[0].mxu0
    %1612 = vdwg.mxu0
    %v1613 = vadd.f32 %v1551, %v1608
    %v1614 = vld [vmem:[#allocation9] sm:$0xf]
    %v1615 = vunpack.c.l.bf16 %v1614
    %v1616 = vld [vmem:[#allocation4] sm:$0xff]
    %v1617 = vpack.c.bf16 %v1616, %v1616
    %v1618 = vld [vmem:[#allocation12] sm:$0xf]
    %v1619 = vld [vmem:[#allocation12 + $0x4] sm:$0xf]
    %v1620 = vld [vmem:[#allocation12 + $0x8] sm:$0xf]
    %v1621 = vld [vmem:[#allocation12 + $0xc] sm:$0xf]
    %v1626 = vunpack.c.l.b16 %v1618
    %v1627 = vunpack.c.l.b16 %v1619
    %v1628 = vunpack.c.l.b16 %v1620
    %v1629 = vunpack.c.l.b16 %v1621
    %v1630 = vpack.c.b16 %v1627, %v1626
    %v1631 = vpack.c.b16 %v1629, %v1628
    %v1635 = vsel %vm114, %v1617, 0
    %1637 = vmatprep.subr.bf16.mxu0 0
    %1638 = vmatpush1.bf16.msra.mxu0 %v1630
    %1639 = vmatprep.subr.bf16.mxu0 0
    %1640 = vmatpush1.bf16.msra.mxu0 %v1631
    %1641 = vmatprep.subr.bf16.mxu0 0
    %1642 = vmatpush1.bf16.msra.mxu0 0
    %1643 = vmatprep.subr.bf16.mxu0 0
    %1644 = vmatpush1.bf16.msra.mxu0 0
    %1645 = vmatprep.subr.bf16.mxu0 0
    %1646 = vmatpush1.bf16.msra.mxu0 0
    %1647 = vmatprep.subr.bf16.mxu0 0
    %1648 = vmatpush1.bf16.msra.mxu0 0
    %1649 = vmatprep.subr.bf16.mxu0 0
    %1650 = vmatpush1.bf16.msra.mxu0 0
    %1651 = vmatprep.subr.bf16.mxu0 0
    %1652 = vmatpush1.bf16.msra.mxu0 0
    %1653 = vmatprep.subr.bf16.mxu0 0
    %1654 = vmatpush1.bf16.msra.mxu0 0
    %1655 = vmatprep.subr.bf16.mxu0 0
    %1656 = vmatpush1.bf16.msra.mxu0 0
    %1657 = vmatprep.subr.bf16.mxu0 0
    %1658 = vmatpush1.bf16.msra.mxu0 0
    %1659 = vmatprep.subr.bf16.mxu0 0
    %1660 = vmatpush1.bf16.msra.mxu0 0
    %1661 = vmatprep.subr.bf16.mxu0 0
    %1662 = vmatpush1.bf16.msra.mxu0 0
    %1663 = vmatprep.subr.bf16.mxu0 0
    %1664 = vmatpush1.bf16.msra.mxu0 0
    %1665 = vmatprep.subr.bf16.mxu0 0
    %1666 = vmatpush1.bf16.msra.mxu0 0
    %1667 = vmatprep.subr.bf16.mxu0 0
    %1668 = vmatpush1.bf16.msra.mxu0 0
    %1669 = vmatprep.mubr.bf16.mxu0 0
    %1670 = vmatmul.mubr.bf16.gmra.mrb[0].mxu0 %v1635
    %v1671 = vpop.f32.mrb[0].mxu0
    %v1672 = vadd.f32 0.0, %v1671
    %v1673 = vpop.f32.mrb[0].mxu0
    %v1674 = vpop.f32.mrb[0].mxu0
    %v1675 = vpop.f32.mrb[0].mxu0
    %1676 = vdwg.mxu0
    %v1677 = vadd.f32 %v1615, %v1672
    %v1678 = vld [vmem:[#allocation3] sm:$0xff]
    %v1679 = vmul.f32 %v1613, 0.5
    %v1680 = vtanh.pop %v1679
    %v1681 = vmul.f32 %v1680, 0.5
    %v1682 = vadd.f32 %v1681, 0.5
    %v1683 = vtanh.pop %v1613
    %1685 = vrot.lane.b32.xlu0 %v1678, 32
    %v1686 = vpop.permute.xlu0 %1685
    %v1688 = vmul.f32 %v1682, %v1686
    %1690 = vrot.lane.b32.xlu0 %v1683, 64
    %v1691 = vpop.permute.xlu0 %1690
    %v1693 = vmul.f32 %v1682, %v1691
    %1695 = vrot.lane.b32.xlu0 %v1693, 32
    %v1696 = vpop.permute.xlu0 %1695
    %v1698 = vadd.f32 %v1688, %v1696
    %v1699 = vtanh.pop %v1698
    %1701 = vrot.lane.b32.xlu0 %v1699, 64
    %v1702 = vpop.permute.xlu0 %1701
    %v1704 = vmul.f32 %v1682, %v1702
    %v1705 = vld [vmem:[#allocation5] sm:$0xff]
    %v1706 = vmul.f32 %v1677, 0.5
    %v1707 = vtanh.pop %v1706
    %v1708 = vmul.f32 %v1707, 0.5
    %v1709 = vadd.f32 %v1708, 0.5
    %v1710 = vtanh.pop %v1677
    %1712 = vrot.lane.b32.xlu0 %v1705, 32
    %v1713 = vpop.permute.xlu0 %1712
    %v1715 = vmul.f32 %v1709, %v1713
    %1717 = vrot.lane.b32.xlu0 %v1710, 64
    %v1718 = vpop.permute.xlu0 %1717
    %v1720 = vmul.f32 %v1709, %v1718
    %1722 = vrot.lane.b32.xlu0 %v1720, 32
    %v1723 = vpop.permute.xlu0 %1722
    %v1725 = vadd.f32 %v1715, %v1723
    %v1726 = vtanh.pop %v1725
    %1728 = vrot.lane.b32.xlu0 %v1726, 64
    %v1729 = vpop.permute.xlu0 %1728
    %v1731 = vmul.f32 %v1709, %v1729
    %1733 = vrot.lane.b32.xlu0 %v1704, 32
    %v1734 = vpop.permute.xlu0 %1733
    %1736 = vst.msk [vmem:[#allocation2] sm:$0xff] %vm114, %v1734
    %1738 = vrot.lane.b32.xlu0 %v1698, 96
    %v1739 = vpop.permute.xlu0 %1738
    %1741 = vst.msk [vmem:[#allocation3] sm:$0xff] %vm114, %v1739
    %1743 = vrot.lane.b32.xlu0 %v1731, 32
    %v1744 = vpop.permute.xlu0 %1743
    %1746 = vst.msk [vmem:[#allocation4] sm:$0xff] %vm114, %v1744
    %1748 = vrot.lane.b32.xlu0 %v1725, 96
    %v1749 = vpop.permute.xlu0 %1748
    %1751 = vst.msk [vmem:[#allocation5] sm:$0xff] %vm114, %v1749
    %s1752 = scalar_lea.vmem [#allocation14], 56
    %1753 = vst.msk [vmem:[%s1752] sm:$0xff] %vm114, %v1734
    %1754 = vst.msk [vmem:[#allocation15] sm:$0xff] %vm114, %v1744
    // Predicated region
    $region38: #{tpu_custom_call.1} parent=1 // pred_check
      _
    $region39: #{tpu_custom_call.1} parent=1 // pred_check_branch
      %1756 = sbr.rel (0) target = $region41
    $region40: #{tpu_custom_call.1} parent=1 // pred_region
      %s1758 = ssub.s32 1024, 1024
      %1759 = vsyncadd [#allocation8], %s1758
      %s1760 = sshll.u32 [#allocation14], 4
      %s1761 = int_to_ptr.vmem [resolvable:$true] %s1760
      %1766 = dma.vmem_to_hbm [thread:$0]  %s1761, 1024, %s4, [#allocation8], 128, 128, 8
    $region41: #{tpu_custom_call.1} parent=1 // pred_fallthru
      _
    // Predicated region
    $region42: #{tpu_custom_call.1} parent=1 // pred_check
      _
    $region43: #{tpu_custom_call.1} parent=1 // pred_check_branch
      %1768 = sbr.rel (0) target = $region45
    $region44: #{tpu_custom_call.1} parent=1 // pred_region
      %s1769 = ssub.s32 0, 0
      %s1770 = smul.u32 8, %s1769
      %s1772 = ssub.s32 1024, 1024
      %1773 = vsyncadd [#allocation16], %s1772
      %s1774 = smul.addr %s1770, 128
      %s1775 = scalar_lea.hbm %s5, %s1774
      %s1776 = sshll.u32 [#allocation15], 4
      %s1777 = int_to_ptr.vmem [resolvable:$true] %s1776
      %1782 = dma.vmem_to_hbm [thread:$0]  %s1777, 1024, %s1775, [#allocation16], 128, 128, 8
    $region45: #{tpu_custom_call.1} parent=1 // pred_fallthru
      _
    // Predicated region
    $region46: #{tpu_custom_call.1} parent=1 // pred_check
      _
    $region47: #{tpu_custom_call.1} parent=1 // pred_check_branch
      %1784 = sbr.rel (0) target = $region49
    $region48: #{tpu_custom_call.1} parent=1 // pred_region
      %1785 = dma.done [#allocation8], 1024
    $region49: #{tpu_custom_call.1} parent=1 // pred_fallthru
      _
    // Predicated region
    $region50: #{tpu_custom_call.1} parent=1 // pred_check
      _
    $region51: #{tpu_custom_call.1} parent=1 // pred_check_branch
      %1787 = sbr.rel (0) target = $region53
    $region52: #{tpu_custom_call.1} parent=1 // pred_region
      %1788 = dma.done [#allocation16], 1024
    $region53: #{tpu_custom_call.1} parent=1 // pred_fallthru
      _
    %1789 = vsyncpa [#allocation7], 1
    %1790 = vsyncpa [#allocation10], 1
    %1791 = vsyncpa [#allocation13], 1
    %1792 = vsyncpa [#allocation8], 1
    %1793 = vsyncpa [#allocation16], 1

</llo_original>
